<compile_context>
chip_gen: v7x
topology: tpu7x:2x2x1
jax: 0.10.0
libtpu: 0.0.40
codegen_flags: <defaults>
</compile_context>

<pallas_src>
import functools

import jax
import jax.numpy as jnp
from jax.experimental import pallas as pl
from jax.experimental.pallas import tpu as pltpu

H1, H2, H3, H4 = 512, 256, 128, 64   # hidden sizes of the FCNN
LANE = 128
ROW_ALIGN = 16                        # bf16 packs 16 rows per vreg sublane group
MAX_TILE_K = 4096                     # target streamed W1 K-tile (4 MiB bf16)
MAX_TILE_B = 512


def _round_up(n, m):
    return ((n + m - 1) // m) * m


def _choose_tile_k(k_pad):
    """Largest K tile in {4096,2048,1024,512} that divides k_pad (k_pad % 512 == 0)."""
    for tk in (MAX_TILE_K, 2048, 1024, 512):
        if k_pad % tk == 0:
            return tk
    return 512


def fcnn_kernel(x_ref, w1_ref, b1_ref, w2_ref, b2_ref, w3_ref, b3_ref,
                w4_ref, b4_ref, w5_ref, b5_ref, o_ref, acc_ref):
    """Fused 5-layer MLP.  grid = (batch tiles, layer-1 K tiles)."""
    k = pl.program_id(1)

    # ---- layer 1: partial matmul accumulated in f32 scratch over the K axis ----
    @pl.when(k == 0)
    def _():
        acc_ref[...] = jnp.zeros_like(acc_ref)

    acc_ref[...] += jnp.dot(x_ref[...], w1_ref[...],
                            preferred_element_type=jnp.float32)

    # ---- layers 1(tail)-5 on the last K step (weights 2-5 are VMEM-resident) ----
    @pl.when(k == pl.num_programs(1) - 1)
    def _():
        # Dropout(0.5) -> identity in eval mode.
        h = jnp.maximum(acc_ref[...] + b1_ref[...], 0.0)

        h = jnp.dot(h.astype(w2_ref.dtype), w2_ref[...],
                    preferred_element_type=jnp.float32)
        h = jnp.maximum(h + b2_ref[...], 0.0)          # (Dropout -> identity)

        h = jnp.dot(h.astype(w3_ref.dtype), w3_ref[...],
                    preferred_element_type=jnp.float32)
        h = jnp.maximum(h + b3_ref[...], 0.0)

        h = jnp.dot(h.astype(w4_ref.dtype), w4_ref[...],
                    preferred_element_type=jnp.float32)
        h = jnp.maximum(h + b4_ref[...], 0.0)

        out = jnp.dot(h.astype(w5_ref.dtype), w5_ref[...],
                      preferred_element_type=jnp.float32) + b5_ref[...]
        o_ref[...] = out.astype(o_ref.dtype)


def pack_fcnn_params(params):
    """One-time conversion of f32 Linear params into padded bf16 kernel operands.

    Call ONCE and reuse: this hoists the bf16 cast + zero-padding of the (potentially
    48 MiB) W1 out of the per-forward hot path.
    params: list of (W:[d_in,d_out] f32, b:[1,d_out] f32) for the 5 Linear layers.
    """
    (w1, b1), (w2, b2), (w3, b3), (w4, b4), (w5, b5) = params
    D_in = w1.shape[0]
    C = w5.shape[1]
    k_pad = _round_up(D_in, 512)
    c_pad = _round_up(C, LANE)

    def pad_cast(w, rows, cols):
        wb = w.astype(jnp.bfloat16)
        pr, pc = rows - w.shape[0], cols - w.shape[1]
        if pr or pc:
            wb = jnp.pad(wb, ((0, pr), (0, pc)))
        return wb

    def bias(b, cols):
        bf = b.astype(jnp.float32).reshape(1, -1)
        if bf.shape[1] != cols:
            bf = jnp.pad(bf, ((0, 0), (0, cols - bf.shape[1])))
        return bf

    return {
        "w1": pad_cast(w1, k_pad, H1), "b1": bias(b1, H1),
        "w2": pad_cast(w2, H1, H2),    "b2": bias(b2, H2),
        "w3": pad_cast(w3, H2, H3),    "b3": bias(b3, H3),
        "w4": pad_cast(w4, H3, H4),    "b4": bias(b4, H4),
        "w5": pad_cast(w5, H4, c_pad), "b5": bias(b5, c_pad),
    }


@functools.partial(jax.jit, static_argnames=("num_classes",))
def fcnn_forward(x, packed, num_classes):
    """x: [B, D_in] float32.  packed: output of pack_fcnn_params."""
    B, D_in = x.shape
    w1p = packed["w1"]
    k_pad = w1p.shape[0]
    c_pad = packed["w5"].shape[1]
    assert D_in <= k_pad

    # ---- tiling choices -----------------------------------------------------
    tile_k = _choose_tile_k(k_pad)
    bb = max(ROW_ALIGN, _round_up(B, ROW_ALIGN))
    # Bigger tile_b -> fewer re-streams of W1 from HBM (mem-bound layer 1 dominates).
    # Single batch tile for B <= 512 is intentional: splitting it would double W1 traffic.
    tile_b = min(MAX_TILE_B, bb)
    b_pad = _round_up(B, tile_b)

    xb = x.astype(jnp.bfloat16)
    if (b_pad, k_pad) != (B, D_in):
        xb = jnp.pad(xb, ((0, b_pad - B), (0, k_pad - D_in)))

    grid = (b_pad // tile_b, k_pad // tile_k)
    n_b_tiles = grid[0]

    def resident(shape):
        # Whole array as one block, same block every grid step -> stays VMEM-resident.
        return pl.BlockSpec(shape, lambda i, k: (0,) * len(shape))

    in_specs = [
        pl.BlockSpec((tile_b, tile_k), lambda i, k: (i, k)),   # x tile (streamed)
        pl.BlockSpec((tile_k, H1), lambda i, k: (k, 0)),       # W1 K-tile (streamed)
        resident((1, H1)),                                      # b1
        resident((H1, H2)), resident((1, H2)),                  # W2, b2
        resident((H2, H3)), resident((1, H3)),                  # W3, b3
        resident((H3, H4)), resident((1, H4)),                  # W4, b4
        resident((H4, c_pad)), resident((1, c_pad)),            # W5, b5
    ]

    flops = 2 * b_pad * (k_pad * H1 + H1 * H2 + H2 * H3 + H3 * H4 + H4 * c_pad)
    bytes_accessed = (
        xb.size * 2                                   # x streamed once
        + w1p.size * 2 * n_b_tiles                    # W1 re-streamed per batch tile
        + (packed["w2"].size + packed["w3"].size
           + packed["w4"].size + packed["w5"].size) * 2
        + (H1 + H2 + H3 + H4 + c_pad) * 4             # biases (f32)
        + b_pad * c_pad * 4                           # output (f32)
    )

    out = pl.pallas_call(
        fcnn_kernel,
        out_shape=jax.ShapeDtypeStruct((b_pad, c_pad), jnp.float32),
        grid=grid,
        in_specs=in_specs,
        out_specs=pl.BlockSpec((tile_b, c_pad), lambda i, k: (i, 0)),
        scratch_shapes=[pltpu.VMEM((tile_b, H1), jnp.float32)],
        compiler_params=pltpu.CompilerParams(
            dimension_semantics=("parallel", "arbitrary"),
            vmem_limit_bytes=32 << 20),
        cost_estimate=pl.CostEstimate(
            flops=flops, transcendentals=0, bytes_accessed=bytes_accessed),
    )(xb, w1p, packed["b1"], packed["w2"], packed["b2"], packed["w3"],
      packed["b3"], packed["w4"], packed["b4"], packed["w5"], packed["b5"])

    return out[:B, :num_classes]


def init_params(key, dims):
    """Deterministic Linear params (f32). dims = [D_in, 512, 256, 128, 64, C]."""
    params = []
    for i in range(len(dims) - 1):
        d_in, d_out = dims[i], dims[i + 1]
        key, kw, kb = jax.random.split(key, 3)
        bound = 1.0 / jnp.sqrt(d_in)  # matches PyTorch Linear init scale
        w = jax.random.uniform(kw, (d_in, d_out), jnp.float32, -bound, bound)
        b = jax.random.uniform(kb, (1, d_out), jnp.float32, -bound, bound)
        params.append((w, b))
    return params


def fcnn_reference_bf16(x, params):
    """Mirrors kernel math: bf16 matmul operands, f32 accumulation / elementwise."""
    h = x.astype(jnp.bfloat16)
    n = len(params)
    for i, (w, b) in enumerate(params):
        h = jnp.dot(h, w.astype(jnp.bfloat16),
                    preferred_element_type=jnp.float32) + b
        if i < n - 1:
            h = jnp.maximum(h, 0.0).astype(jnp.bfloat16)
    return h


def fcnn_reference_f32(x, params):
    h = x
    n = len(params)
    for i, (w, b) in enumerate(params):
        h = h @ w + b
        if i < n - 1:
            h = jnp.maximum(h, 0.0)
    return h


if __name__ == "__main__":
    # Small shapes consistent with FCNN(input_size, num_classes).
    # (The original script uses input_size = 128*128*3 = 49152; the adaptive K-tiled
    #  grid supports that size too — here D_IN = 32*32*3 keeps the test small while
    #  still exercising multiple K steps: k_pad=3072 -> tile_k=1024 -> 3 steps.)
    B = 4
    D_IN = 3072
    NUM_CLASSES = 10
    dims = [D_IN, H1, H2, H3, H4, NUM_CLASSES]

    key = jax.random.PRNGKey(0)
    key, kx = jax.random.split(key)
    x = jax.random.normal(kx, (B, D_IN), jnp.float32)
    params = init_params(key, dims)

    packed = pack_fcnn_params(params)          # one-time pack (hoisted out of hot path)
    out = jax.block_until_ready(fcnn_forward(x, packed, num_classes=NUM_CLASSES))

    ref_bf16 = fcnn_reference_bf16(x, params)
    ref_f32 = fcnn_reference_f32(x, params)

    assert out.shape == (B, NUM_CLASSES), out.shape
    assert jnp.allclose(out, ref_bf16, atol=5e-3, rtol=5e-3), "mismatch vs bf16 reference"
    assert jnp.allclose(out, ref_f32, atol=5e-2, rtol=5e-2), "mismatch vs f32 reference"

    print("KERNEL_OK")
</pallas_src>

<mosaic_0001>
module attributes {stable_mosaic.version = 11 : i64} {
  func.func @fcnn_kernel(%arg0: i32, %arg1: i32, %arg2: memref<16x1024xbf16, #tpu.memory_space<vmem>>, %arg3: memref<1024x512xbf16, #tpu.memory_space<vmem>>, %arg4: memref<1x512xf32, #tpu.memory_space<vmem>>, %arg5: memref<512x256xbf16, #tpu.memory_space<vmem>>, %arg6: memref<1x256xf32, #tpu.memory_space<vmem>>, %arg7: memref<256x128xbf16, #tpu.memory_space<vmem>>, %arg8: memref<1x128xf32, #tpu.memory_space<vmem>>, %arg9: memref<128x64xbf16, #tpu.memory_space<vmem>>, %arg10: memref<1x64xf32, #tpu.memory_space<vmem>>, %arg11: memref<64x128xbf16, #tpu.memory_space<vmem>>, %arg12: memref<1x128xf32, #tpu.memory_space<vmem>>, %arg13: memref<16x128xf32, #tpu.memory_space<vmem>>, %arg14: memref<16x512xf32, #tpu.memory_space<vmem>>) attributes {dimension_semantics = [#tpu.dimension_semantics<parallel>, #tpu.dimension_semantics<arbitrary>], iteration_bounds = array<i64: 1, 3>, scalar_prefetch = 0 : i64, scratch_operands = 1 : i64, tpu.core_type = #tpu.core_type<tc>, window_params = [{transform_indices = @transform_0, window_bounds = array<i64: 16, 1024>}, {transform_indices = @transform_1, window_bounds = array<i64: 1024, 512>}, {pipeline_mode = #tpu.pipeline_mode<synchronous>, transform_indices = @transform_2, window_bounds = array<i64: 1, 512>}, {pipeline_mode = #tpu.pipeline_mode<synchronous>, transform_indices = @transform_3, window_bounds = array<i64: 512, 256>}, {pipeline_mode = #tpu.pipeline_mode<synchronous>, transform_indices = @transform_4, window_bounds = array<i64: 1, 256>}, {pipeline_mode = #tpu.pipeline_mode<synchronous>, transform_indices = @transform_5, window_bounds = array<i64: 256, 128>}, {pipeline_mode = #tpu.pipeline_mode<synchronous>, transform_indices = @transform_6, window_bounds = array<i64: 1, 128>}, {pipeline_mode = #tpu.pipeline_mode<synchronous>, transform_indices = @transform_7, window_bounds = array<i64: 128, 64>}, {pipeline_mode = #tpu.pipeline_mode<synchronous>, transform_indices = @transform_8, window_bounds = array<i64: 1, 64>}, {pipeline_mode = #tpu.pipeline_mode<synchronous>, transform_indices = @transform_9, window_bounds = array<i64: 64, 128>}, {pipeline_mode = #tpu.pipeline_mode<synchronous>, transform_indices = @transform_10, window_bounds = array<i64: 1, 128>}, {transform_indices = @transform_11, window_bounds = array<i64: 16, 128>}]} {
    %c0_i32 = arith.constant 0 : i32
    %0 = arith.cmpi eq, %arg1, %c0_i32 : i32
    %1 = arith.extui %0 : i1 to i32
    %c0_i32_0 = arith.constant 0 : i32
    %2 = arith.cmpi ne, %1, %c0_i32_0 : i32
    scf.if %2 {
      %cst_9 = arith.constant 0.000000e+00 : f32
      %12 = vector.broadcast %cst_9 : f32 to vector<16x512xf32>
      %c0_10 = arith.constant 0 : index
      %c0_11 = arith.constant 0 : index
      %13 = vector.load %arg14[%c0_10, %c0_11] : memref<16x512xf32, #tpu.memory_space<vmem>>, vector<16x512xf32>
      tpu.vector_store %arg14[%c0_10, %c0_11], %12 {strides = array<i32>} : memref<16x512xf32, #tpu.memory_space<vmem>>, vector<16x512xf32>,
    } else {
    }
    %c0 = arith.constant 0 : index
    %c0_1 = arith.constant 0 : index
    %3 = vector.load %arg14[%c0, %c0_1] : memref<16x512xf32, #tpu.memory_space<vmem>>, vector<16x512xf32>
    %c0_2 = arith.constant 0 : index
    %c0_3 = arith.constant 0 : index
    %4 = vector.load %arg2[%c0_2, %c0_3] : memref<16x1024xbf16, #tpu.memory_space<vmem>>, vector<16x1024xbf16>
    %c0_4 = arith.constant 0 : index
    %c0_5 = arith.constant 0 : index
    %5 = vector.load %arg3[%c0_4, %c0_5] : memref<1024x512xbf16, #tpu.memory_space<vmem>>, vector<1024x512xbf16>
    %cst = arith.constant dense<0.000000e+00> : vector<16x512xf32>
    %6 = tpu.matmul %4, %5, %cst {dimension_numbers = #tpu.dot_dimension_numbers<[1], [0], [0], [1], [0, 0, 1, 1], [], []>} : vector<16x1024xbf16>, vector<1024x512xbf16>, vector<16x512xf32> -> vector<16x512xf32>
    %7 = arith.addf %3, %6 : vector<16x512xf32>
    %c0_6 = arith.constant 0 : index
    %c0_7 = arith.constant 0 : index
    %8 = vector.load %arg14[%c0_6, %c0_7] : memref<16x512xf32, #tpu.memory_space<vmem>>, vector<16x512xf32>
    tpu.vector_store %arg14[%c0_6, %c0_7], %7 {strides = array<i32>} : memref<16x512xf32, #tpu.memory_space<vmem>>, vector<16x512xf32>,
    %c2_i32 = arith.constant 2 : i32
    %9 = arith.cmpi eq, %arg1, %c2_i32 : i32
    %10 = arith.extui %9 : i1 to i32
    %c0_i32_8 = arith.constant 0 : i32
    %11 = arith.cmpi ne, %10, %c0_i32_8 : i32
    scf.if %11 {
      %c0_9 = arith.constant 0 : index
      %c0_10 = arith.constant 0 : index
      %12 = vector.load %arg14[%c0_9, %c0_10] : memref<16x512xf32, #tpu.memory_space<vmem>>, vector<16x512xf32>
      %c0_11 = arith.constant 0 : index
      %c0_12 = arith.constant 0 : index
      %13 = vector.load %arg4[%c0_11, %c0_12] : memref<1x512xf32, #tpu.memory_space<vmem>>, vector<1x512xf32>
      %14 = vector.broadcast %13 : vector<1x512xf32> to vector<16x512xf32>
      %15 = arith.addf %12, %14 : vector<16x512xf32>
      %cst_13 = arith.constant 0.000000e+00 : f32
      %16 = vector.broadcast %cst_13 : f32 to vector<16x512xf32>
      %17 = arith.maximumf %15, %16 : vector<16x512xf32>
      %18 = arith.truncf %17 : vector<16x512xf32> to vector<16x512xbf16>
      %c0_14 = arith.constant 0 : index
      %c0_15 = arith.constant 0 : index
      %19 = vector.load %arg5[%c0_14, %c0_15] : memref<512x256xbf16, #tpu.memory_space<vmem>>, vector<512x256xbf16>
      %cst_16 = arith.constant dense<0.000000e+00> : vector<16x256xf32>
      %20 = tpu.matmul %18, %19, %cst_16 {dimension_numbers = #tpu.dot_dimension_numbers<[1], [0], [0], [1], [0, 0, 1, 1], [], []>} : vector<16x512xbf16>, vector<512x256xbf16>, vector<16x256xf32> -> vector<16x256xf32>
      %c0_17 = arith.constant 0 : index
      %c0_18 = arith.constant 0 : index
      %21 = vector.load %arg6[%c0_17, %c0_18] : memref<1x256xf32, #tpu.memory_space<vmem>>, vector<1x256xf32>
      %22 = vector.broadcast %21 : vector<1x256xf32> to vector<16x256xf32>
      %23 = arith.addf %20, %22 : vector<16x256xf32>
      %cst_19 = arith.constant 0.000000e+00 : f32
      %24 = vector.broadcast %cst_19 : f32 to vector<16x256xf32>
      %25 = arith.maximumf %23, %24 : vector<16x256xf32>
      %26 = arith.truncf %25 : vector<16x256xf32> to vector<16x256xbf16>
      %c0_20 = arith.constant 0 : index
      %c0_21 = arith.constant 0 : index
      %27 = vector.load %arg7[%c0_20, %c0_21] : memref<256x128xbf16, #tpu.memory_space<vmem>>, vector<256x128xbf16>
      %cst_22 = arith.constant dense<0.000000e+00> : vector<16x128xf32>
      %28 = tpu.matmul %26, %27, %cst_22 {dimension_numbers = #tpu.dot_dimension_numbers<[1], [0], [0], [1], [0, 0, 1, 1], [], []>} : vector<16x256xbf16>, vector<256x128xbf16>, vector<16x128xf32> -> vector<16x128xf32>
      %c0_23 = arith.constant 0 : index
      %c0_24 = arith.constant 0 : index
      %29 = vector.load %arg8[%c0_23, %c0_24] : memref<1x128xf32, #tpu.memory_space<vmem>>, vector<1x128xf32>
      %30 = vector.broadcast %29 : vector<1x128xf32> to vector<16x128xf32>
      %31 = arith.addf %28, %30 : vector<16x128xf32>
      %cst_25 = arith.constant 0.000000e+00 : f32
      %32 = vector.broadcast %cst_25 : f32 to vector<16x128xf32>
      %33 = arith.maximumf %31, %32 : vector<16x128xf32>
      %34 = arith.truncf %33 : vector<16x128xf32> to vector<16x128xbf16>
      %c0_26 = arith.constant 0 : index
      %c0_27 = arith.constant 0 : index
      %35 = vector.load %arg9[%c0_26, %c0_27] : memref<128x64xbf16, #tpu.memory_space<vmem>>, vector<128x64xbf16>
      %cst_28 = arith.constant dense<0.000000e+00> : vector<16x64xf32>
      %36 = tpu.matmul %34, %35, %cst_28 {dimension_numbers = #tpu.dot_dimension_numbers<[1], [0], [0], [1], [0, 0, 1, 1], [], []>} : vector<16x128xbf16>, vector<128x64xbf16>, vector<16x64xf32> -> vector<16x64xf32>
      %c0_29 = arith.constant 0 : index
      %c0_30 = arith.constant 0 : index
      %37 = vector.load %arg10[%c0_29, %c0_30] : memref<1x64xf32, #tpu.memory_space<vmem>>, vector<1x64xf32>
      %38 = vector.broadcast %37 : vector<1x64xf32> to vector<16x64xf32>
      %39 = arith.addf %36, %38 : vector<16x64xf32>
      %cst_31 = arith.constant 0.000000e+00 : f32
      %40 = vector.broadcast %cst_31 : f32 to vector<16x64xf32>
      %41 = arith.maximumf %39, %40 : vector<16x64xf32>
      %42 = arith.truncf %41 : vector<16x64xf32> to vector<16x64xbf16>
      %c0_32 = arith.constant 0 : index
      %c0_33 = arith.constant 0 : index
      %43 = vector.load %arg11[%c0_32, %c0_33] : memref<64x128xbf16, #tpu.memory_space<vmem>>, vector<64x128xbf16>
      %cst_34 = arith.constant dense<0.000000e+00> : vector<16x128xf32>
      %44 = tpu.matmul %42, %43, %cst_34 {dimension_numbers = #tpu.dot_dimension_numbers<[1], [0], [0], [1], [0, 0, 1, 1], [], []>} : vector<16x64xbf16>, vector<64x128xbf16>, vector<16x128xf32> -> vector<16x128xf32>
      %c0_35 = arith.constant 0 : index
      %c0_36 = arith.constant 0 : index
      %45 = vector.load %arg12[%c0_35, %c0_36] : memref<1x128xf32, #tpu.memory_space<vmem>>, vector<1x128xf32>
      %46 = vector.broadcast %45 : vector<1x128xf32> to vector<16x128xf32>
      %47 = arith.addf %44, %46 : vector<16x128xf32>
      %c0_37 = arith.constant 0 : index
      %c0_38 = arith.constant 0 : index
      %48 = vector.load %arg13[%c0_37, %c0_38] : memref<16x128xf32, #tpu.memory_space<vmem>>, vector<16x128xf32>
      tpu.vector_store %arg13[%c0_37, %c0_38], %47 {strides = array<i32>} : memref<16x128xf32, #tpu.memory_space<vmem>>, vector<16x128xf32>,
    } else {
    }
    return
  }
  func.func @transform_0(%arg0: i32, %arg1: i32) -> (i32, i32) {
    %c0_i32 = arith.constant 0 : i32
    return %arg0, %arg1 : i32, i32
  }
  func.func @transform_1(%arg0: i32, %arg1: i32) -> (i32, i32) {
    %c0_i32 = arith.constant 0 : i32
    %c0_i32_0 = arith.constant 0 : i32
    return %arg1, %c0_i32 : i32, i32
  }
  func.func @transform_2(%arg0: i32, %arg1: i32) -> (i32, i32) {
    %c0_i32 = arith.constant 0 : i32
    %c0_i32_0 = arith.constant 0 : i32
    %c0_i32_1 = arith.constant 0 : i32
    return %c0_i32, %c0_i32_0 : i32, i32
  }
  func.func @transform_3(%arg0: i32, %arg1: i32) -> (i32, i32) {
    %c0_i32 = arith.constant 0 : i32
    %c0_i32_0 = arith.constant 0 : i32
    %c0_i32_1 = arith.constant 0 : i32
    return %c0_i32, %c0_i32_0 : i32, i32
  }
  func.func @transform_4(%arg0: i32, %arg1: i32) -> (i32, i32) {
    %c0_i32 = arith.constant 0 : i32
    %c0_i32_0 = arith.constant 0 : i32
    %c0_i32_1 = arith.constant 0 : i32
    return %c0_i32, %c0_i32_0 : i32, i32
  }
  func.func @transform_5(%arg0: i32, %arg1: i32) -> (i32, i32) {
    %c0_i32 = arith.constant 0 : i32
    %c0_i32_0 = arith.constant 0 : i32
    %c0_i32_1 = arith.constant 0 : i32
    return %c0_i32, %c0_i32_0 : i32, i32
  }
  func.func @transform_6(%arg0: i32, %arg1: i32) -> (i32, i32) {
    %c0_i32 = arith.constant 0 : i32
    %c0_i32_0 = arith.constant 0 : i32
    %c0_i32_1 = arith.constant 0 : i32
    return %c0_i32, %c0_i32_0 : i32, i32
  }
  func.func @transform_7(%arg0: i32, %arg1: i32) -> (i32, i32) {
    %c0_i32 = arith.constant 0 : i32
    %c0_i32_0 = arith.constant 0 : i32
    %c0_i32_1 = arith.constant 0 : i32
    return %c0_i32, %c0_i32_0 : i32, i32
  }
  func.func @transform_8(%arg0: i32, %arg1: i32) -> (i32, i32) {
    %c0_i32 = arith.constant 0 : i32
    %c0_i32_0 = arith.constant 0 : i32
    %c0_i32_1 = arith.constant 0 : i32
    return %c0_i32, %c0_i32_0 : i32, i32
  }
  func.func @transform_9(%arg0: i32, %arg1: i32) -> (i32, i32) {
    %c0_i32 = arith.constant 0 : i32
    %c0_i32_0 = arith.constant 0 : i32
    %c0_i32_1 = arith.constant 0 : i32
    return %c0_i32, %c0_i32_0 : i32, i32
  }
  func.func @transform_10(%arg0: i32, %arg1: i32) -> (i32, i32) {
    %c0_i32 = arith.constant 0 : i32
    %c0_i32_0 = arith.constant 0 : i32
    %c0_i32_1 = arith.constant 0 : i32
    return %c0_i32, %c0_i32_0 : i32, i32
  }
  func.func @transform_11(%arg0: i32, %arg1: i32) -> (i32, i32) {
    %c0_i32 = arith.constant 0 : i32
    %c0_i32_0 = arith.constant 0 : i32
    return %arg0, %c0_i32 : i32, i32
  }
}

</mosaic_0001>

<llo_original>
// kernel: fcnn_forward.1
$region0: #{fcnn_forward.1}
  #allocation0 [shape = 'u32[]', space=smem, size = 0x4, offset = 0x4, fixed_abs, tag = 'smem constant byte address 0x4 - core index']
  #allocation1 [shape = 'u32[144,128]{1,0:T(1,128)}', space=vmem, size = 0x12000, scoped, tag = 'internal scratch']
  #allocation2 [shape = 'f32[16,512]{1,0:T(8,128)}', space=vmem, size = 0x8000, scoped, tag = 'scratch operand']
  %s0 = inlined_call_operand.vmem [shape: bf16[16,3072], index: 0, kind: input, shape index: {}]
  %s1 = inlined_call_operand.hbm [shape: bf16[3072,512], index: 1, kind: input, shape index: {}]
  %s2 = inlined_call_operand.hbm [shape: f32[1,512], index: 2, kind: input, shape index: {}]
  %s3 = inlined_call_operand.hbm [shape: bf16[512,256], index: 3, kind: input, shape index: {}]
  %s4 = inlined_call_operand.hbm [shape: f32[1,256], index: 4, kind: input, shape index: {}]
  %s5 = inlined_call_operand.hbm [shape: bf16[256,128], index: 5, kind: input, shape index: {}]
  %s6 = inlined_call_operand.hbm [shape: f32[1,128], index: 6, kind: input, shape index: {}]
  %s7 = inlined_call_operand.vmem [shape: bf16[128,64], index: 7, kind: input, shape index: {}]
  %s8 = inlined_call_operand.hbm [shape: f32[1,64], index: 8, kind: input, shape index: {}]
  %s9 = inlined_call_operand.hbm [shape: bf16[64,128], index: 9, kind: input, shape index: {}]
  %s10 = inlined_call_operand.hbm [shape: f32[1,128], index: 10, kind: input, shape index: {}]
  %s11 = inlined_call_operand.vmem [shape: f32[16,128], index: 11, kind: output, shape index: {}]
  %s12 = sld [smem:[#allocation0]]
  $region144: #{fcnn_forward.1} parent=0
    _
  %s14 = ssub.s32 1, %s12
  %s15 = scalar_select 0, %s14, %s12
  $region1: #{fcnn_forward.1} parent=0
    #allocation3 [shape = 'u8[65536]{0}', space=vmem, size = 0x10000, scoped, tag = 'input window, operand 0']
    #allocation4 [shape = 'u8[2097152]{0}', space=vmem, size = 0x200000, scoped, tag = 'input window, operand 1']
    #allocation5 [shape = 's32[2]{0}', space=sflag, size = 0x8, scoped, tag = 'scoped memory for fcnn_forward.1']
    #allocation6 [shape = 'u8[2048]{0}', space=vmem, size = 0x800, scoped, tag = 'input window, operand 2, single buffered']
    #allocation7 [shape = 's32[1]{0}', space=sflag, size = 0x4, scoped, tag = 'scoped memory for fcnn_forward.1']
    #allocation8 [shape = 'u8[262144]{0}', space=vmem, size = 0x40000, scoped, tag = 'input window, operand 3, single buffered']
    #allocation9 [shape = 'u8[1024]{0}', space=vmem, size = 0x400, scoped, tag = 'input window, operand 4, single buffered']
    #allocation10 [shape = 's32[1]{0}', space=sflag, size = 0x4, scoped, tag = 'scoped memory for fcnn_forward.1']
    #allocation11 [shape = 'u8[65536]{0}', space=vmem, size = 0x10000, scoped, tag = 'input window, operand 5, single buffered']
    #allocation12 [shape = 'u8[512]{0}', space=vmem, size = 0x400, scoped, tag = 'input window, operand 6, single buffered']
    #allocation13 [shape = 's32[1]{0}', space=sflag, size = 0x4, scoped, tag = 'scoped memory for fcnn_forward.1']
    #allocation14 [shape = 'u8[512]{0}', space=vmem, size = 0x400, scoped, tag = 'input window, operand 8, single buffered']
    #allocation15 [shape = 'u8[16384]{0}', space=vmem, size = 0x4000, scoped, tag = 'input window, operand 9, single buffered']
    #allocation16 [shape = 's32[1]{0}', space=sflag, size = 0x4, scoped, tag = 'scoped memory for fcnn_forward.1']
    #allocation17 [shape = 'u8[512]{0}', space=vmem, size = 0x400, scoped, tag = 'input window, operand 10, single buffered']
    %16 = vsyncpa [#allocation5], 0
    %s17 = scalar_lea.sflag [#allocation5], 1
    %18 = vsyncpa %s17, 0
    %19 = vsyncpa [#allocation7], 0
    %20 = vsyncpa [#allocation10], 0
    %21 = vsyncpa [#allocation13], 0
    %22 = vsyncpa [#allocation16], 0
    loop: start=0, step=1, limit=5
    $region2: #{fcnn_forward.1} parent=1 // loop_pre_header
      _
    $region3: #{fcnn_forward.1} parent=1 // loop_header
      %s24 = sphi 0, %s28
      %p25 = scmp.ge.s32.totalorder %s24, 5
      %s31 = sphi 0, %s43
      %s32 = sphi 0, %s39
      %s33 = sphi 0, %s31
      %s34 = sphi 0, %s32
      %s35 = sphi 0, %s33
      %s36 = sphi 0, %s34
      %s48 = sphi 0, %s50
      %s51 = sphi 0, %s48
      %s52 = sphi 0, %s51
      %s68 = sphi 0, %s52
      %s74 = sphi 0, %s76
      %s77 = sphi 0, %s74
      %s78 = sphi 0, %s77
      %s94 = sphi 0, %s78
      %s98 = sphi 0, %s98
      %s100 = sphi 0, %s98
      %s101 = sphi 0, %s100
      %s115 = sphi 0, %s101
      %s119 = sphi 0, %s119
      %s121 = sphi 0, %s119
      %s122 = sphi 0, %s121
      %s136 = sphi 0, %s122
      %s140 = sphi 0, %s140
      %s142 = sphi 0, %s140
      %s143 = sphi 0, %s142
      %s157 = sphi 0, %s143
      %s161 = sphi 0, %s161
      %s163 = sphi 0, %s161
      %s164 = sphi 0, %s163
      %s178 = sphi 0, %s164
      %s182 = sphi 0, %s182
      %s184 = sphi 0, %s182
      %s185 = sphi 0, %s184
      %s199 = sphi 0, %s185
      %s203 = sphi 0, %s203
      %s205 = sphi 0, %s203
      %s206 = sphi 0, %s205
      %s220 = sphi 0, %s206
      %s224 = sphi 0, %s224
      %s226 = sphi 0, %s224
      %s227 = sphi 0, %s226
      %s241 = sphi 0, %s227
      %s245 = sphi 0, %s245
      %s247 = sphi 0, %s245
      %s248 = sphi 0, %s247
      %s262 = sphi 0, %s248
      %s266 = sphi 0, %s266
      %s268 = sphi 0, %s266
      %s269 = sphi 0, %s268
      %s283 = sphi 0, %s269
      %s289 = sphi 0, %s291
      %s292 = sphi 0, %s289
      %s293 = sphi 0, %s292
      %s309 = sphi 0, %s293
    $region4: #{fcnn_forward.1} parent=1 // loop_header_branch
      %27 = sbr.rel (%p25) target = $region8
    $region5: #{fcnn_forward.1} parent=1 // loop_body
      %s29 = ssub.s32 %s24, 1
      %s30 = ssub.s32 %s24, 2
      %s37 = sadd.s32 1, %s32
      %p38 = scmp.ge.s32.totalorder %s37, 3
      %s39 = scalar_select %p38, 0, %s37
      %s40 = sadd.s32 1, %s31
      %s41 = scalar_select %p38, %s40, %s31
      %p42 = scmp.ge.s32.totalorder %s41, 1
      %s43 = scalar_select %p42, 0, %s41
      %s44 = ssub.s32 %s31, %s43
      %s45 = ssub.s32 %s32, %s39
      %s46 = sor.u32 %s44, %s45
      %p47 = scmp.eq.s32.totalorder %s46, 0
      %s49 = sadd.s32 %s48, 1
      %s50 = scalar_select %p47, %s48, %s49
      %p53 = pneg %p47
      %p54 = scmp.eq.s32.totalorder %s24, 2
      %p55 = por %p53, %p54
      %p56 = scmp.ne.s32.totalorder %s48, %s51
      %p57 = scmp.eq.s32.totalorder %s24, 0
      %p58 = por %p56, %p57
      %p59 = scmp.ne.s32.totalorder %s48, %s51
      %p60 = scmp.eq.s32.totalorder %s29, 2
      %p61 = por %p59, %p60
      %p62 = scmp.ne.s32.totalorder %s51, %s52
      %p63 = scmp.eq.s32.totalorder %s29, 0
      %p64 = por %p62, %p63
      %p65 = scmp.ne.s32.totalorder %s51, %s52
      %p66 = scmp.eq.s32.totalorder %s30, 2
      %p67 = por %p65, %p66
      %p69 = scmp.ne.s32.totalorder %s52, %s68
      %p70 = scmp.eq.s32.totalorder %s30, 0
      %p71 = por %p69, %p70
      %s72 = ssub.s32 %s32, %s39
      %p73 = scmp.eq.s32.totalorder %s72, 0
      %s75 = sadd.s32 %s74, 1
      %s76 = scalar_select %p73, %s74, %s75
      %p79 = pneg %p73
      %p80 = scmp.eq.s32.totalorder %s24, 2
      %p81 = por %p79, %p80
      %p82 = scmp.ne.s32.totalorder %s74, %s77
      %p83 = scmp.eq.s32.totalorder %s24, 0
      %p84 = por %p82, %p83
      %p85 = scmp.ne.s32.totalorder %s74, %s77
      %p86 = scmp.eq.s32.totalorder %s29, 2
      %p87 = por %p85, %p86
      %p88 = scmp.ne.s32.totalorder %s77, %s78
      %p89 = scmp.eq.s32.totalorder %s29, 0
      %p90 = por %p88, %p89
      %p91 = scmp.ne.s32.totalorder %s77, %s78
      %p92 = scmp.eq.s32.totalorder %s30, 2
      %p93 = por %p91, %p92
      %p95 = scmp.ne.s32.totalorder %s78, %s94
      %p96 = scmp.eq.s32.totalorder %s30, 0
      %p97 = por %p95, %p96
      %s99 = sadd.s32 %s98, 1
      %p102 = scmp.eq.s32.totalorder %s24, 2
      %p103 = scmp.ne.s32.totalorder %s98, %s100
      %p104 = scmp.eq.s32.totalorder %s24, 0
      %p105 = por %p103, %p104
      %p106 = scmp.ne.s32.totalorder %s98, %s100
      %p107 = scmp.eq.s32.totalorder %s29, 2
      %p108 = por %p106, %p107
      %p109 = scmp.ne.s32.totalorder %s100, %s101
      %p110 = scmp.eq.s32.totalorder %s29, 0
      %p111 = por %p109, %p110
      %p112 = scmp.ne.s32.totalorder %s100, %s101
      %p113 = scmp.eq.s32.totalorder %s30, 2
      %p114 = por %p112, %p113
      %p116 = scmp.ne.s32.totalorder %s101, %s115
      %p117 = scmp.eq.s32.totalorder %s30, 0
      %p118 = por %p116, %p117
      %s120 = sadd.s32 %s119, 1
      %p123 = scmp.eq.s32.totalorder %s24, 2
      %p124 = scmp.ne.s32.totalorder %s119, %s121
      %p125 = scmp.eq.s32.totalorder %s24, 0
      %p126 = por %p124, %p125
      %p127 = scmp.ne.s32.totalorder %s119, %s121
      %p128 = scmp.eq.s32.totalorder %s29, 2
      %p129 = por %p127, %p128
      %p130 = scmp.ne.s32.totalorder %s121, %s122
      %p131 = scmp.eq.s32.totalorder %s29, 0
      %p132 = por %p130, %p131
      %p133 = scmp.ne.s32.totalorder %s121, %s122
      %p134 = scmp.eq.s32.totalorder %s30, 2
      %p135 = por %p133, %p134
      %p137 = scmp.ne.s32.totalorder %s122, %s136
      %p138 = scmp.eq.s32.totalorder %s30, 0
      %p139 = por %p137, %p138
      %s141 = sadd.s32 %s140, 1
      %p144 = scmp.eq.s32.totalorder %s24, 2
      %p145 = scmp.ne.s32.totalorder %s140, %s142
      %p146 = scmp.eq.s32.totalorder %s24, 0
      %p147 = por %p145, %p146
      %p148 = scmp.ne.s32.totalorder %s140, %s142
      %p149 = scmp.eq.s32.totalorder %s29, 2
      %p150 = por %p148, %p149
      %p151 = scmp.ne.s32.totalorder %s142, %s143
      %p152 = scmp.eq.s32.totalorder %s29, 0
      %p153 = por %p151, %p152
      %p154 = scmp.ne.s32.totalorder %s142, %s143
      %p155 = scmp.eq.s32.totalorder %s30, 2
      %p156 = por %p154, %p155
      %p158 = scmp.ne.s32.totalorder %s143, %s157
      %p159 = scmp.eq.s32.totalorder %s30, 0
      %p160 = por %p158, %p159
      %s162 = sadd.s32 %s161, 1
      %p165 = scmp.eq.s32.totalorder %s24, 2
      %p166 = scmp.ne.s32.totalorder %s161, %s163
      %p167 = scmp.eq.s32.totalorder %s24, 0
      %p168 = por %p166, %p167
      %p169 = scmp.ne.s32.totalorder %s161, %s163
      %p170 = scmp.eq.s32.totalorder %s29, 2
      %p171 = por %p169, %p170
      %p172 = scmp.ne.s32.totalorder %s163, %s164
      %p173 = scmp.eq.s32.totalorder %s29, 0
      %p174 = por %p172, %p173
      %p175 = scmp.ne.s32.totalorder %s163, %s164
      %p176 = scmp.eq.s32.totalorder %s30, 2
      %p177 = por %p175, %p176
      %p179 = scmp.ne.s32.totalorder %s164, %s178
      %p180 = scmp.eq.s32.totalorder %s30, 0
      %p181 = por %p179, %p180
      %s183 = sadd.s32 %s182, 1
      %p186 = scmp.eq.s32.totalorder %s24, 2
      %p187 = scmp.ne.s32.totalorder %s182, %s184
      %p188 = scmp.eq.s32.totalorder %s24, 0
      %p189 = por %p187, %p188
      %p190 = scmp.ne.s32.totalorder %s182, %s184
      %p191 = scmp.eq.s32.totalorder %s29, 2
      %p192 = por %p190, %p191
      %p193 = scmp.ne.s32.totalorder %s184, %s185
      %p194 = scmp.eq.s32.totalorder %s29, 0
      %p195 = por %p193, %p194
      %p196 = scmp.ne.s32.totalorder %s184, %s185
      %p197 = scmp.eq.s32.totalorder %s30, 2
      %p198 = por %p196, %p197
      %p200 = scmp.ne.s32.totalorder %s185, %s199
      %p201 = scmp.eq.s32.totalorder %s30, 0
      %p202 = por %p200, %p201
      %s204 = sadd.s32 %s203, 1
      %p207 = scmp.eq.s32.totalorder %s24, 2
      %p208 = scmp.ne.s32.totalorder %s203, %s205
      %p209 = scmp.eq.s32.totalorder %s24, 0
      %p210 = por %p208, %p209
      %p211 = scmp.ne.s32.totalorder %s203, %s205
      %p212 = scmp.eq.s32.totalorder %s29, 2
      %p213 = por %p211, %p212
      %p214 = scmp.ne.s32.totalorder %s205, %s206
      %p215 = scmp.eq.s32.totalorder %s29, 0
      %p216 = por %p214, %p215
      %p217 = scmp.ne.s32.totalorder %s205, %s206
      %p218 = scmp.eq.s32.totalorder %s30, 2
      %p219 = por %p217, %p218
      %p221 = scmp.ne.s32.totalorder %s206, %s220
      %p222 = scmp.eq.s32.totalorder %s30, 0
      %p223 = por %p221, %p222
      %s225 = sadd.s32 %s224, 1
      %p228 = scmp.eq.s32.totalorder %s24, 2
      %p229 = scmp.ne.s32.totalorder %s224, %s226
      %p230 = scmp.eq.s32.totalorder %s24, 0
      %p231 = por %p229, %p230
      %p232 = scmp.ne.s32.totalorder %s224, %s226
      %p233 = scmp.eq.s32.totalorder %s29, 2
      %p234 = por %p232, %p233
      %p235 = scmp.ne.s32.totalorder %s226, %s227
      %p236 = scmp.eq.s32.totalorder %s29, 0
      %p237 = por %p235, %p236
      %p238 = scmp.ne.s32.totalorder %s226, %s227
      %p239 = scmp.eq.s32.totalorder %s30, 2
      %p240 = por %p238, %p239
      %p242 = scmp.ne.s32.totalorder %s227, %s241
      %p243 = scmp.eq.s32.totalorder %s30, 0
      %p244 = por %p242, %p243
      %s246 = sadd.s32 %s245, 1
      %p249 = scmp.eq.s32.totalorder %s24, 2
      %p250 = scmp.ne.s32.totalorder %s245, %s247
      %p251 = scmp.eq.s32.totalorder %s24, 0
      %p252 = por %p250, %p251
      %p253 = scmp.ne.s32.totalorder %s245, %s247
      %p254 = scmp.eq.s32.totalorder %s29, 2
      %p255 = por %p253, %p254
      %p256 = scmp.ne.s32.totalorder %s247, %s248
      %p257 = scmp.eq.s32.totalorder %s29, 0
      %p258 = por %p256, %p257
      %p259 = scmp.ne.s32.totalorder %s247, %s248
      %p260 = scmp.eq.s32.totalorder %s30, 2
      %p261 = por %p259, %p260
      %p263 = scmp.ne.s32.totalorder %s248, %s262
      %p264 = scmp.eq.s32.totalorder %s30, 0
      %p265 = por %p263, %p264
      %s267 = sadd.s32 %s266, 1
      %p270 = scmp.eq.s32.totalorder %s24, 2
      %p271 = scmp.ne.s32.totalorder %s266, %s268
      %p272 = scmp.eq.s32.totalorder %s24, 0
      %p273 = por %p271, %p272
      %p274 = scmp.ne.s32.totalorder %s266, %s268
      %p275 = scmp.eq.s32.totalorder %s29, 2
      %p276 = por %p274, %p275
      %p277 = scmp.ne.s32.totalorder %s268, %s269
      %p278 = scmp.eq.s32.totalorder %s29, 0
      %p279 = por %p277, %p278
      %p280 = scmp.ne.s32.totalorder %s268, %s269
      %p281 = scmp.eq.s32.totalorder %s30, 2
      %p282 = por %p280, %p281
      %p284 = scmp.ne.s32.totalorder %s269, %s283
      %p285 = scmp.eq.s32.totalorder %s30, 0
      %p286 = por %p284, %p285
      %s287 = ssub.s32 %s31, %s43
      %p288 = scmp.eq.s32.totalorder %s287, 0
      %s290 = sadd.s32 %s289, 1
      %s291 = scalar_select %p288, %s289, %s290
      %p294 = pneg %p288
      %p295 = scmp.eq.s32.totalorder %s24, 2
      %p296 = por %p294, %p295
      %p297 = scmp.ne.s32.totalorder %s289, %s292
      %p298 = scmp.eq.s32.totalorder %s24, 0
      %p299 = por %p297, %p298
      %p300 = scmp.ne.s32.totalorder %s289, %s292
      %p301 = scmp.eq.s32.totalorder %s29, 2
      %p302 = por %p300, %p301
      %p303 = scmp.ne.s32.totalorder %s292, %s293
      %p304 = scmp.eq.s32.totalorder %s29, 0
      %p305 = por %p303, %p304
      %p306 = scmp.ne.s32.totalorder %s292, %s293
      %p307 = scmp.eq.s32.totalorder %s30, 2
      %p308 = por %p306, %p307
      %p310 = scmp.ne.s32.totalorder %s293, %s309
      %p311 = scmp.eq.s32.totalorder %s30, 0
      %p312 = por %p310, %p311
      %p313 = scmp.le.s32.totalorder 1, %s24
      %p314 = scmp.lt.s32.totalorder %s24, 4
      %p315 = pnand %p313, %p314
      %p316 = pneg %p315
      // Predicated region
      $region9: #{fcnn_forward.1} parent=5 // pred_check
        _
      $region10: #{fcnn_forward.1} parent=5 // pred_check_branch
        %318 = sbr.rel (%p315) target = $region12
      $region11: #{fcnn_forward.1} parent=5 // pred_region
        %s319 = ssub.s32 %s24, 1
        // Predicated region
        $region13: #{fcnn_forward.1} parent=11 // pred_check
          %p320 = pneg %p111
        $region14: #{fcnn_forward.1} parent=11 // pred_check_branch
          %322 = sbr.rel (%p320) target = $region16
        $region15: #{fcnn_forward.1} parent=11 // pred_region
          %s324 = ssub.s32 64, 64
          %325 = vsyncadd [#allocation7], %s324
          %s327 = sshll.u32 [#allocation6], 4
          %s328 = int_to_ptr.vmem [resolvable:$true] %s327
          %330 = dma.hbm_to_vmem [thread:$0]  %s2, 64, %s328, [#allocation7]
        $region16: #{fcnn_forward.1} parent=11 // pred_fallthru
          _
        // Predicated region
        $region17: #{fcnn_forward.1} parent=11 // pred_check
          %p331 = pneg %p132
        $region18: #{fcnn_forward.1} parent=11 // pred_check_branch
          %333 = sbr.rel (%p331) target = $region20
        $region19: #{fcnn_forward.1} parent=11 // pred_region
          %s335 = ssub.s32 8192, 8192
          %336 = vsyncadd [#allocation7], %s335
          %s337 = sshll.u32 [#allocation8], 4
          %s338 = int_to_ptr.vmem [resolvable:$true] %s337
          %343 = dma.hbm_to_vmem [thread:$0]  %s3, 8192, %s338, [#allocation7], 128, 128, 8
        $region20: #{fcnn_forward.1} parent=11 // pred_fallthru
          _
        // Predicated region
        $region21: #{fcnn_forward.1} parent=11 // pred_check
          %p344 = pneg %p153
        $region22: #{fcnn_forward.1} parent=11 // pred_check_branch
          %346 = sbr.rel (%p344) target = $region24
        $region23: #{fcnn_forward.1} parent=11 // pred_region
          %s348 = ssub.s32 32, 32
          %349 = vsyncadd [#allocation10], %s348
          %s351 = sshll.u32 [#allocation9], 4
          %s352 = int_to_ptr.vmem [resolvable:$true] %s351
          %354 = dma.hbm_to_vmem [thread:$0]  %s4, 32, %s352, [#allocation10]
        $region24: #{fcnn_forward.1} parent=11 // pred_fallthru
          _
        // Predicated region
        $region25: #{fcnn_forward.1} parent=11 // pred_check
          %p355 = pneg %p174
        $region26: #{fcnn_forward.1} parent=11 // pred_check_branch
          %357 = sbr.rel (%p355) target = $region28
        $region27: #{fcnn_forward.1} parent=11 // pred_region
          %s359 = ssub.s32 2048, 2048
          %360 = vsyncadd [#allocation10], %s359
          %s361 = sshll.u32 [#allocation11], 4
          %s362 = int_to_ptr.vmem [resolvable:$true] %s361
          %367 = dma.hbm_to_vmem [thread:$0]  %s5, 2048, %s362, [#allocation10], 64, 64, 4
        $region28: #{fcnn_forward.1} parent=11 // pred_fallthru
          _
        // Predicated region
        $region29: #{fcnn_forward.1} parent=11 // pred_check
          %p368 = pneg %p195
        $region30: #{fcnn_forward.1} parent=11 // pred_check_branch
          %370 = sbr.rel (%p368) target = $region32
        $region31: #{fcnn_forward.1} parent=11 // pred_region
          %s372 = ssub.s32 16, 16
          %373 = vsyncadd [#allocation13], %s372
          %s375 = sshll.u32 [#allocation12], 4
          %s376 = int_to_ptr.vmem [resolvable:$true] %s375
          %378 = dma.hbm_to_vmem [thread:$0]  %s6, 16, %s376, [#allocation13]
        $region32: #{fcnn_forward.1} parent=11 // pred_fallthru
          _
        // Predicated region
        $region33: #{fcnn_forward.1} parent=11 // pred_check
          %p379 = pneg %p216
        $region34: #{fcnn_forward.1} parent=11 // pred_check_branch
          %381 = sbr.rel (%p379) target = $region36
        $region35: #{fcnn_forward.1} parent=11 // pred_region
          _
        $region36: #{fcnn_forward.1} parent=11 // pred_fallthru
          _
        // Predicated region
        $region37: #{fcnn_forward.1} parent=11 // pred_check
          %p382 = pneg %p237
        $region38: #{fcnn_forward.1} parent=11 // pred_check_branch
          %384 = sbr.rel (%p382) target = $region40
        $region39: #{fcnn_forward.1} parent=11 // pred_region
          %s386 = ssub.s32 16, 16
          %387 = vsyncadd [#allocation13], %s386
          %s389 = sshll.u32 [#allocation14], 4
          %s390 = int_to_ptr.vmem [resolvable:$true] %s389
          %392 = dma.hbm_to_vmem [thread:$0]  %s8, 16, %s390, [#allocation13]
        $region40: #{fcnn_forward.1} parent=11 // pred_fallthru
          _
        // Predicated region
        $region41: #{fcnn_forward.1} parent=11 // pred_check
          %p393 = pneg %p258
        $region42: #{fcnn_forward.1} parent=11 // pred_check_branch
          %395 = sbr.rel (%p393) target = $region44
        $region43: #{fcnn_forward.1} parent=11 // pred_region
          %s397 = ssub.s32 512, 512
          %398 = vsyncadd [#allocation16], %s397
          %s399 = sshll.u32 [#allocation15], 4
          %s400 = int_to_ptr.vmem [resolvable:$true] %s399
          %405 = dma.hbm_to_vmem [thread:$0]  %s9, 512, %s400, [#allocation16], 64, 64, 4
        $region44: #{fcnn_forward.1} parent=11 // pred_fallthru
          _
        // Predicated region
        $region45: #{fcnn_forward.1} parent=11 // pred_check
          %p406 = pneg %p279
        $region46: #{fcnn_forward.1} parent=11 // pred_check_branch
          %408 = sbr.rel (%p406) target = $region48
        $region47: #{fcnn_forward.1} parent=11 // pred_region
          %s410 = ssub.s32 16, 16
          %411 = vsyncadd [#allocation16], %s410
          %s413 = sshll.u32 [#allocation17], 4
          %s414 = int_to_ptr.vmem [resolvable:$true] %s413
          %416 = dma.hbm_to_vmem [thread:$0]  %s10, 16, %s414, [#allocation16]
        $region48: #{fcnn_forward.1} parent=11 // pred_fallthru
          _
      $region12: #{fcnn_forward.1} parent=5 // pred_fallthru
        _
      %p417 = scmp.lt.s32.totalorder %s24, 3
      // Predicated region
      $region49: #{fcnn_forward.1} parent=5 // pred_check
        %p418 = pneg %p417
      $region50: #{fcnn_forward.1} parent=5 // pred_check_branch
        %420 = sbr.rel (%p418) target = $region52
      $region51: #{fcnn_forward.1} parent=5 // pred_region
        // Predicated region
        $region53: #{fcnn_forward.1} parent=51 // pred_check
          %p421 = pneg %p58
        $region54: #{fcnn_forward.1} parent=51 // pred_check_branch
          %423 = sbr.rel (%p421) target = $region56
        $region55: #{fcnn_forward.1} parent=51 // pred_region
          %s424 = sand.u32 %s48, 1
          %s425 = sand.u32 %s48, 1
          %s426 = smul.addr %s425, 64
          %s427 = scalar_lea.vmem [#allocation3], %s426
          %s428 = smul.u32 2, %s31
          %s429 = smul.u32 8, %s32
          %s430 = smul.addr %s428, 24
          %s431 = sadd.s32 %s429, %s430
          %s432 = smul.addr %s431, 4
          %s433 = scalar_lea.vmem %s0, %s432
          // Predicated region
          $region57: #{fcnn_forward.1} parent=55 // pred_check
            _
          $region58: #{fcnn_forward.1} parent=55 // pred_check_branch
            %435 = sbr.rel (0) target = $region60
          $region59: #{fcnn_forward.1} parent=55 // pred_region
            // Predicated region
            $region61: #{fcnn_forward.1} parent=59 // pred_check
              _
            $region62: #{fcnn_forward.1} parent=59 // pred_check_branch
              %437 = sbr.rel (0) target = $region64
            $region63: #{fcnn_forward.1} parent=59 // pred_region
              loop: start=0, step=1, limit=1
              $region65: #{fcnn_forward.1} parent=63 // loop_pre_header
                _
              $region66: #{fcnn_forward.1} parent=63 // loop_header
                %s439 = sphi 0, %s443
                %p440 = scmp.ge.s32.totalorder %s439, 1
                %s444 = sphi %s433, %s433
                %s445 = sphi %s427, %s427
              $region67: #{fcnn_forward.1} parent=63 // loop_header_branch
                %442 = sbr.rel (%p440) target = $region71
              $region68: #{fcnn_forward.1} parent=63 // loop_body
                %v446 = vld [vmem:[%s444] sm:$0xff]
                %447 = vst [vmem:[%s445] sm:$0xff] %v446
                %v448 = vld [vmem:[%s444 + $0x8] sm:$0xff]
                %449 = vst [vmem:[%s445 + $0x8] sm:$0xff] %v448
                %v450 = vld [vmem:[%s444 + $0x10] sm:$0xff]
                %451 = vst [vmem:[%s445 + $0x10] sm:$0xff] %v450
                %v452 = vld [vmem:[%s444 + $0x18] sm:$0xff]
                %453 = vst [vmem:[%s445 + $0x18] sm:$0xff] %v452
                %v454 = vld [vmem:[%s444 + $0x60] sm:$0xff]
                %455 = vst [vmem:[%s445 + $0x20] sm:$0xff] %v454
                %v456 = vld [vmem:[%s444 + $0x68] sm:$0xff]
                %457 = vst [vmem:[%s445 + $0x28] sm:$0xff] %v456
                %v458 = vld [vmem:[%s444 + $0x70] sm:$0xff]
                %459 = vst [vmem:[%s445 + $0x30] sm:$0xff] %v458
                %v460 = vld [vmem:[%s444 + $0x78] sm:$0xff]
                %461 = vst [vmem:[%s445 + $0x38] sm:$0xff] %v460
              $region69: #{fcnn_forward.1} parent=63 // loop_footer
                %s443 = sadd.s32 1, %s439
              $region70: #{fcnn_forward.1} parent=63 // loop_footer_branch
                %438 = sbr.rel target = $region66
              $region71: #{fcnn_forward.1} parent=63 // loop_exit
                _
            $region64: #{fcnn_forward.1} parent=59 // pred_fallthru
              _
            // Predicated region
            $region72: #{fcnn_forward.1} parent=59 // pred_check
              _
            $region73: #{fcnn_forward.1} parent=59 // pred_check_branch
              %463 = sbr.rel target = $region75
            $region74: #{fcnn_forward.1} parent=59 // pred_region
              _
            $region75: #{fcnn_forward.1} parent=59 // pred_fallthru
              _
          $region60: #{fcnn_forward.1} parent=55 // pred_fallthru
            _
          %464 = vnop
        $region56: #{fcnn_forward.1} parent=51 // pred_fallthru
          _
        // Predicated region
        $region76: #{fcnn_forward.1} parent=51 // pred_check
          %p465 = pneg %p84
        $region77: #{fcnn_forward.1} parent=51 // pred_check_branch
          %467 = sbr.rel (%p465) target = $region79
        $region78: #{fcnn_forward.1} parent=51 // pred_region
          %s468 = sand.u32 %s74, 1
          %s469 = scalar_lea.sflag [#allocation5], %s468
          %s470 = sand.u32 %s74, 1
          %s471 = smul.addr %s470, 2048
          %s472 = scalar_lea.vmem [#allocation4], %s471
          %s473 = smul.u32 128, %s32
          %s475 = ssub.s32 32768, 32768
          %476 = vsyncadd %s469, %s475
          %s477 = smul.addr %s473, 4
          %s478 = smul.addr %s477, 64
          %s479 = scalar_lea.hbm %s1, %s478
          %s480 = sshll.u32 %s472, 4
          %s481 = int_to_ptr.vmem [resolvable:$true] %s480
          %486 = dma.hbm_to_vmem [thread:$0]  %s479, 32768, %s481, %s469, 256, 256, 16
        $region79: #{fcnn_forward.1} parent=51 // pred_fallthru
          _
      $region52: #{fcnn_forward.1} parent=5 // pred_fallthru
        _
      %p487 = scmp.le.s32.totalorder 1, %s24
      %p488 = scmp.lt.s32.totalorder %s24, 4
      %p489 = pnand %p487, %p488
      %p490 = pneg %p489
      // Predicated region
      $region80: #{fcnn_forward.1} parent=5 // pred_check
        _
      $region81: #{fcnn_forward.1} parent=5 // pred_check_branch
        %492 = sbr.rel (%p489) target = $region83
      $region82: #{fcnn_forward.1} parent=5 // pred_region
        %s493 = ssub.s32 %s24, 1
        %s494 = sand.u32 %s51, 1
        %s495 = sand.u32 %s51, 1
        %s496 = smul.addr %s495, 64
        %s497 = scalar_lea.vmem [#allocation3], %s496
        // Predicated region
        $region84: #{fcnn_forward.1} parent=82 // pred_check
          %p498 = pneg %p64
        $region85: #{fcnn_forward.1} parent=82 // pred_check_branch
          %500 = sbr.rel (%p498) target = $region87
        $region86: #{fcnn_forward.1} parent=82 // pred_region
          _
        $region87: #{fcnn_forward.1} parent=82 // pred_fallthru
          _
        %s501 = sand.u32 %s77, 1
        %s502 = scalar_lea.sflag [#allocation5], %s501
        %s503 = sand.u32 %s77, 1
        %s504 = smul.addr %s503, 2048
        %s505 = scalar_lea.vmem [#allocation4], %s504
        // Predicated region
        $region88: #{fcnn_forward.1} parent=82 // pred_check
          %p506 = pneg %p90
        $region89: #{fcnn_forward.1} parent=82 // pred_check_branch
          %508 = sbr.rel (%p506) target = $region91
        $region90: #{fcnn_forward.1} parent=82 // pred_region
          %509 = dma.done %s502, 32768
        $region91: #{fcnn_forward.1} parent=82 // pred_fallthru
          _
        // Predicated region
        $region92: #{fcnn_forward.1} parent=82 // pred_check
          %p510 = pneg %p111
        $region93: #{fcnn_forward.1} parent=82 // pred_check_branch
          %512 = sbr.rel (%p510) target = $region95
        $region94: #{fcnn_forward.1} parent=82 // pred_region
          %513 = dma.done [#allocation7], 64
        $region95: #{fcnn_forward.1} parent=82 // pred_fallthru
          _
        // Predicated region
        $region96: #{fcnn_forward.1} parent=82 // pred_check
          %p514 = pneg %p132
        $region97: #{fcnn_forward.1} parent=82 // pred_check_branch
          %516 = sbr.rel (%p514) target = $region99
        $region98: #{fcnn_forward.1} parent=82 // pred_region
          %517 = dma.done [#allocation7], 8192
        $region99: #{fcnn_forward.1} parent=82 // pred_fallthru
          _
        // Predicated region
        $region100: #{fcnn_forward.1} parent=82 // pred_check
          %p518 = pneg %p153
        $region101: #{fcnn_forward.1} parent=82 // pred_check_branch
          %520 = sbr.rel (%p518) target = $region103
        $region102: #{fcnn_forward.1} parent=82 // pred_region
          %521 = dma.done [#allocation10], 32
        $region103: #{fcnn_forward.1} parent=82 // pred_fallthru
          _
        // Predicated region
        $region104: #{fcnn_forward.1} parent=82 // pred_check
          %p522 = pneg %p174
        $region105: #{fcnn_forward.1} parent=82 // pred_check_branch
          %524 = sbr.rel (%p522) target = $region107
        $region106: #{fcnn_forward.1} parent=82 // pred_region
          %525 = dma.done [#allocation10], 2048
        $region107: #{fcnn_forward.1} parent=82 // pred_fallthru
          _
        // Predicated region
        $region108: #{fcnn_forward.1} parent=82 // pred_check
          %p526 = pneg %p195
        $region109: #{fcnn_forward.1} parent=82 // pred_check_branch
          %528 = sbr.rel (%p526) target = $region111
        $region110: #{fcnn_forward.1} parent=82 // pred_region
          %529 = dma.done [#allocation13], 16
        $region111: #{fcnn_forward.1} parent=82 // pred_fallthru
          _
        // Predicated region
        $region112: #{fcnn_forward.1} parent=82 // pred_check
          %p530 = pneg %p237
        $region113: #{fcnn_forward.1} parent=82 // pred_check_branch
          %532 = sbr.rel (%p530) target = $region115
        $region114: #{fcnn_forward.1} parent=82 // pred_region
          %533 = dma.done [#allocation13], 16
        $region115: #{fcnn_forward.1} parent=82 // pred_fallthru
          _
        // Predicated region
        $region116: #{fcnn_forward.1} parent=82 // pred_check
          %p534 = pneg %p258
        $region117: #{fcnn_forward.1} parent=82 // pred_check_branch
          %536 = sbr.rel (%p534) target = $region119
        $region118: #{fcnn_forward.1} parent=82 // pred_region
          %537 = dma.done [#allocation16], 512
        $region119: #{fcnn_forward.1} parent=82 // pred_fallthru
          _
        // Predicated region
        $region120: #{fcnn_forward.1} parent=82 // pred_check
          %p538 = pneg %p279
        $region121: #{fcnn_forward.1} parent=82 // pred_check_branch
          %540 = sbr.rel (%p538) target = $region123
        $region122: #{fcnn_forward.1} parent=82 // pred_region
          %541 = dma.done [#allocation16], 16
        $region123: #{fcnn_forward.1} parent=82 // pred_fallthru
          _
        %s542 = sand.u32 %s51, 1
        %s543 = sand.u32 %s51, 1
        %s544 = smul.addr %s543, 64
        %s545 = scalar_lea.vmem [#allocation3], %s544
        %p546 = pneg %p64
        %p547 = pneg %p61
        %s548 = sand.u32 %s77, 1
        %s549 = scalar_lea.sflag [#allocation5], %s548
        %s550 = sand.u32 %s77, 1
        %s551 = smul.addr %s550, 2048
        %s552 = scalar_lea.vmem [#allocation4], %s551
        %p553 = pneg %p90
        %p554 = pneg %p87
        %p555 = pneg %p111
        %p556 = pneg %p108
        %p557 = pneg %p132
        %p558 = pneg %p129
        %p559 = pneg %p153
        %p560 = pneg %p150
        %p561 = pneg %p174
        %p562 = pneg %p171
        %p563 = pneg %p195
        %p564 = pneg %p192
        %p565 = pneg %p216
        %p566 = pneg %p213
        %p567 = pneg %p237
        %p568 = pneg %p234
        %p569 = pneg %p258
        %p570 = pneg %p255
        %p571 = pneg %p279
        %p572 = pneg %p276
        %p573 = pneg %p305
        %p574 = pneg %p302
        %s575 = smul.u32 2, %s33
        %p576 = scmp.lt.s32.totalorder %s575, 1
        %s577 = scalar_select %p576, %s575, 1
        %s578 = smul.addr %s577, 8
        %s579 = scalar_lea.vmem %s11, %s578
        %s580 = smul.u32 2, %s33
        %s581 = smul.u32 8, %s34
        %s582 = smul.u32 128, %s34
        %s583 = smul.u32 2, %s33
        %p584 = scmp.lt.s32.totalorder %s583, 1
        %s585 = scalar_select %p584, %s583, 1
        %s586 = smul.addr %s585, 8
        %s587 = scalar_lea.vmem %s11, %s586
        %s588 = smul.u32 2, %s33
        %p590 = scmp.eq.s32.totalorder %s34, 0
        // Predicated region
        $region124: #{fcnn_forward.1} parent=82 // pred_check
          %p591 = pneg %p590
        $region125: #{fcnn_forward.1} parent=82 // pred_check_branch
          %593 = sbr.rel (%p591) target = $region127
        $region126: #{fcnn_forward.1} parent=82 // pred_region
          %594 = vst [vmem:[#allocation2] sm:$0xff] 0.0
          %595 = vst [vmem:[#allocation2 + $0x8] sm:$0xff] 0.0
          %596 = vst [vmem:[#allocation2 + $0x10] sm:$0xff] 0.0
          %597 = vst [vmem:[#allocation2 + $0x18] sm:$0xff] 0.0
          %598 = vst [vmem:[#allocation2 + $0x20] sm:$0xff] 0.0
          %599 = vst [vmem:[#allocation2 + $0x28] sm:$0xff] 0.0
          %600 = vst [vmem:[#allocation2 + $0x30] sm:$0xff] 0.0
          %601 = vst [vmem:[#allocation2 + $0x38] sm:$0xff] 0.0
        $region127: #{fcnn_forward.1} parent=82 // pred_fallthru
          _
        %v602 = vld [vmem:[#allocation2] sm:$0xff]
        %v603 = vld [vmem:[#allocation2 + $0x8] sm:$0xff]
        %v604 = vld [vmem:[#allocation2 + $0x10] sm:$0xff]
        %v605 = vld [vmem:[#allocation2 + $0x18] sm:$0xff]
        %v606 = vld [vmem:[#allocation2 + $0x20] sm:$0xff]
        %v607 = vld [vmem:[#allocation2 + $0x28] sm:$0xff]
        %v608 = vld [vmem:[#allocation2 + $0x30] sm:$0xff]
        %v609 = vld [vmem:[#allocation2 + $0x38] sm:$0xff]
        %v610 = vld [vmem:[%s497] sm:$0xff]
        %v611 = vld [vmem:[%s497 + $0x8] sm:$0xff]
        %v612 = vld [vmem:[%s497 + $0x10] sm:$0xff]
        %v613 = vld [vmem:[%s497 + $0x18] sm:$0xff]
        %v614 = vld [vmem:[%s497 + $0x20] sm:$0xff]
        %v615 = vld [vmem:[%s497 + $0x28] sm:$0xff]
        %v616 = vld [vmem:[%s497 + $0x30] sm:$0xff]
        %v617 = vld [vmem:[%s497 + $0x38] sm:$0xff]
        %v618 = vld [vmem:[%s505] sm:$0xff]
        %v619 = vld [vmem:[%s505 + $0x8] sm:$0xff]
        %v620 = vld [vmem:[%s505 + $0x10] sm:$0xff]
        %v621 = vld [vmem:[%s505 + $0x18] sm:$0xff]
        %v622 = vld [vmem:[%s505 + $0x20] sm:$0xff]
        %v623 = vld [vmem:[%s505 + $0x28] sm:$0xff]
        %v624 = vld [vmem:[%s505 + $0x30] sm:$0xff]
        %v625 = vld [vmem:[%s505 + $0x38] sm:$0xff]
        %v626 = vld [vmem:[%s505 + $0x40] sm:$0xff]
        %v627 = vld [vmem:[%s505 + $0x48] sm:$0xff]
        %v628 = vld [vmem:[%s505 + $0x50] sm:$0xff]
        %v629 = vld [vmem:[%s505 + $0x58] sm:$0xff]
        %v630 = vld [vmem:[%s505 + $0x60] sm:$0xff]
        %v631 = vld [vmem:[%s505 + $0x68] sm:$0xff]
        %v632 = vld [vmem:[%s505 + $0x70] sm:$0xff]
        %v633 = vld [vmem:[%s505 + $0x78] sm:$0xff]
        %v634 = vld [vmem:[%s505 + $0x80] sm:$0xff]
        %v635 = vld [vmem:[%s505 + $0x88] sm:$0xff]
        %v636 = vld [vmem:[%s505 + $0x90] sm:$0xff]
        %v637 = vld [vmem:[%s505 + $0x98] sm:$0xff]
        %v638 = vld [vmem:[%s505 + $0xa0] sm:$0xff]
        %v639 = vld [vmem:[%s505 + $0xa8] sm:$0xff]
        %v640 = vld [vmem:[%s505 + $0xb0] sm:$0xff]
        %v641 = vld [vmem:[%s505 + $0xb8] sm:$0xff]
        %v642 = vld [vmem:[%s505 + $0xc0] sm:$0xff]
        %v643 = vld [vmem:[%s505 + $0xc8] sm:$0xff]
        %v644 = vld [vmem:[%s505 + $0xd0] sm:$0xff]
        %v645 = vld [vmem:[%s505 + $0xd8] sm:$0xff]
        %v646 = vld [vmem:[%s505 + $0xe0] sm:$0xff]
        %v647 = vld [vmem:[%s505 + $0xe8] sm:$0xff]
        %v648 = vld [vmem:[%s505 + $0xf0] sm:$0xff]
        %v649 = vld [vmem:[%s505 + $0xf8] sm:$0xff]
        %v650 = vld [vmem:[%s505 + $0x100] sm:$0xff]
        %v651 = vld [vmem:[%s505 + $0x108] sm:$0xff]
        %v652 = vld [vmem:[%s505 + $0x110] sm:$0xff]
        %v653 = vld [vmem:[%s505 + $0x118] sm:$0xff]
        %v654 = vld [vmem:[%s505 + $0x120] sm:$0xff]
        %v655 = vld [vmem:[%s505 + $0x128] sm:$0xff]
        %v656 = vld [vmem:[%s505 + $0x130] sm:$0xff]
        %v657 = vld [vmem:[%s505 + $0x138] sm:$0xff]
        %v658 = vld [vmem:[%s505 + $0x140] sm:$0xff]
        %v659 = vld [vmem:[%s505 + $0x148] sm:$0xff]
        %v660 = vld [vmem:[%s505 + $0x150] sm:$0xff]
        %v661 = vld [vmem:[%s505 + $0x158] sm:$0xff]
        %v662 = vld [vmem:[%s505 + $0x160] sm:$0xff]
        %v663 = vld [vmem:[%s505 + $0x168] sm:$0xff]
        %v664 = vld [vmem:[%s505 + $0x170] sm:$0xff]
        %v665 = vld [vmem:[%s505 + $0x178] sm:$0xff]
        %v666 = vld [vmem:[%s505 + $0x180] sm:$0xff]
        %v667 = vld [vmem:[%s505 + $0x188] sm:$0xff]
        %v668 = vld [vmem:[%s505 + $0x190] sm:$0xff]
        %v669 = vld [vmem:[%s505 + $0x198] sm:$0xff]
        %v670 = vld [vmem:[%s505 + $0x1a0] sm:$0xff]
        %v671 = vld [vmem:[%s505 + $0x1a8] sm:$0xff]
        %v672 = vld [vmem:[%s505 + $0x1b0] sm:$0xff]
        %v673 = vld [vmem:[%s505 + $0x1b8] sm:$0xff]
        %v674 = vld [vmem:[%s505 + $0x1c0] sm:$0xff]
        %v675 = vld [vmem:[%s505 + $0x1c8] sm:$0xff]
        %v676 = vld [vmem:[%s505 + $0x1d0] sm:$0xff]
        %v677 = vld [vmem:[%s505 + $0x1d8] sm:$0xff]
        %v678 = vld [vmem:[%s505 + $0x1e0] sm:$0xff]
        %v679 = vld [vmem:[%s505 + $0x1e8] sm:$0xff]
        %v680 = vld [vmem:[%s505 + $0x1f0] sm:$0xff]
        %v681 = vld [vmem:[%s505 + $0x1f8] sm:$0xff]
        %v682 = vld [vmem:[%s505 + $0x200] sm:$0xff]
        %v683 = vld [vmem:[%s505 + $0x208] sm:$0xff]
        %v684 = vld [vmem:[%s505 + $0x210] sm:$0xff]
        %v685 = vld [vmem:[%s505 + $0x218] sm:$0xff]
        %v686 = vld [vmem:[%s505 + $0x220] sm:$0xff]
        %v687 = vld [vmem:[%s505 + $0x228] sm:$0xff]
        %v688 = vld [vmem:[%s505 + $0x230] sm:$0xff]
        %v689 = vld [vmem:[%s505 + $0x238] sm:$0xff]
        %v690 = vld [vmem:[%s505 + $0x240] sm:$0xff]
        %v691 = vld [vmem:[%s505 + $0x248] sm:$0xff]
        %v692 = vld [vmem:[%s505 + $0x250] sm:$0xff]
        %v693 = vld [vmem:[%s505 + $0x258] sm:$0xff]
        %v694 = vld [vmem:[%s505 + $0x260] sm:$0xff]
        %v695 = vld [vmem:[%s505 + $0x268] sm:$0xff]
        %v696 = vld [vmem:[%s505 + $0x270] sm:$0xff]
        %v697 = vld [vmem:[%s505 + $0x278] sm:$0xff]
        %v698 = vld [vmem:[%s505 + $0x280] sm:$0xff]
        %v699 = vld [vmem:[%s505 + $0x288] sm:$0xff]
        %v700 = vld [vmem:[%s505 + $0x290] sm:$0xff]
        %v701 = vld [vmem:[%s505 + $0x298] sm:$0xff]
        %v702 = vld [vmem:[%s505 + $0x2a0] sm:$0xff]
        %v703 = vld [vmem:[%s505 + $0x2a8] sm:$0xff]
        %v704 = vld [vmem:[%s505 + $0x2b0] sm:$0xff]
        %v705 = vld [vmem:[%s505 + $0x2b8] sm:$0xff]
        %v706 = vld [vmem:[%s505 + $0x2c0] sm:$0xff]
        %v707 = vld [vmem:[%s505 + $0x2c8] sm:$0xff]
        %v708 = vld [vmem:[%s505 + $0x2d0] sm:$0xff]
        %v709 = vld [vmem:[%s505 + $0x2d8] sm:$0xff]
        %v710 = vld [vmem:[%s505 + $0x2e0] sm:$0xff]
        %v711 = vld [vmem:[%s505 + $0x2e8] sm:$0xff]
        %v712 = vld [vmem:[%s505 + $0x2f0] sm:$0xff]
        %v713 = vld [vmem:[%s505 + $0x2f8] sm:$0xff]
        %v714 = vld [vmem:[%s505 + $0x300] sm:$0xff]
        %v715 = vld [vmem:[%s505 + $0x308] sm:$0xff]
        %v716 = vld [vmem:[%s505 + $0x310] sm:$0xff]
        %v717 = vld [vmem:[%s505 + $0x318] sm:$0xff]
        %v718 = vld [vmem:[%s505 + $0x320] sm:$0xff]
        %v719 = vld [vmem:[%s505 + $0x328] sm:$0xff]
        %v720 = vld [vmem:[%s505 + $0x330] sm:$0xff]
        %v721 = vld [vmem:[%s505 + $0x338] sm:$0xff]
        %v722 = vld [vmem:[%s505 + $0x340] sm:$0xff]
        %v723 = vld [vmem:[%s505 + $0x348] sm:$0xff]
        %v724 = vld [vmem:[%s505 + $0x350] sm:$0xff]
        %v725 = vld [vmem:[%s505 + $0x358] sm:$0xff]
        %v726 = vld [vmem:[%s505 + $0x360] sm:$0xff]
        %v727 = vld [vmem:[%s505 + $0x368] sm:$0xff]
        %v728 = vld [vmem:[%s505 + $0x370] sm:$0xff]
        %v729 = vld [vmem:[%s505 + $0x378] sm:$0xff]
        %v730 = vld [vmem:[%s505 + $0x380] sm:$0xff]
        %v731 = vld [vmem:[%s505 + $0x388] sm:$0xff]
        %v732 = vld [vmem:[%s505 + $0x390] sm:$0xff]
        %v733 = vld [vmem:[%s505 + $0x398] sm:$0xff]
        %v734 = vld [vmem:[%s505 + $0x3a0] sm:$0xff]
        %v735 = vld [vmem:[%s505 + $0x3a8] sm:$0xff]
        %v736 = vld [vmem:[%s505 + $0x3b0] sm:$0xff]
        %v737 = vld [vmem:[%s505 + $0x3b8] sm:$0xff]
        %v738 = vld [vmem:[%s505 + $0x3c0] sm:$0xff]
        %v739 = vld [vmem:[%s505 + $0x3c8] sm:$0xff]
        %v740 = vld [vmem:[%s505 + $0x3d0] sm:$0xff]
        %v741 = vld [vmem:[%s505 + $0x3d8] sm:$0xff]
        %v742 = vld [vmem:[%s505 + $0x3e0] sm:$0xff]
        %v743 = vld [vmem:[%s505 + $0x3e8] sm:$0xff]
        %v744 = vld [vmem:[%s505 + $0x3f0] sm:$0xff]
        %v745 = vld [vmem:[%s505 + $0x3f8] sm:$0xff]
        %v746 = vld [vmem:[%s505 + $0x400] sm:$0xff]
        %v747 = vld [vmem:[%s505 + $0x408] sm:$0xff]
        %v748 = vld [vmem:[%s505 + $0x410] sm:$0xff]
        %v749 = vld [vmem:[%s505 + $0x418] sm:$0xff]
        %v750 = vld [vmem:[%s505 + $0x420] sm:$0xff]
        %v751 = vld [vmem:[%s505 + $0x428] sm:$0xff]
        %v752 = vld [vmem:[%s505 + $0x430] sm:$0xff]
        %v753 = vld [vmem:[%s505 + $0x438] sm:$0xff]
        %v754 = vld [vmem:[%s505 + $0x440] sm:$0xff]
        %v755 = vld [vmem:[%s505 + $0x448] sm:$0xff]
        %v756 = vld [vmem:[%s505 + $0x450] sm:$0xff]
        %v757 = vld [vmem:[%s505 + $0x458] sm:$0xff]
        %v758 = vld [vmem:[%s505 + $0x460] sm:$0xff]
        %v759 = vld [vmem:[%s505 + $0x468] sm:$0xff]
        %v760 = vld [vmem:[%s505 + $0x470] sm:$0xff]
        %v761 = vld [vmem:[%s505 + $0x478] sm:$0xff]
        %v762 = vld [vmem:[%s505 + $0x480] sm:$0xff]
        %v763 = vld [vmem:[%s505 + $0x488] sm:$0xff]
        %v764 = vld [vmem:[%s505 + $0x490] sm:$0xff]
        %v765 = vld [vmem:[%s505 + $0x498] sm:$0xff]
        %v766 = vld [vmem:[%s505 + $0x4a0] sm:$0xff]
        %v767 = vld [vmem:[%s505 + $0x4a8] sm:$0xff]
        %v768 = vld [vmem:[%s505 + $0x4b0] sm:$0xff]
        %v769 = vld [vmem:[%s505 + $0x4b8] sm:$0xff]
        %v770 = vld [vmem:[%s505 + $0x4c0] sm:$0xff]
        %v771 = vld [vmem:[%s505 + $0x4c8] sm:$0xff]
        %v772 = vld [vmem:[%s505 + $0x4d0] sm:$0xff]
        %v773 = vld [vmem:[%s505 + $0x4d8] sm:$0xff]
        %v774 = vld [vmem:[%s505 + $0x4e0] sm:$0xff]
        %v775 = vld [vmem:[%s505 + $0x4e8] sm:$0xff]
        %v776 = vld [vmem:[%s505 + $0x4f0] sm:$0xff]
        %v777 = vld [vmem:[%s505 + $0x4f8] sm:$0xff]
        %v778 = vld [vmem:[%s505 + $0x500] sm:$0xff]
        %v779 = vld [vmem:[%s505 + $0x508] sm:$0xff]
        %v780 = vld [vmem:[%s505 + $0x510] sm:$0xff]
        %v781 = vld [vmem:[%s505 + $0x518] sm:$0xff]
        %v782 = vld [vmem:[%s505 + $0x520] sm:$0xff]
        %v783 = vld [vmem:[%s505 + $0x528] sm:$0xff]
        %v784 = vld [vmem:[%s505 + $0x530] sm:$0xff]
        %v785 = vld [vmem:[%s505 + $0x538] sm:$0xff]
        %v786 = vld [vmem:[%s505 + $0x540] sm:$0xff]
        %v787 = vld [vmem:[%s505 + $0x548] sm:$0xff]
        %v788 = vld [vmem:[%s505 + $0x550] sm:$0xff]
        %v789 = vld [vmem:[%s505 + $0x558] sm:$0xff]
        %v790 = vld [vmem:[%s505 + $0x560] sm:$0xff]
        %v791 = vld [vmem:[%s505 + $0x568] sm:$0xff]
        %v792 = vld [vmem:[%s505 + $0x570] sm:$0xff]
        %v793 = vld [vmem:[%s505 + $0x578] sm:$0xff]
        %v794 = vld [vmem:[%s505 + $0x580] sm:$0xff]
        %v795 = vld [vmem:[%s505 + $0x588] sm:$0xff]
        %v796 = vld [vmem:[%s505 + $0x590] sm:$0xff]
        %v797 = vld [vmem:[%s505 + $0x598] sm:$0xff]
        %v798 = vld [vmem:[%s505 + $0x5a0] sm:$0xff]
        %v799 = vld [vmem:[%s505 + $0x5a8] sm:$0xff]
        %v800 = vld [vmem:[%s505 + $0x5b0] sm:$0xff]
        %v801 = vld [vmem:[%s505 + $0x5b8] sm:$0xff]
        %v802 = vld [vmem:[%s505 + $0x5c0] sm:$0xff]
        %v803 = vld [vmem:[%s505 + $0x5c8] sm:$0xff]
        %v804 = vld [vmem:[%s505 + $0x5d0] sm:$0xff]
        %v805 = vld [vmem:[%s505 + $0x5d8] sm:$0xff]
        %v806 = vld [vmem:[%s505 + $0x5e0] sm:$0xff]
        %v807 = vld [vmem:[%s505 + $0x5e8] sm:$0xff]
        %v808 = vld [vmem:[%s505 + $0x5f0] sm:$0xff]
        %v809 = vld [vmem:[%s505 + $0x5f8] sm:$0xff]
        %v810 = vld [vmem:[%s505 + $0x600] sm:$0xff]
        %v811 = vld [vmem:[%s505 + $0x608] sm:$0xff]
        %v812 = vld [vmem:[%s505 + $0x610] sm:$0xff]
        %v813 = vld [vmem:[%s505 + $0x618] sm:$0xff]
        %v814 = vld [vmem:[%s505 + $0x620] sm:$0xff]
        %v815 = vld [vmem:[%s505 + $0x628] sm:$0xff]
        %v816 = vld [vmem:[%s505 + $0x630] sm:$0xff]
        %v817 = vld [vmem:[%s505 + $0x638] sm:$0xff]
        %v818 = vld [vmem:[%s505 + $0x640] sm:$0xff]
        %v819 = vld [vmem:[%s505 + $0x648] sm:$0xff]
        %v820 = vld [vmem:[%s505 + $0x650] sm:$0xff]
        %v821 = vld [vmem:[%s505 + $0x658] sm:$0xff]
        %v822 = vld [vmem:[%s505 + $0x660] sm:$0xff]
        %v823 = vld [vmem:[%s505 + $0x668] sm:$0xff]
        %v824 = vld [vmem:[%s505 + $0x670] sm:$0xff]
        %v825 = vld [vmem:[%s505 + $0x678] sm:$0xff]
        %v826 = vld [vmem:[%s505 + $0x680] sm:$0xff]
        %v827 = vld [vmem:[%s505 + $0x688] sm:$0xff]
        %v828 = vld [vmem:[%s505 + $0x690] sm:$0xff]
        %v829 = vld [vmem:[%s505 + $0x698] sm:$0xff]
        %v830 = vld [vmem:[%s505 + $0x6a0] sm:$0xff]
        %v831 = vld [vmem:[%s505 + $0x6a8] sm:$0xff]
        %v832 = vld [vmem:[%s505 + $0x6b0] sm:$0xff]
        %v833 = vld [vmem:[%s505 + $0x6b8] sm:$0xff]
        %v834 = vld [vmem:[%s505 + $0x6c0] sm:$0xff]
        %v835 = vld [vmem:[%s505 + $0x6c8] sm:$0xff]
        %v836 = vld [vmem:[%s505 + $0x6d0] sm:$0xff]
        %v837 = vld [vmem:[%s505 + $0x6d8] sm:$0xff]
        %v838 = vld [vmem:[%s505 + $0x6e0] sm:$0xff]
        %v839 = vld [vmem:[%s505 + $0x6e8] sm:$0xff]
        %v840 = vld [vmem:[%s505 + $0x6f0] sm:$0xff]
        %v841 = vld [vmem:[%s505 + $0x6f8] sm:$0xff]
        %v842 = vld [vmem:[%s505 + $0x700] sm:$0xff]
        %v843 = vld [vmem:[%s505 + $0x708] sm:$0xff]
        %v844 = vld [vmem:[%s505 + $0x710] sm:$0xff]
        %v845 = vld [vmem:[%s505 + $0x718] sm:$0xff]
        %v846 = vld [vmem:[%s505 + $0x720] sm:$0xff]
        %v847 = vld [vmem:[%s505 + $0x728] sm:$0xff]
        %v848 = vld [vmem:[%s505 + $0x730] sm:$0xff]
        %v849 = vld [vmem:[%s505 + $0x738] sm:$0xff]
        %v850 = vld [vmem:[%s505 + $0x740] sm:$0xff]
        %v851 = vld [vmem:[%s505 + $0x748] sm:$0xff]
        %v852 = vld [vmem:[%s505 + $0x750] sm:$0xff]
        %v853 = vld [vmem:[%s505 + $0x758] sm:$0xff]
        %v854 = vld [vmem:[%s505 + $0x760] sm:$0xff]
        %v855 = vld [vmem:[%s505 + $0x768] sm:$0xff]
        %v856 = vld [vmem:[%s505 + $0x770] sm:$0xff]
        %v857 = vld [vmem:[%s505 + $0x778] sm:$0xff]
        %v858 = vld [vmem:[%s505 + $0x780] sm:$0xff]
        %v859 = vld [vmem:[%s505 + $0x788] sm:$0xff]
        %v860 = vld [vmem:[%s505 + $0x790] sm:$0xff]
        %v861 = vld [vmem:[%s505 + $0x798] sm:$0xff]
        %v862 = vld [vmem:[%s505 + $0x7a0] sm:$0xff]
        %v863 = vld [vmem:[%s505 + $0x7a8] sm:$0xff]
        %v864 = vld [vmem:[%s505 + $0x7b0] sm:$0xff]
        %v865 = vld [vmem:[%s505 + $0x7b8] sm:$0xff]
        %v866 = vld [vmem:[%s505 + $0x7c0] sm:$0xff]
        %v867 = vld [vmem:[%s505 + $0x7c8] sm:$0xff]
        %v868 = vld [vmem:[%s505 + $0x7d0] sm:$0xff]
        %v869 = vld [vmem:[%s505 + $0x7d8] sm:$0xff]
        %v870 = vld [vmem:[%s505 + $0x7e0] sm:$0xff]
        %v871 = vld [vmem:[%s505 + $0x7e8] sm:$0xff]
        %v872 = vld [vmem:[%s505 + $0x7f0] sm:$0xff]
        %v873 = vld [vmem:[%s505 + $0x7f8] sm:$0xff]
        %v882 = vunpack.c.l.b16 %v610
        %v883 = vunpack.c.h.b16 %v610
        %v884 = vunpack.c.l.b16 %v611
        %v885 = vunpack.c.h.b16 %v611
        %v886 = vunpack.c.l.b16 %v612
        %v887 = vunpack.c.h.b16 %v612
        %v888 = vunpack.c.l.b16 %v613
        %v889 = vunpack.c.h.b16 %v613
        %v890 = vunpack.c.l.b16 %v614
        %v891 = vunpack.c.h.b16 %v614
        %v892 = vunpack.c.l.b16 %v615
        %v893 = vunpack.c.h.b16 %v615
        %v894 = vunpack.c.l.b16 %v616
        %v895 = vunpack.c.h.b16 %v616
        %v896 = vunpack.c.l.b16 %v617
        %v897 = vunpack.c.h.b16 %v617
        %v898 = vpack.c.b16 %v890, %v882
        %v899 = vpack.c.b16 %v891, %v883
        %v900 = vpack.c.b16 %v892, %v884
        %v901 = vpack.c.b16 %v893, %v885
        %v902 = vpack.c.b16 %v894, %v886
        %v903 = vpack.c.b16 %v895, %v887
        %v904 = vpack.c.b16 %v896, %v888
        %v905 = vpack.c.b16 %v897, %v889
        %v1170 = vunpack.c.l.b16 %v618
        %v1171 = vunpack.c.h.b16 %v618
        %v1172 = vunpack.c.l.b16 %v619
        %v1173 = vunpack.c.h.b16 %v619
        %v1174 = vunpack.c.l.b16 %v620
        %v1175 = vunpack.c.h.b16 %v620
        %v1176 = vunpack.c.l.b16 %v621
        %v1177 = vunpack.c.h.b16 %v621
        %v1178 = vunpack.c.l.b16 %v622
        %v1179 = vunpack.c.h.b16 %v622
        %v1180 = vunpack.c.l.b16 %v623
        %v1181 = vunpack.c.h.b16 %v623
        %v1182 = vunpack.c.l.b16 %v624
        %v1183 = vunpack.c.h.b16 %v624
        %v1184 = vunpack.c.l.b16 %v625
        %v1185 = vunpack.c.h.b16 %v625
        %v1186 = vunpack.c.l.b16 %v626
        %v1187 = vunpack.c.h.b16 %v626
        %v1188 = vunpack.c.l.b16 %v627
        %v1189 = vunpack.c.h.b16 %v627
        %v1190 = vunpack.c.l.b16 %v628
        %v1191 = vunpack.c.h.b16 %v628
        %v1192 = vunpack.c.l.b16 %v629
        %v1193 = vunpack.c.h.b16 %v629
        %v1194 = vunpack.c.l.b16 %v630
        %v1195 = vunpack.c.h.b16 %v630
        %v1196 = vunpack.c.l.b16 %v631
        %v1197 = vunpack.c.h.b16 %v631
        %v1198 = vunpack.c.l.b16 %v632
        %v1199 = vunpack.c.h.b16 %v632
        %v1200 = vunpack.c.l.b16 %v633
        %v1201 = vunpack.c.h.b16 %v633
        %v1202 = vunpack.c.l.b16 %v634
        %v1203 = vunpack.c.h.b16 %v634
        %v1204 = vunpack.c.l.b16 %v635
        %v1205 = vunpack.c.h.b16 %v635
        %v1206 = vunpack.c.l.b16 %v636
        %v1207 = vunpack.c.h.b16 %v636
        %v1208 = vunpack.c.l.b16 %v637
        %v1209 = vunpack.c.h.b16 %v637
        %v1210 = vunpack.c.l.b16 %v638
        %v1211 = vunpack.c.h.b16 %v638
        %v1212 = vunpack.c.l.b16 %v639
        %v1213 = vunpack.c.h.b16 %v639
        %v1214 = vunpack.c.l.b16 %v640
        %v1215 = vunpack.c.h.b16 %v640
        %v1216 = vunpack.c.l.b16 %v641
        %v1217 = vunpack.c.h.b16 %v641
        %v1218 = vunpack.c.l.b16 %v642
        %v1219 = vunpack.c.h.b16 %v642
        %v1220 = vunpack.c.l.b16 %v643
        %v1221 = vunpack.c.h.b16 %v643
        %v1222 = vunpack.c.l.b16 %v644
        %v1223 = vunpack.c.h.b16 %v644
        %v1224 = vunpack.c.l.b16 %v645
        %v1225 = vunpack.c.h.b16 %v645
        %v1226 = vunpack.c.l.b16 %v646
        %v1227 = vunpack.c.h.b16 %v646
        %v1228 = vunpack.c.l.b16 %v647
        %v1229 = vunpack.c.h.b16 %v647
        %v1230 = vunpack.c.l.b16 %v648
        %v1231 = vunpack.c.h.b16 %v648
        %v1232 = vunpack.c.l.b16 %v649
        %v1233 = vunpack.c.h.b16 %v649
        %v1234 = vunpack.c.l.b16 %v650
        %v1235 = vunpack.c.h.b16 %v650
        %v1236 = vunpack.c.l.b16 %v651
        %v1237 = vunpack.c.h.b16 %v651
        %v1238 = vunpack.c.l.b16 %v652
        %v1239 = vunpack.c.h.b16 %v652
        %v1240 = vunpack.c.l.b16 %v653
        %v1241 = vunpack.c.h.b16 %v653
        %v1242 = vunpack.c.l.b16 %v654
        %v1243 = vunpack.c.h.b16 %v654
        %v1244 = vunpack.c.l.b16 %v655
        %v1245 = vunpack.c.h.b16 %v655
        %v1246 = vunpack.c.l.b16 %v656
        %v1247 = vunpack.c.h.b16 %v656
        %v1248 = vunpack.c.l.b16 %v657
        %v1249 = vunpack.c.h.b16 %v657
        %v1250 = vunpack.c.l.b16 %v658
        %v1251 = vunpack.c.h.b16 %v658
        %v1252 = vunpack.c.l.b16 %v659
        %v1253 = vunpack.c.h.b16 %v659
        %v1254 = vunpack.c.l.b16 %v660
        %v1255 = vunpack.c.h.b16 %v660
        %v1256 = vunpack.c.l.b16 %v661
        %v1257 = vunpack.c.h.b16 %v661
        %v1258 = vunpack.c.l.b16 %v662
        %v1259 = vunpack.c.h.b16 %v662
        %v1260 = vunpack.c.l.b16 %v663
        %v1261 = vunpack.c.h.b16 %v663
        %v1262 = vunpack.c.l.b16 %v664
        %v1263 = vunpack.c.h.b16 %v664
        %v1264 = vunpack.c.l.b16 %v665
        %v1265 = vunpack.c.h.b16 %v665
        %v1266 = vunpack.c.l.b16 %v666
        %v1267 = vunpack.c.h.b16 %v666
        %v1268 = vunpack.c.l.b16 %v667
        %v1269 = vunpack.c.h.b16 %v667
        %v1270 = vunpack.c.l.b16 %v668
        %v1271 = vunpack.c.h.b16 %v668
        %v1272 = vunpack.c.l.b16 %v669
        %v1273 = vunpack.c.h.b16 %v669
        %v1274 = vunpack.c.l.b16 %v670
        %v1275 = vunpack.c.h.b16 %v670
        %v1276 = vunpack.c.l.b16 %v671
        %v1277 = vunpack.c.h.b16 %v671
        %v1278 = vunpack.c.l.b16 %v672
        %v1279 = vunpack.c.h.b16 %v672
        %v1280 = vunpack.c.l.b16 %v673
        %v1281 = vunpack.c.h.b16 %v673
        %v1282 = vunpack.c.l.b16 %v674
        %v1283 = vunpack.c.h.b16 %v674
        %v1284 = vunpack.c.l.b16 %v675
        %v1285 = vunpack.c.h.b16 %v675
        %v1286 = vunpack.c.l.b16 %v676
        %v1287 = vunpack.c.h.b16 %v676
        %v1288 = vunpack.c.l.b16 %v677
        %v1289 = vunpack.c.h.b16 %v677
        %v1290 = vunpack.c.l.b16 %v678
        %v1291 = vunpack.c.h.b16 %v678
        %v1292 = vunpack.c.l.b16 %v679
        %v1293 = vunpack.c.h.b16 %v679
        %v1294 = vunpack.c.l.b16 %v680
        %v1295 = vunpack.c.h.b16 %v680
        %v1296 = vunpack.c.l.b16 %v681
        %v1297 = vunpack.c.h.b16 %v681
        %v1298 = vunpack.c.l.b16 %v682
        %v1299 = vunpack.c.h.b16 %v682
        %v1300 = vunpack.c.l.b16 %v683
        %v1301 = vunpack.c.h.b16 %v683
        %v1302 = vunpack.c.l.b16 %v684
        %v1303 = vunpack.c.h.b16 %v684
        %v1304 = vunpack.c.l.b16 %v685
        %v1305 = vunpack.c.h.b16 %v685
        %v1306 = vunpack.c.l.b16 %v686
        %v1307 = vunpack.c.h.b16 %v686
        %v1308 = vunpack.c.l.b16 %v687
        %v1309 = vunpack.c.h.b16 %v687
        %v1310 = vunpack.c.l.b16 %v688
        %v1311 = vunpack.c.h.b16 %v688
        %v1312 = vunpack.c.l.b16 %v689
        %v1313 = vunpack.c.h.b16 %v689
        %v1314 = vunpack.c.l.b16 %v690
        %v1315 = vunpack.c.h.b16 %v690
        %v1316 = vunpack.c.l.b16 %v691
        %v1317 = vunpack.c.h.b16 %v691
        %v1318 = vunpack.c.l.b16 %v692
        %v1319 = vunpack.c.h.b16 %v692
        %v1320 = vunpack.c.l.b16 %v693
        %v1321 = vunpack.c.h.b16 %v693
        %v1322 = vunpack.c.l.b16 %v694
        %v1323 = vunpack.c.h.b16 %v694
        %v1324 = vunpack.c.l.b16 %v695
        %v1325 = vunpack.c.h.b16 %v695
        %v1326 = vunpack.c.l.b16 %v696
        %v1327 = vunpack.c.h.b16 %v696
        %v1328 = vunpack.c.l.b16 %v697
        %v1329 = vunpack.c.h.b16 %v697
        %v1330 = vunpack.c.l.b16 %v698
        %v1331 = vunpack.c.h.b16 %v698
        %v1332 = vunpack.c.l.b16 %v699
        %v1333 = vunpack.c.h.b16 %v699
        %v1334 = vunpack.c.l.b16 %v700
        %v1335 = vunpack.c.h.b16 %v700
        %v1336 = vunpack.c.l.b16 %v701
        %v1337 = vunpack.c.h.b16 %v701
        %v1338 = vunpack.c.l.b16 %v702
        %v1339 = vunpack.c.h.b16 %v702
        %v1340 = vunpack.c.l.b16 %v703
        %v1341 = vunpack.c.h.b16 %v703
        %v1342 = vunpack.c.l.b16 %v704
        %v1343 = vunpack.c.h.b16 %v704
        %v1344 = vunpack.c.l.b16 %v705
        %v1345 = vunpack.c.h.b16 %v705
        %v1346 = vunpack.c.l.b16 %v706
        %v1347 = vunpack.c.h.b16 %v706
        %v1348 = vunpack.c.l.b16 %v707
        %v1349 = vunpack.c.h.b16 %v707
        %v1350 = vunpack.c.l.b16 %v708
        %v1351 = vunpack.c.h.b16 %v708
        %v1352 = vunpack.c.l.b16 %v709
        %v1353 = vunpack.c.h.b16 %v709
        %v1354 = vunpack.c.l.b16 %v710
        %v1355 = vunpack.c.h.b16 %v710
        %v1356 = vunpack.c.l.b16 %v711
        %v1357 = vunpack.c.h.b16 %v711
        %v1358 = vunpack.c.l.b16 %v712
        %v1359 = vunpack.c.h.b16 %v712
        %v1360 = vunpack.c.l.b16 %v713
        %v1361 = vunpack.c.h.b16 %v713
        %v1362 = vunpack.c.l.b16 %v714
        %v1363 = vunpack.c.h.b16 %v714
        %v1364 = vunpack.c.l.b16 %v715
        %v1365 = vunpack.c.h.b16 %v715
        %v1366 = vunpack.c.l.b16 %v716
        %v1367 = vunpack.c.h.b16 %v716
        %v1368 = vunpack.c.l.b16 %v717
        %v1369 = vunpack.c.h.b16 %v717
        %v1370 = vunpack.c.l.b16 %v718
        %v1371 = vunpack.c.h.b16 %v718
        %v1372 = vunpack.c.l.b16 %v719
        %v1373 = vunpack.c.h.b16 %v719
        %v1374 = vunpack.c.l.b16 %v720
        %v1375 = vunpack.c.h.b16 %v720
        %v1376 = vunpack.c.l.b16 %v721
        %v1377 = vunpack.c.h.b16 %v721
        %v1378 = vunpack.c.l.b16 %v722
        %v1379 = vunpack.c.h.b16 %v722
        %v1380 = vunpack.c.l.b16 %v723
        %v1381 = vunpack.c.h.b16 %v723
        %v1382 = vunpack.c.l.b16 %v724
        %v1383 = vunpack.c.h.b16 %v724
        %v1384 = vunpack.c.l.b16 %v725
        %v1385 = vunpack.c.h.b16 %v725
        %v1386 = vunpack.c.l.b16 %v726
        %v1387 = vunpack.c.h.b16 %v726
        %v1388 = vunpack.c.l.b16 %v727
        %v1389 = vunpack.c.h.b16 %v727
        %v1390 = vunpack.c.l.b16 %v728
        %v1391 = vunpack.c.h.b16 %v728
        %v1392 = vunpack.c.l.b16 %v729
        %v1393 = vunpack.c.h.b16 %v729
        %v1394 = vunpack.c.l.b16 %v730
        %v1395 = vunpack.c.h.b16 %v730
        %v1396 = vunpack.c.l.b16 %v731
        %v1397 = vunpack.c.h.b16 %v731
        %v1398 = vunpack.c.l.b16 %v732
        %v1399 = vunpack.c.h.b16 %v732
        %v1400 = vunpack.c.l.b16 %v733
        %v1401 = vunpack.c.h.b16 %v733
        %v1402 = vunpack.c.l.b16 %v734
        %v1403 = vunpack.c.h.b16 %v734
        %v1404 = vunpack.c.l.b16 %v735
        %v1405 = vunpack.c.h.b16 %v735
        %v1406 = vunpack.c.l.b16 %v736
        %v1407 = vunpack.c.h.b16 %v736
        %v1408 = vunpack.c.l.b16 %v737
        %v1409 = vunpack.c.h.b16 %v737
        %v1410 = vunpack.c.l.b16 %v738
        %v1411 = vunpack.c.h.b16 %v738
        %v1412 = vunpack.c.l.b16 %v739
        %v1413 = vunpack.c.h.b16 %v739
        %v1414 = vunpack.c.l.b16 %v740
        %v1415 = vunpack.c.h.b16 %v740
        %v1416 = vunpack.c.l.b16 %v741
        %v1417 = vunpack.c.h.b16 %v741
        %v1418 = vunpack.c.l.b16 %v742
        %v1419 = vunpack.c.h.b16 %v742
        %v1420 = vunpack.c.l.b16 %v743
        %v1421 = vunpack.c.h.b16 %v743
        %v1422 = vunpack.c.l.b16 %v744
        %v1423 = vunpack.c.h.b16 %v744
        %v1424 = vunpack.c.l.b16 %v745
        %v1425 = vunpack.c.h.b16 %v745
        %v1426 = vunpack.c.l.b16 %v746
        %v1427 = vunpack.c.h.b16 %v746
        %v1428 = vunpack.c.l.b16 %v747
        %v1429 = vunpack.c.h.b16 %v747
        %v1430 = vunpack.c.l.b16 %v748
        %v1431 = vunpack.c.h.b16 %v748
        %v1432 = vunpack.c.l.b16 %v749
        %v1433 = vunpack.c.h.b16 %v749
        %v1434 = vunpack.c.l.b16 %v750
        %v1435 = vunpack.c.h.b16 %v750
        %v1436 = vunpack.c.l.b16 %v751
        %v1437 = vunpack.c.h.b16 %v751
        %v1438 = vunpack.c.l.b16 %v752
        %v1439 = vunpack.c.h.b16 %v752
        %v1440 = vunpack.c.l.b16 %v753
        %v1441 = vunpack.c.h.b16 %v753
        %v1442 = vunpack.c.l.b16 %v754
        %v1443 = vunpack.c.h.b16 %v754
        %v1444 = vunpack.c.l.b16 %v755
        %v1445 = vunpack.c.h.b16 %v755
        %v1446 = vunpack.c.l.b16 %v756
        %v1447 = vunpack.c.h.b16 %v756
        %v1448 = vunpack.c.l.b16 %v757
        %v1449 = vunpack.c.h.b16 %v757
        %v1450 = vunpack.c.l.b16 %v758
        %v1451 = vunpack.c.h.b16 %v758
        %v1452 = vunpack.c.l.b16 %v759
        %v1453 = vunpack.c.h.b16 %v759
        %v1454 = vunpack.c.l.b16 %v760
        %v1455 = vunpack.c.h.b16 %v760
        %v1456 = vunpack.c.l.b16 %v761
        %v1457 = vunpack.c.h.b16 %v761
        %v1458 = vunpack.c.l.b16 %v762
        %v1459 = vunpack.c.h.b16 %v762
        %v1460 = vunpack.c.l.b16 %v763
        %v1461 = vunpack.c.h.b16 %v763
        %v1462 = vunpack.c.l.b16 %v764
        %v1463 = vunpack.c.h.b16 %v764
        %v1464 = vunpack.c.l.b16 %v765
        %v1465 = vunpack.c.h.b16 %v765
        %v1466 = vunpack.c.l.b16 %v766
        %v1467 = vunpack.c.h.b16 %v766
        %v1468 = vunpack.c.l.b16 %v767
        %v1469 = vunpack.c.h.b16 %v767
        %v1470 = vunpack.c.l.b16 %v768
        %v1471 = vunpack.c.h.b16 %v768
        %v1472 = vunpack.c.l.b16 %v769
        %v1473 = vunpack.c.h.b16 %v769
        %v1474 = vunpack.c.l.b16 %v770
        %v1475 = vunpack.c.h.b16 %v770
        %v1476 = vunpack.c.l.b16 %v771
        %v1477 = vunpack.c.h.b16 %v771
        %v1478 = vunpack.c.l.b16 %v772
        %v1479 = vunpack.c.h.b16 %v772
        %v1480 = vunpack.c.l.b16 %v773
        %v1481 = vunpack.c.h.b16 %v773
        %v1482 = vunpack.c.l.b16 %v774
        %v1483 = vunpack.c.h.b16 %v774
        %v1484 = vunpack.c.l.b16 %v775
        %v1485 = vunpack.c.h.b16 %v775
        %v1486 = vunpack.c.l.b16 %v776
        %v1487 = vunpack.c.h.b16 %v776
        %v1488 = vunpack.c.l.b16 %v777
        %v1489 = vunpack.c.h.b16 %v777
        %v1490 = vunpack.c.l.b16 %v778
        %v1491 = vunpack.c.h.b16 %v778
        %v1492 = vunpack.c.l.b16 %v779
        %v1493 = vunpack.c.h.b16 %v779
        %v1494 = vunpack.c.l.b16 %v780
        %v1495 = vunpack.c.h.b16 %v780
        %v1496 = vunpack.c.l.b16 %v781
        %v1497 = vunpack.c.h.b16 %v781
        %v1498 = vunpack.c.l.b16 %v782
        %v1499 = vunpack.c.h.b16 %v782
        %v1500 = vunpack.c.l.b16 %v783
        %v1501 = vunpack.c.h.b16 %v783
        %v1502 = vunpack.c.l.b16 %v784
        %v1503 = vunpack.c.h.b16 %v784
        %v1504 = vunpack.c.l.b16 %v785
        %v1505 = vunpack.c.h.b16 %v785
        %v1506 = vunpack.c.l.b16 %v786
        %v1507 = vunpack.c.h.b16 %v786
        %v1508 = vunpack.c.l.b16 %v787
        %v1509 = vunpack.c.h.b16 %v787
        %v1510 = vunpack.c.l.b16 %v788
        %v1511 = vunpack.c.h.b16 %v788
        %v1512 = vunpack.c.l.b16 %v789
        %v1513 = vunpack.c.h.b16 %v789
        %v1514 = vunpack.c.l.b16 %v790
        %v1515 = vunpack.c.h.b16 %v790
        %v1516 = vunpack.c.l.b16 %v791
        %v1517 = vunpack.c.h.b16 %v791
        %v1518 = vunpack.c.l.b16 %v792
        %v1519 = vunpack.c.h.b16 %v792
        %v1520 = vunpack.c.l.b16 %v793
        %v1521 = vunpack.c.h.b16 %v793
        %v1522 = vunpack.c.l.b16 %v794
        %v1523 = vunpack.c.h.b16 %v794
        %v1524 = vunpack.c.l.b16 %v795
        %v1525 = vunpack.c.h.b16 %v795
        %v1526 = vunpack.c.l.b16 %v796
        %v1527 = vunpack.c.h.b16 %v796
        %v1528 = vunpack.c.l.b16 %v797
        %v1529 = vunpack.c.h.b16 %v797
        %v1530 = vunpack.c.l.b16 %v798
        %v1531 = vunpack.c.h.b16 %v798
        %v1532 = vunpack.c.l.b16 %v799
        %v1533 = vunpack.c.h.b16 %v799
        %v1534 = vunpack.c.l.b16 %v800
        %v1535 = vunpack.c.h.b16 %v800
        %v1536 = vunpack.c.l.b16 %v801
        %v1537 = vunpack.c.h.b16 %v801
        %v1538 = vunpack.c.l.b16 %v802
        %v1539 = vunpack.c.h.b16 %v802
        %v1540 = vunpack.c.l.b16 %v803
        %v1541 = vunpack.c.h.b16 %v803
        %v1542 = vunpack.c.l.b16 %v804
        %v1543 = vunpack.c.h.b16 %v804
        %v1544 = vunpack.c.l.b16 %v805
        %v1545 = vunpack.c.h.b16 %v805
        %v1546 = vunpack.c.l.b16 %v806
        %v1547 = vunpack.c.h.b16 %v806
        %v1548 = vunpack.c.l.b16 %v807
        %v1549 = vunpack.c.h.b16 %v807
        %v1550 = vunpack.c.l.b16 %v808
        %v1551 = vunpack.c.h.b16 %v808
        %v1552 = vunpack.c.l.b16 %v809
        %v1553 = vunpack.c.h.b16 %v809
        %v1554 = vunpack.c.l.b16 %v810
        %v1555 = vunpack.c.h.b16 %v810
        %v1556 = vunpack.c.l.b16 %v811
        %v1557 = vunpack.c.h.b16 %v811
        %v1558 = vunpack.c.l.b16 %v812
        %v1559 = vunpack.c.h.b16 %v812
        %v1560 = vunpack.c.l.b16 %v813
        %v1561 = vunpack.c.h.b16 %v813
        %v1562 = vunpack.c.l.b16 %v814
        %v1563 = vunpack.c.h.b16 %v814
        %v1564 = vunpack.c.l.b16 %v815
        %v1565 = vunpack.c.h.b16 %v815
        %v1566 = vunpack.c.l.b16 %v816
        %v1567 = vunpack.c.h.b16 %v816
        %v1568 = vunpack.c.l.b16 %v817
        %v1569 = vunpack.c.h.b16 %v817
        %v1570 = vunpack.c.l.b16 %v818
        %v1571 = vunpack.c.h.b16 %v818
        %v1572 = vunpack.c.l.b16 %v819
        %v1573 = vunpack.c.h.b16 %v819
        %v1574 = vunpack.c.l.b16 %v820
        %v1575 = vunpack.c.h.b16 %v820
        %v1576 = vunpack.c.l.b16 %v821
        %v1577 = vunpack.c.h.b16 %v821
        %v1578 = vunpack.c.l.b16 %v822
        %v1579 = vunpack.c.h.b16 %v822
        %v1580 = vunpack.c.l.b16 %v823
        %v1581 = vunpack.c.h.b16 %v823
        %v1582 = vunpack.c.l.b16 %v824
        %v1583 = vunpack.c.h.b16 %v824
        %v1584 = vunpack.c.l.b16 %v825
        %v1585 = vunpack.c.h.b16 %v825
        %v1586 = vunpack.c.l.b16 %v826
        %v1587 = vunpack.c.h.b16 %v826
        %v1588 = vunpack.c.l.b16 %v827
        %v1589 = vunpack.c.h.b16 %v827
        %v1590 = vunpack.c.l.b16 %v828
        %v1591 = vunpack.c.h.b16 %v828
        %v1592 = vunpack.c.l.b16 %v829
        %v1593 = vunpack.c.h.b16 %v829
        %v1594 = vunpack.c.l.b16 %v830
        %v1595 = vunpack.c.h.b16 %v830
        %v1596 = vunpack.c.l.b16 %v831
        %v1597 = vunpack.c.h.b16 %v831
        %v1598 = vunpack.c.l.b16 %v832
        %v1599 = vunpack.c.h.b16 %v832
        %v1600 = vunpack.c.l.b16 %v833
        %v1601 = vunpack.c.h.b16 %v833
        %v1602 = vunpack.c.l.b16 %v834
        %v1603 = vunpack.c.h.b16 %v834
        %v1604 = vunpack.c.l.b16 %v835
        %v1605 = vunpack.c.h.b16 %v835
        %v1606 = vunpack.c.l.b16 %v836
        %v1607 = vunpack.c.h.b16 %v836
        %v1608 = vunpack.c.l.b16 %v837
        %v1609 = vunpack.c.h.b16 %v837
        %v1610 = vunpack.c.l.b16 %v838
        %v1611 = vunpack.c.h.b16 %v838
        %v1612 = vunpack.c.l.b16 %v839
        %v1613 = vunpack.c.h.b16 %v839
        %v1614 = vunpack.c.l.b16 %v840
        %v1615 = vunpack.c.h.b16 %v840
        %v1616 = vunpack.c.l.b16 %v841
        %v1617 = vunpack.c.h.b16 %v841
        %v1618 = vunpack.c.l.b16 %v842
        %v1619 = vunpack.c.h.b16 %v842
        %v1620 = vunpack.c.l.b16 %v843
        %v1621 = vunpack.c.h.b16 %v843
        %v1622 = vunpack.c.l.b16 %v844
        %v1623 = vunpack.c.h.b16 %v844
        %v1624 = vunpack.c.l.b16 %v845
        %v1625 = vunpack.c.h.b16 %v845
        %v1626 = vunpack.c.l.b16 %v846
        %v1627 = vunpack.c.h.b16 %v846
        %v1628 = vunpack.c.l.b16 %v847
        %v1629 = vunpack.c.h.b16 %v847
        %v1630 = vunpack.c.l.b16 %v848
        %v1631 = vunpack.c.h.b16 %v848
        %v1632 = vunpack.c.l.b16 %v849
        %v1633 = vunpack.c.h.b16 %v849
        %v1634 = vunpack.c.l.b16 %v850
        %v1635 = vunpack.c.h.b16 %v850
        %v1636 = vunpack.c.l.b16 %v851
        %v1637 = vunpack.c.h.b16 %v851
        %v1638 = vunpack.c.l.b16 %v852
        %v1639 = vunpack.c.h.b16 %v852
        %v1640 = vunpack.c.l.b16 %v853
        %v1641 = vunpack.c.h.b16 %v853
        %v1642 = vunpack.c.l.b16 %v854
        %v1643 = vunpack.c.h.b16 %v854
        %v1644 = vunpack.c.l.b16 %v855
        %v1645 = vunpack.c.h.b16 %v855
        %v1646 = vunpack.c.l.b16 %v856
        %v1647 = vunpack.c.h.b16 %v856
        %v1648 = vunpack.c.l.b16 %v857
        %v1649 = vunpack.c.h.b16 %v857
        %v1650 = vunpack.c.l.b16 %v858
        %v1651 = vunpack.c.h.b16 %v858
        %v1652 = vunpack.c.l.b16 %v859
        %v1653 = vunpack.c.h.b16 %v859
        %v1654 = vunpack.c.l.b16 %v860
        %v1655 = vunpack.c.h.b16 %v860
        %v1656 = vunpack.c.l.b16 %v861
        %v1657 = vunpack.c.h.b16 %v861
        %v1658 = vunpack.c.l.b16 %v862
        %v1659 = vunpack.c.h.b16 %v862
        %v1660 = vunpack.c.l.b16 %v863
        %v1661 = vunpack.c.h.b16 %v863
        %v1662 = vunpack.c.l.b16 %v864
        %v1663 = vunpack.c.h.b16 %v864
        %v1664 = vunpack.c.l.b16 %v865
        %v1665 = vunpack.c.h.b16 %v865
        %v1666 = vunpack.c.l.b16 %v866
        %v1667 = vunpack.c.h.b16 %v866
        %v1668 = vunpack.c.l.b16 %v867
        %v1669 = vunpack.c.h.b16 %v867
        %v1670 = vunpack.c.l.b16 %v868
        %v1671 = vunpack.c.h.b16 %v868
        %v1672 = vunpack.c.l.b16 %v869
        %v1673 = vunpack.c.h.b16 %v869
        %v1674 = vunpack.c.l.b16 %v870
        %v1675 = vunpack.c.h.b16 %v870
        %v1676 = vunpack.c.l.b16 %v871
        %v1677 = vunpack.c.h.b16 %v871
        %v1678 = vunpack.c.l.b16 %v872
        %v1679 = vunpack.c.h.b16 %v872
        %v1680 = vunpack.c.l.b16 %v873
        %v1681 = vunpack.c.h.b16 %v873
        %v1682 = vpack.c.b16 %v1174, %v1170
        %v1683 = vpack.c.b16 %v1175, %v1171
        %v1684 = vpack.c.b16 %v1176, %v1172
        %v1685 = vpack.c.b16 %v1177, %v1173
        %v1686 = vpack.c.b16 %v1182, %v1178
        %v1687 = vpack.c.b16 %v1183, %v1179
        %v1688 = vpack.c.b16 %v1184, %v1180
        %v1689 = vpack.c.b16 %v1185, %v1181
        %v1690 = vpack.c.b16 %v1190, %v1186
        %v1691 = vpack.c.b16 %v1191, %v1187
        %v1692 = vpack.c.b16 %v1192, %v1188
        %v1693 = vpack.c.b16 %v1193, %v1189
        %v1694 = vpack.c.b16 %v1198, %v1194
        %v1695 = vpack.c.b16 %v1199, %v1195
        %v1696 = vpack.c.b16 %v1200, %v1196
        %v1697 = vpack.c.b16 %v1201, %v1197
        %v1698 = vpack.c.b16 %v1206, %v1202
        %v1699 = vpack.c.b16 %v1207, %v1203
        %v1700 = vpack.c.b16 %v1208, %v1204
        %v1701 = vpack.c.b16 %v1209, %v1205
        %v1702 = vpack.c.b16 %v1214, %v1210
        %v1703 = vpack.c.b16 %v1215, %v1211
        %v1704 = vpack.c.b16 %v1216, %v1212
        %v1705 = vpack.c.b16 %v1217, %v1213
        %v1706 = vpack.c.b16 %v1222, %v1218
        %v1707 = vpack.c.b16 %v1223, %v1219
        %v1708 = vpack.c.b16 %v1224, %v1220
        %v1709 = vpack.c.b16 %v1225, %v1221
        %v1710 = vpack.c.b16 %v1230, %v1226
        %v1711 = vpack.c.b16 %v1231, %v1227
        %v1712 = vpack.c.b16 %v1232, %v1228
        %v1713 = vpack.c.b16 %v1233, %v1229
        %v1714 = vpack.c.b16 %v1238, %v1234
        %v1715 = vpack.c.b16 %v1239, %v1235
        %v1716 = vpack.c.b16 %v1240, %v1236
        %v1717 = vpack.c.b16 %v1241, %v1237
        %v1718 = vpack.c.b16 %v1246, %v1242
        %v1719 = vpack.c.b16 %v1247, %v1243
        %v1720 = vpack.c.b16 %v1248, %v1244
        %v1721 = vpack.c.b16 %v1249, %v1245
        %v1722 = vpack.c.b16 %v1254, %v1250
        %v1723 = vpack.c.b16 %v1255, %v1251
        %v1724 = vpack.c.b16 %v1256, %v1252
        %v1725 = vpack.c.b16 %v1257, %v1253
        %v1726 = vpack.c.b16 %v1262, %v1258
        %v1727 = vpack.c.b16 %v1263, %v1259
        %v1728 = vpack.c.b16 %v1264, %v1260
        %v1729 = vpack.c.b16 %v1265, %v1261
        %v1730 = vpack.c.b16 %v1270, %v1266
        %v1731 = vpack.c.b16 %v1271, %v1267
        %v1732 = vpack.c.b16 %v1272, %v1268
        %v1733 = vpack.c.b16 %v1273, %v1269
        %v1734 = vpack.c.b16 %v1278, %v1274
        %v1735 = vpack.c.b16 %v1279, %v1275
        %v1736 = vpack.c.b16 %v1280, %v1276
        %v1737 = vpack.c.b16 %v1281, %v1277
        %v1738 = vpack.c.b16 %v1286, %v1282
        %v1739 = vpack.c.b16 %v1287, %v1283
        %v1740 = vpack.c.b16 %v1288, %v1284
        %v1741 = vpack.c.b16 %v1289, %v1285
        %v1742 = vpack.c.b16 %v1294, %v1290
        %v1743 = vpack.c.b16 %v1295, %v1291
        %v1744 = vpack.c.b16 %v1296, %v1292
        %v1745 = vpack.c.b16 %v1297, %v1293
        %v1746 = vpack.c.b16 %v1302, %v1298
        %v1747 = vpack.c.b16 %v1303, %v1299
        %v1748 = vpack.c.b16 %v1304, %v1300
        %v1749 = vpack.c.b16 %v1305, %v1301
        %v1750 = vpack.c.b16 %v1310, %v1306
        %v1751 = vpack.c.b16 %v1311, %v1307
        %v1752 = vpack.c.b16 %v1312, %v1308
        %v1753 = vpack.c.b16 %v1313, %v1309
        %v1754 = vpack.c.b16 %v1318, %v1314
        %v1755 = vpack.c.b16 %v1319, %v1315
        %v1756 = vpack.c.b16 %v1320, %v1316
        %v1757 = vpack.c.b16 %v1321, %v1317
        %v1758 = vpack.c.b16 %v1326, %v1322
        %v1759 = vpack.c.b16 %v1327, %v1323
        %v1760 = vpack.c.b16 %v1328, %v1324
        %v1761 = vpack.c.b16 %v1329, %v1325
        %v1762 = vpack.c.b16 %v1334, %v1330
        %v1763 = vpack.c.b16 %v1335, %v1331
        %v1764 = vpack.c.b16 %v1336, %v1332
        %v1765 = vpack.c.b16 %v1337, %v1333
        %v1766 = vpack.c.b16 %v1342, %v1338
        %v1767 = vpack.c.b16 %v1343, %v1339
        %v1768 = vpack.c.b16 %v1344, %v1340
        %v1769 = vpack.c.b16 %v1345, %v1341
        %v1770 = vpack.c.b16 %v1350, %v1346
        %v1771 = vpack.c.b16 %v1351, %v1347
        %v1772 = vpack.c.b16 %v1352, %v1348
        %v1773 = vpack.c.b16 %v1353, %v1349
        %v1774 = vpack.c.b16 %v1358, %v1354
        %v1775 = vpack.c.b16 %v1359, %v1355
        %v1776 = vpack.c.b16 %v1360, %v1356
        %v1777 = vpack.c.b16 %v1361, %v1357
        %v1778 = vpack.c.b16 %v1366, %v1362
        %v1779 = vpack.c.b16 %v1367, %v1363
        %v1780 = vpack.c.b16 %v1368, %v1364
        %v1781 = vpack.c.b16 %v1369, %v1365
        %v1782 = vpack.c.b16 %v1374, %v1370
        %v1783 = vpack.c.b16 %v1375, %v1371
        %v1784 = vpack.c.b16 %v1376, %v1372
        %v1785 = vpack.c.b16 %v1377, %v1373
        %v1786 = vpack.c.b16 %v1382, %v1378
        %v1787 = vpack.c.b16 %v1383, %v1379
        %v1788 = vpack.c.b16 %v1384, %v1380
        %v1789 = vpack.c.b16 %v1385, %v1381
        %v1790 = vpack.c.b16 %v1390, %v1386
        %v1791 = vpack.c.b16 %v1391, %v1387
        %v1792 = vpack.c.b16 %v1392, %v1388
        %v1793 = vpack.c.b16 %v1393, %v1389
        %v1794 = vpack.c.b16 %v1398, %v1394
        %v1795 = vpack.c.b16 %v1399, %v1395
        %v1796 = vpack.c.b16 %v1400, %v1396
        %v1797 = vpack.c.b16 %v1401, %v1397
        %v1798 = vpack.c.b16 %v1406, %v1402
        %v1799 = vpack.c.b16 %v1407, %v1403
        %v1800 = vpack.c.b16 %v1408, %v1404
        %v1801 = vpack.c.b16 %v1409, %v1405
        %v1802 = vpack.c.b16 %v1414, %v1410
        %v1803 = vpack.c.b16 %v1415, %v1411
        %v1804 = vpack.c.b16 %v1416, %v1412
        %v1805 = vpack.c.b16 %v1417, %v1413
        %v1806 = vpack.c.b16 %v1422, %v1418
        %v1807 = vpack.c.b16 %v1423, %v1419
        %v1808 = vpack.c.b16 %v1424, %v1420
        %v1809 = vpack.c.b16 %v1425, %v1421
        %v1810 = vpack.c.b16 %v1430, %v1426
        %v1811 = vpack.c.b16 %v1431, %v1427
        %v1812 = vpack.c.b16 %v1432, %v1428
        %v1813 = vpack.c.b16 %v1433, %v1429
        %v1814 = vpack.c.b16 %v1438, %v1434
        %v1815 = vpack.c.b16 %v1439, %v1435
        %v1816 = vpack.c.b16 %v1440, %v1436
        %v1817 = vpack.c.b16 %v1441, %v1437
        %v1818 = vpack.c.b16 %v1446, %v1442
        %v1819 = vpack.c.b16 %v1447, %v1443
        %v1820 = vpack.c.b16 %v1448, %v1444
        %v1821 = vpack.c.b16 %v1449, %v1445
        %v1822 = vpack.c.b16 %v1454, %v1450
        %v1823 = vpack.c.b16 %v1455, %v1451
        %v1824 = vpack.c.b16 %v1456, %v1452
        %v1825 = vpack.c.b16 %v1457, %v1453
        %v1826 = vpack.c.b16 %v1462, %v1458
        %v1827 = vpack.c.b16 %v1463, %v1459
        %v1828 = vpack.c.b16 %v1464, %v1460
        %v1829 = vpack.c.b16 %v1465, %v1461
        %v1830 = vpack.c.b16 %v1470, %v1466
        %v1831 = vpack.c.b16 %v1471, %v1467
        %v1832 = vpack.c.b16 %v1472, %v1468
        %v1833 = vpack.c.b16 %v1473, %v1469
        %v1834 = vpack.c.b16 %v1478, %v1474
        %v1835 = vpack.c.b16 %v1479, %v1475
        %v1836 = vpack.c.b16 %v1480, %v1476
        %v1837 = vpack.c.b16 %v1481, %v1477
        %v1838 = vpack.c.b16 %v1486, %v1482
        %v1839 = vpack.c.b16 %v1487, %v1483
        %v1840 = vpack.c.b16 %v1488, %v1484
        %v1841 = vpack.c.b16 %v1489, %v1485
        %v1842 = vpack.c.b16 %v1494, %v1490
        %v1843 = vpack.c.b16 %v1495, %v1491
        %v1844 = vpack.c.b16 %v1496, %v1492
        %v1845 = vpack.c.b16 %v1497, %v1493
        %v1846 = vpack.c.b16 %v1502, %v1498
        %v1847 = vpack.c.b16 %v1503, %v1499
        %v1848 = vpack.c.b16 %v1504, %v1500
        %v1849 = vpack.c.b16 %v1505, %v1501
        %v1850 = vpack.c.b16 %v1510, %v1506
        %v1851 = vpack.c.b16 %v1511, %v1507
        %v1852 = vpack.c.b16 %v1512, %v1508
        %v1853 = vpack.c.b16 %v1513, %v1509
        %v1854 = vpack.c.b16 %v1518, %v1514
        %v1855 = vpack.c.b16 %v1519, %v1515
        %v1856 = vpack.c.b16 %v1520, %v1516
        %v1857 = vpack.c.b16 %v1521, %v1517
        %v1858 = vpack.c.b16 %v1526, %v1522
        %v1859 = vpack.c.b16 %v1527, %v1523
        %v1860 = vpack.c.b16 %v1528, %v1524
        %v1861 = vpack.c.b16 %v1529, %v1525
        %v1862 = vpack.c.b16 %v1534, %v1530
        %v1863 = vpack.c.b16 %v1535, %v1531
        %v1864 = vpack.c.b16 %v1536, %v1532
        %v1865 = vpack.c.b16 %v1537, %v1533
        %v1866 = vpack.c.b16 %v1542, %v1538
        %v1867 = vpack.c.b16 %v1543, %v1539
        %v1868 = vpack.c.b16 %v1544, %v1540
        %v1869 = vpack.c.b16 %v1545, %v1541
        %v1870 = vpack.c.b16 %v1550, %v1546
        %v1871 = vpack.c.b16 %v1551, %v1547
        %v1872 = vpack.c.b16 %v1552, %v1548
        %v1873 = vpack.c.b16 %v1553, %v1549
        %v1874 = vpack.c.b16 %v1558, %v1554
        %v1875 = vpack.c.b16 %v1559, %v1555
        %v1876 = vpack.c.b16 %v1560, %v1556
        %v1877 = vpack.c.b16 %v1561, %v1557
        %v1878 = vpack.c.b16 %v1566, %v1562
        %v1879 = vpack.c.b16 %v1567, %v1563
        %v1880 = vpack.c.b16 %v1568, %v1564
        %v1881 = vpack.c.b16 %v1569, %v1565
        %v1882 = vpack.c.b16 %v1574, %v1570
        %v1883 = vpack.c.b16 %v1575, %v1571
        %v1884 = vpack.c.b16 %v1576, %v1572
        %v1885 = vpack.c.b16 %v1577, %v1573
        %v1886 = vpack.c.b16 %v1582, %v1578
        %v1887 = vpack.c.b16 %v1583, %v1579
        %v1888 = vpack.c.b16 %v1584, %v1580
        %v1889 = vpack.c.b16 %v1585, %v1581
        %v1890 = vpack.c.b16 %v1590, %v1586
        %v1891 = vpack.c.b16 %v1591, %v1587
        %v1892 = vpack.c.b16 %v1592, %v1588
        %v1893 = vpack.c.b16 %v1593, %v1589
        %v1894 = vpack.c.b16 %v1598, %v1594
        %v1895 = vpack.c.b16 %v1599, %v1595
        %v1896 = vpack.c.b16 %v1600, %v1596
        %v1897 = vpack.c.b16 %v1601, %v1597
        %v1898 = vpack.c.b16 %v1606, %v1602
        %v1899 = vpack.c.b16 %v1607, %v1603
        %v1900 = vpack.c.b16 %v1608, %v1604
        %v1901 = vpack.c.b16 %v1609, %v1605
        %v1902 = vpack.c.b16 %v1614, %v1610
        %v1903 = vpack.c.b16 %v1615, %v1611
        %v1904 = vpack.c.b16 %v1616, %v1612
        %v1905 = vpack.c.b16 %v1617, %v1613
        %v1906 = vpack.c.b16 %v1622, %v1618
        %v1907 = vpack.c.b16 %v1623, %v1619
        %v1908 = vpack.c.b16 %v1624, %v1620
        %v1909 = vpack.c.b16 %v1625, %v1621
        %v1910 = vpack.c.b16 %v1630, %v1626
        %v1911 = vpack.c.b16 %v1631, %v1627
        %v1912 = vpack.c.b16 %v1632, %v1628
        %v1913 = vpack.c.b16 %v1633, %v1629
        %v1914 = vpack.c.b16 %v1638, %v1634
        %v1915 = vpack.c.b16 %v1639, %v1635
        %v1916 = vpack.c.b16 %v1640, %v1636
        %v1917 = vpack.c.b16 %v1641, %v1637
        %v1918 = vpack.c.b16 %v1646, %v1642
        %v1919 = vpack.c.b16 %v1647, %v1643
        %v1920 = vpack.c.b16 %v1648, %v1644
        %v1921 = vpack.c.b16 %v1649, %v1645
        %v1922 = vpack.c.b16 %v1654, %v1650
        %v1923 = vpack.c.b16 %v1655, %v1651
        %v1924 = vpack.c.b16 %v1656, %v1652
        %v1925 = vpack.c.b16 %v1657, %v1653
        %v1926 = vpack.c.b16 %v1662, %v1658
        %v1927 = vpack.c.b16 %v1663, %v1659
        %v1928 = vpack.c.b16 %v1664, %v1660
        %v1929 = vpack.c.b16 %v1665, %v1661
        %v1930 = vpack.c.b16 %v1670, %v1666
        %v1931 = vpack.c.b16 %v1671, %v1667
        %v1932 = vpack.c.b16 %v1672, %v1668
        %v1933 = vpack.c.b16 %v1673, %v1669
        %v1934 = vpack.c.b16 %v1678, %v1674
        %v1935 = vpack.c.b16 %v1679, %v1675
        %v1936 = vpack.c.b16 %v1680, %v1676
        %v1937 = vpack.c.b16 %v1681, %v1677
        %2194 = vmatprep.subr.bf16.mxu0 %v1683
        %2195 = vmatpush1.bf16.msra.mxu0 %v1682
        %2196 = vmatprep.subr.bf16.mxu0 %v1687
        %2197 = vmatpush1.bf16.msra.mxu0 %v1686
        %2198 = vmatprep.subr.bf16.mxu0 %v1691
        %2199 = vmatpush1.bf16.msra.mxu0 %v1690
        %2200 = vmatprep.subr.bf16.mxu0 %v1695
        %2201 = vmatpush1.bf16.msra.mxu0 %v1694
        %2202 = vmatprep.subr.bf16.mxu0 %v1699
        %2203 = vmatpush1.bf16.msra.mxu0 %v1698
        %2204 = vmatprep.subr.bf16.mxu0 %v1703
        %2205 = vmatpush1.bf16.msra.mxu0 %v1702
        %2206 = vmatprep.subr.bf16.mxu0 %v1707
        %2207 = vmatpush1.bf16.msra.mxu0 %v1706
        %2208 = vmatprep.subr.bf16.mxu0 %v1711
        %2209 = vmatpush1.bf16.msra.mxu0 %v1710
        %2210 = vmatprep.subr.bf16.mxu0 %v1715
        %2211 = vmatpush1.bf16.msra.mxu0 %v1714
        %2212 = vmatprep.subr.bf16.mxu0 %v1719
        %2213 = vmatpush1.bf16.msra.mxu0 %v1718
        %2214 = vmatprep.subr.bf16.mxu0 %v1723
        %2215 = vmatpush1.bf16.msra.mxu0 %v1722
        %2216 = vmatprep.subr.bf16.mxu0 %v1727
        %2217 = vmatpush1.bf16.msra.mxu0 %v1726
        %2218 = vmatprep.subr.bf16.mxu0 %v1731
        %2219 = vmatpush1.bf16.msra.mxu0 %v1730
        %2220 = vmatprep.subr.bf16.mxu0 %v1735
        %2221 = vmatpush1.bf16.msra.mxu0 %v1734
        %2222 = vmatprep.subr.bf16.mxu0 %v1739
        %2223 = vmatpush1.bf16.msra.mxu0 %v1738
        %2224 = vmatprep.subr.bf16.mxu0 %v1743
        %2225 = vmatpush1.bf16.msra.mxu0 %v1742
        %2226 = vmatprep.mubr.bf16.mxu0 %v899
        %2227 = vmatmul.mubr.bf16.gmra.mrb[0].mxu0 %v898
        %v2228 = vpop.f32.mrb[0].mxu0
        %v2229 = vadd.f32 0.0, %v2228
        %v2230 = vpop.f32.mrb[0].mxu0
        %v2231 = vadd.f32 0.0, %v2230
        %v2232 = vpop.f32.mrb[0].mxu0
        %v2233 = vadd.f32 0.0, %v2232
        %v2234 = vpop.f32.mrb[0].mxu0
        %v2235 = vadd.f32 0.0, %v2234
        %2236 = vdwg.mxu0
        %2237 = vmatprep.subr.bf16.mxu0 %v1747
        %2238 = vmatpush1.bf16.msra.mxu0 %v1746
        %2239 = vmatprep.subr.bf16.mxu0 %v1751
        %2240 = vmatpush1.bf16.msra.mxu0 %v1750
        %2241 = vmatprep.subr.bf16.mxu0 %v1755
        %2242 = vmatpush1.bf16.msra.mxu0 %v1754
        %2243 = vmatprep.subr.bf16.mxu0 %v1759
        %2244 = vmatpush1.bf16.msra.mxu0 %v1758
        %2245 = vmatprep.subr.bf16.mxu0 %v1763
        %2246 = vmatpush1.bf16.msra.mxu0 %v1762
        %2247 = vmatprep.subr.bf16.mxu0 %v1767
        %2248 = vmatpush1.bf16.msra.mxu0 %v1766
        %2249 = vmatprep.subr.bf16.mxu0 %v1771
        %2250 = vmatpush1.bf16.msra.mxu0 %v1770
        %2251 = vmatprep.subr.bf16.mxu0 %v1775
        %2252 = vmatpush1.bf16.msra.mxu0 %v1774
        %2253 = vmatprep.subr.bf16.mxu0 %v1779
        %2254 = vmatpush1.bf16.msra.mxu0 %v1778
        %2255 = vmatprep.subr.bf16.mxu0 %v1783
        %2256 = vmatpush1.bf16.msra.mxu0 %v1782
        %2257 = vmatprep.subr.bf16.mxu0 %v1787
        %2258 = vmatpush1.bf16.msra.mxu0 %v1786
        %2259 = vmatprep.subr.bf16.mxu0 %v1791
        %2260 = vmatpush1.bf16.msra.mxu0 %v1790
        %2261 = vmatprep.subr.bf16.mxu0 %v1795
        %2262 = vmatpush1.bf16.msra.mxu0 %v1794
        %2263 = vmatprep.subr.bf16.mxu0 %v1799
        %2264 = vmatpush1.bf16.msra.mxu0 %v1798
        %2265 = vmatprep.subr.bf16.mxu0 %v1803
        %2266 = vmatpush1.bf16.msra.mxu0 %v1802
        %2267 = vmatprep.subr.bf16.mxu0 %v1807
        %2268 = vmatpush1.bf16.msra.mxu0 %v1806
        %2269 = vmatprep.mubr.bf16.mxu0 %v901
        %2270 = vmatmul.mubr.bf16.gmra.mrb[0].mxu0 %v900
        %v2271 = vpop.f32.mrb[0].mxu0
        %v2272 = vadd.f32 %v2229, %v2271
        %v2273 = vpop.f32.mrb[0].mxu0
        %v2274 = vadd.f32 %v2231, %v2273
        %v2275 = vpop.f32.mrb[0].mxu0
        %v2276 = vadd.f32 %v2233, %v2275
        %v2277 = vpop.f32.mrb[0].mxu0
        %v2278 = vadd.f32 %v2235, %v2277
        %2279 = vdwg.mxu0
        %2280 = vmatprep.subr.bf16.mxu0 %v1811
        %2281 = vmatpush1.bf16.msra.mxu0 %v1810
        %2282 = vmatprep.subr.bf16.mxu0 %v1815
        %2283 = vmatpush1.bf16.msra.mxu0 %v1814
        %2284 = vmatprep.subr.bf16.mxu0 %v1819
        %2285 = vmatpush1.bf16.msra.mxu0 %v1818
        %2286 = vmatprep.subr.bf16.mxu0 %v1823
        %2287 = vmatpush1.bf16.msra.mxu0 %v1822
        %2288 = vmatprep.subr.bf16.mxu0 %v1827
        %2289 = vmatpush1.bf16.msra.mxu0 %v1826
        %2290 = vmatprep.subr.bf16.mxu0 %v1831
        %2291 = vmatpush1.bf16.msra.mxu0 %v1830
        %2292 = vmatprep.subr.bf16.mxu0 %v1835
        %2293 = vmatpush1.bf16.msra.mxu0 %v1834
        %2294 = vmatprep.subr.bf16.mxu0 %v1839
        %2295 = vmatpush1.bf16.msra.mxu0 %v1838
        %2296 = vmatprep.subr.bf16.mxu0 %v1843
        %2297 = vmatpush1.bf16.msra.mxu0 %v1842
        %2298 = vmatprep.subr.bf16.mxu0 %v1847
        %2299 = vmatpush1.bf16.msra.mxu0 %v1846
        %2300 = vmatprep.subr.bf16.mxu0 %v1851
        %2301 = vmatpush1.bf16.msra.mxu0 %v1850
        %2302 = vmatprep.subr.bf16.mxu0 %v1855
        %2303 = vmatpush1.bf16.msra.mxu0 %v1854
        %2304 = vmatprep.subr.bf16.mxu0 %v1859
        %2305 = vmatpush1.bf16.msra.mxu0 %v1858
        %2306 = vmatprep.subr.bf16.mxu0 %v1863
        %2307 = vmatpush1.bf16.msra.mxu0 %v1862
        %2308 = vmatprep.subr.bf16.mxu0 %v1867
        %2309 = vmatpush1.bf16.msra.mxu0 %v1866
        %2310 = vmatprep.subr.bf16.mxu0 %v1871
        %2311 = vmatpush1.bf16.msra.mxu0 %v1870
        %2312 = vmatprep.mubr.bf16.mxu0 %v903
        %2313 = vmatmul.mubr.bf16.gmra.mrb[0].mxu0 %v902
        %v2314 = vpop.f32.mrb[0].mxu0
        %v2315 = vadd.f32 %v2272, %v2314
        %v2316 = vpop.f32.mrb[0].mxu0
        %v2317 = vadd.f32 %v2274, %v2316
        %v2318 = vpop.f32.mrb[0].mxu0
        %v2319 = vadd.f32 %v2276, %v2318
        %v2320 = vpop.f32.mrb[0].mxu0
        %v2321 = vadd.f32 %v2278, %v2320
        %2322 = vdwg.mxu0
        %2323 = vmatprep.subr.bf16.mxu0 %v1875
        %2324 = vmatpush1.bf16.msra.mxu0 %v1874
        %2325 = vmatprep.subr.bf16.mxu0 %v1879
        %2326 = vmatpush1.bf16.msra.mxu0 %v1878
        %2327 = vmatprep.subr.bf16.mxu0 %v1883
        %2328 = vmatpush1.bf16.msra.mxu0 %v1882
        %2329 = vmatprep.subr.bf16.mxu0 %v1887
        %2330 = vmatpush1.bf16.msra.mxu0 %v1886
        %2331 = vmatprep.subr.bf16.mxu0 %v1891
        %2332 = vmatpush1.bf16.msra.mxu0 %v1890
        %2333 = vmatprep.subr.bf16.mxu0 %v1895
        %2334 = vmatpush1.bf16.msra.mxu0 %v1894
        %2335 = vmatprep.subr.bf16.mxu0 %v1899
        %2336 = vmatpush1.bf16.msra.mxu0 %v1898
        %2337 = vmatprep.subr.bf16.mxu0 %v1903
        %2338 = vmatpush1.bf16.msra.mxu0 %v1902
        %2339 = vmatprep.subr.bf16.mxu0 %v1907
        %2340 = vmatpush1.bf16.msra.mxu0 %v1906
        %2341 = vmatprep.subr.bf16.mxu0 %v1911
        %2342 = vmatpush1.bf16.msra.mxu0 %v1910
        %2343 = vmatprep.subr.bf16.mxu0 %v1915
        %2344 = vmatpush1.bf16.msra.mxu0 %v1914
        %2345 = vmatprep.subr.bf16.mxu0 %v1919
        %2346 = vmatpush1.bf16.msra.mxu0 %v1918
        %2347 = vmatprep.subr.bf16.mxu0 %v1923
        %2348 = vmatpush1.bf16.msra.mxu0 %v1922
        %2349 = vmatprep.subr.bf16.mxu0 %v1927
        %2350 = vmatpush1.bf16.msra.mxu0 %v1926
        %2351 = vmatprep.subr.bf16.mxu0 %v1931
        %2352 = vmatpush1.bf16.msra.mxu0 %v1930
        %2353 = vmatprep.subr.bf16.mxu0 %v1935
        %2354 = vmatpush1.bf16.msra.mxu0 %v1934
        %2355 = vmatprep.mubr.bf16.mxu0 %v905
        %2356 = vmatmul.mubr.bf16.gmra.mrb[0].mxu0 %v904
        %v2357 = vpop.f32.mrb[0].mxu0
        %v2358 = vadd.f32 %v2315, %v2357
        %v2359 = vpop.f32.mrb[0].mxu0
        %v2360 = vadd.f32 %v2317, %v2359
        %v2361 = vpop.f32.mrb[0].mxu0
        %v2362 = vadd.f32 %v2319, %v2361
        %v2363 = vpop.f32.mrb[0].mxu0
        %v2364 = vadd.f32 %v2321, %v2363
        %2365 = vdwg.mxu0
        %2366 = vmatprep.subr.bf16.mxu0 %v1685
        %2367 = vmatpush1.bf16.msra.mxu0 %v1684
        %2368 = vmatprep.subr.bf16.mxu0 %v1689
        %2369 = vmatpush1.bf16.msra.mxu0 %v1688
        %2370 = vmatprep.subr.bf16.mxu0 %v1693
        %2371 = vmatpush1.bf16.msra.mxu0 %v1692
        %2372 = vmatprep.subr.bf16.mxu0 %v1697
        %2373 = vmatpush1.bf16.msra.mxu0 %v1696
        %2374 = vmatprep.subr.bf16.mxu0 %v1701
        %2375 = vmatpush1.bf16.msra.mxu0 %v1700
        %2376 = vmatprep.subr.bf16.mxu0 %v1705
        %2377 = vmatpush1.bf16.msra.mxu0 %v1704
        %2378 = vmatprep.subr.bf16.mxu0 %v1709
        %2379 = vmatpush1.bf16.msra.mxu0 %v1708
        %2380 = vmatprep.subr.bf16.mxu0 %v1713
        %2381 = vmatpush1.bf16.msra.mxu0 %v1712
        %2382 = vmatprep.subr.bf16.mxu0 %v1717
        %2383 = vmatpush1.bf16.msra.mxu0 %v1716
        %2384 = vmatprep.subr.bf16.mxu0 %v1721
        %2385 = vmatpush1.bf16.msra.mxu0 %v1720
        %2386 = vmatprep.subr.bf16.mxu0 %v1725
        %2387 = vmatpush1.bf16.msra.mxu0 %v1724
        %2388 = vmatprep.subr.bf16.mxu0 %v1729
        %2389 = vmatpush1.bf16.msra.mxu0 %v1728
        %2390 = vmatprep.subr.bf16.mxu0 %v1733
        %2391 = vmatpush1.bf16.msra.mxu0 %v1732
        %2392 = vmatprep.subr.bf16.mxu0 %v1737
        %2393 = vmatpush1.bf16.msra.mxu0 %v1736
        %2394 = vmatprep.subr.bf16.mxu0 %v1741
        %2395 = vmatpush1.bf16.msra.mxu0 %v1740
        %2396 = vmatprep.subr.bf16.mxu0 %v1745
        %2397 = vmatpush1.bf16.msra.mxu0 %v1744
        %2398 = vmatprep.mubr.bf16.mxu0 %v899
        %2399 = vmatmul.mubr.bf16.gmra.mrb[0].mxu0 %v898
        %v2400 = vpop.f32.mrb[0].mxu0
        %v2401 = vadd.f32 0.0, %v2400
        %v2402 = vpop.f32.mrb[0].mxu0
        %v2403 = vadd.f32 0.0, %v2402
        %v2404 = vpop.f32.mrb[0].mxu0
        %v2405 = vadd.f32 0.0, %v2404
        %v2406 = vpop.f32.mrb[0].mxu0
        %v2407 = vadd.f32 0.0, %v2406
        %2408 = vdwg.mxu0
        %2409 = vmatprep.subr.bf16.mxu0 %v1749
        %2410 = vmatpush1.bf16.msra.mxu0 %v1748
        %2411 = vmatprep.subr.bf16.mxu0 %v1753
        %2412 = vmatpush1.bf16.msra.mxu0 %v1752
        %2413 = vmatprep.subr.bf16.mxu0 %v1757
        %2414 = vmatpush1.bf16.msra.mxu0 %v1756
        %2415 = vmatprep.subr.bf16.mxu0 %v1761
        %2416 = vmatpush1.bf16.msra.mxu0 %v1760
        %2417 = vmatprep.subr.bf16.mxu0 %v1765
        %2418 = vmatpush1.bf16.msra.mxu0 %v1764
        %2419 = vmatprep.subr.bf16.mxu0 %v1769
        %2420 = vmatpush1.bf16.msra.mxu0 %v1768
        %2421 = vmatprep.subr.bf16.mxu0 %v1773
        %2422 = vmatpush1.bf16.msra.mxu0 %v1772
        %2423 = vmatprep.subr.bf16.mxu0 %v1777
        %2424 = vmatpush1.bf16.msra.mxu0 %v1776
        %2425 = vmatprep.subr.bf16.mxu0 %v1781
        %2426 = vmatpush1.bf16.msra.mxu0 %v1780
        %2427 = vmatprep.subr.bf16.mxu0 %v1785
        %2428 = vmatpush1.bf16.msra.mxu0 %v1784
        %2429 = vmatprep.subr.bf16.mxu0 %v1789
        %2430 = vmatpush1.bf16.msra.mxu0 %v1788
        %2431 = vmatprep.subr.bf16.mxu0 %v1793
        %2432 = vmatpush1.bf16.msra.mxu0 %v1792
        %2433 = vmatprep.subr.bf16.mxu0 %v1797
        %2434 = vmatpush1.bf16.msra.mxu0 %v1796
        %2435 = vmatprep.subr.bf16.mxu0 %v1801
        %2436 = vmatpush1.bf16.msra.mxu0 %v1800
        %2437 = vmatprep.subr.bf16.mxu0 %v1805
        %2438 = vmatpush1.bf16.msra.mxu0 %v1804
        %2439 = vmatprep.subr.bf16.mxu0 %v1809
        %2440 = vmatpush1.bf16.msra.mxu0 %v1808
        %2441 = vmatprep.mubr.bf16.mxu0 %v901
        %2442 = vmatmul.mubr.bf16.gmra.mrb[0].mxu0 %v900
        %v2443 = vpop.f32.mrb[0].mxu0
        %v2444 = vadd.f32 %v2401, %v2443
        %v2445 = vpop.f32.mrb[0].mxu0
        %v2446 = vadd.f32 %v2403, %v2445
        %v2447 = vpop.f32.mrb[0].mxu0
        %v2448 = vadd.f32 %v2405, %v2447
        %v2449 = vpop.f32.mrb[0].mxu0
        %v2450 = vadd.f32 %v2407, %v2449
        %2451 = vdwg.mxu0
        %2452 = vmatprep.subr.bf16.mxu0 %v1813
        %2453 = vmatpush1.bf16.msra.mxu0 %v1812
        %2454 = vmatprep.subr.bf16.mxu0 %v1817
        %2455 = vmatpush1.bf16.msra.mxu0 %v1816
        %2456 = vmatprep.subr.bf16.mxu0 %v1821
        %2457 = vmatpush1.bf16.msra.mxu0 %v1820
        %2458 = vmatprep.subr.bf16.mxu0 %v1825
        %2459 = vmatpush1.bf16.msra.mxu0 %v1824
        %2460 = vmatprep.subr.bf16.mxu0 %v1829
        %2461 = vmatpush1.bf16.msra.mxu0 %v1828
        %2462 = vmatprep.subr.bf16.mxu0 %v1833
        %2463 = vmatpush1.bf16.msra.mxu0 %v1832
        %2464 = vmatprep.subr.bf16.mxu0 %v1837
        %2465 = vmatpush1.bf16.msra.mxu0 %v1836
        %2466 = vmatprep.subr.bf16.mxu0 %v1841
        %2467 = vmatpush1.bf16.msra.mxu0 %v1840
        %2468 = vmatprep.subr.bf16.mxu0 %v1845
        %2469 = vmatpush1.bf16.msra.mxu0 %v1844
        %2470 = vmatprep.subr.bf16.mxu0 %v1849
        %2471 = vmatpush1.bf16.msra.mxu0 %v1848
        %2472 = vmatprep.subr.bf16.mxu0 %v1853
        %2473 = vmatpush1.bf16.msra.mxu0 %v1852
        %2474 = vmatprep.subr.bf16.mxu0 %v1857
        %2475 = vmatpush1.bf16.msra.mxu0 %v1856
        %2476 = vmatprep.subr.bf16.mxu0 %v1861
        %2477 = vmatpush1.bf16.msra.mxu0 %v1860
        %2478 = vmatprep.subr.bf16.mxu0 %v1865
        %2479 = vmatpush1.bf16.msra.mxu0 %v1864
        %2480 = vmatprep.subr.bf16.mxu0 %v1869
        %2481 = vmatpush1.bf16.msra.mxu0 %v1868
        %2482 = vmatprep.subr.bf16.mxu0 %v1873
        %2483 = vmatpush1.bf16.msra.mxu0 %v1872
        %2484 = vmatprep.mubr.bf16.mxu0 %v903
        %2485 = vmatmul.mubr.bf16.gmra.mrb[0].mxu0 %v902
        %v2486 = vpop.f32.mrb[0].mxu0
        %v2487 = vadd.f32 %v2444, %v2486
        %v2488 = vpop.f32.mrb[0].mxu0
        %v2489 = vadd.f32 %v2446, %v2488
        %v2490 = vpop.f32.mrb[0].mxu0
        %v2491 = vadd.f32 %v2448, %v2490
        %v2492 = vpop.f32.mrb[0].mxu0
        %v2493 = vadd.f32 %v2450, %v2492
        %2494 = vdwg.mxu0
        %2495 = vmatprep.subr.bf16.mxu0 %v1877
        %2496 = vmatpush1.bf16.msra.mxu0 %v1876
        %2497 = vmatprep.subr.bf16.mxu0 %v1881
        %2498 = vmatpush1.bf16.msra.mxu0 %v1880
        %2499 = vmatprep.subr.bf16.mxu0 %v1885
        %2500 = vmatpush1.bf16.msra.mxu0 %v1884
        %2501 = vmatprep.subr.bf16.mxu0 %v1889
        %2502 = vmatpush1.bf16.msra.mxu0 %v1888
        %2503 = vmatprep.subr.bf16.mxu0 %v1893
        %2504 = vmatpush1.bf16.msra.mxu0 %v1892
        %2505 = vmatprep.subr.bf16.mxu0 %v1897
        %2506 = vmatpush1.bf16.msra.mxu0 %v1896
        %2507 = vmatprep.subr.bf16.mxu0 %v1901
        %2508 = vmatpush1.bf16.msra.mxu0 %v1900
        %2509 = vmatprep.subr.bf16.mxu0 %v1905
        %2510 = vmatpush1.bf16.msra.mxu0 %v1904
        %2511 = vmatprep.subr.bf16.mxu0 %v1909
        %2512 = vmatpush1.bf16.msra.mxu0 %v1908
        %2513 = vmatprep.subr.bf16.mxu0 %v1913
        %2514 = vmatpush1.bf16.msra.mxu0 %v1912
        %2515 = vmatprep.subr.bf16.mxu0 %v1917
        %2516 = vmatpush1.bf16.msra.mxu0 %v1916
        %2517 = vmatprep.subr.bf16.mxu0 %v1921
        %2518 = vmatpush1.bf16.msra.mxu0 %v1920
        %2519 = vmatprep.subr.bf16.mxu0 %v1925
        %2520 = vmatpush1.bf16.msra.mxu0 %v1924
        %2521 = vmatprep.subr.bf16.mxu0 %v1929
        %2522 = vmatpush1.bf16.msra.mxu0 %v1928
        %2523 = vmatprep.subr.bf16.mxu0 %v1933
        %2524 = vmatpush1.bf16.msra.mxu0 %v1932
        %2525 = vmatprep.subr.bf16.mxu0 %v1937
        %2526 = vmatpush1.bf16.msra.mxu0 %v1936
        %2527 = vmatprep.mubr.bf16.mxu0 %v905
        %2528 = vmatmul.mubr.bf16.gmra.mrb[0].mxu0 %v904
        %v2529 = vpop.f32.mrb[0].mxu0
        %v2530 = vadd.f32 %v2487, %v2529
        %v2531 = vpop.f32.mrb[0].mxu0
        %v2532 = vadd.f32 %v2489, %v2531
        %v2533 = vpop.f32.mrb[0].mxu0
        %v2534 = vadd.f32 %v2491, %v2533
        %v2535 = vpop.f32.mrb[0].mxu0
        %v2536 = vadd.f32 %v2493, %v2535
        %2537 = vdwg.mxu0
        %v2538 = vadd.f32 %v602, %v2358
        %v2539 = vadd.f32 %v603, %v2360
        %v2540 = vadd.f32 %v604, %v2530
        %v2541 = vadd.f32 %v605, %v2532
        %v2542 = vadd.f32 %v606, %v2362
        %v2543 = vadd.f32 %v607, %v2364
        %v2544 = vadd.f32 %v608, %v2534
        %v2545 = vadd.f32 %v609, %v2536
        %2546 = vst [vmem:[#allocation2] sm:$0xff] %v2538
        %2547 = vst [vmem:[#allocation2 + $0x8] sm:$0xff] %v2539
        %2548 = vst [vmem:[#allocation2 + $0x10] sm:$0xff] %v2540
        %2549 = vst [vmem:[#allocation2 + $0x18] sm:$0xff] %v2541
        %2550 = vst [vmem:[#allocation2 + $0x20] sm:$0xff] %v2542
        %2551 = vst [vmem:[#allocation2 + $0x28] sm:$0xff] %v2543
        %2552 = vst [vmem:[#allocation2 + $0x30] sm:$0xff] %v2544
        %2553 = vst [vmem:[#allocation2 + $0x38] sm:$0xff] %v2545
        %p2554 = scmp.eq.s32.totalorder %s34, 2
        // Predicated region
        $region128: #{fcnn_forward.1} parent=82 // pred_check
          %p2555 = pneg %p2554
        $region129: #{fcnn_forward.1} parent=82 // pred_check_branch
          %2557 = sbr.rel (%p2555) target = $region131
        $region130: #{fcnn_forward.1} parent=82 // pred_region
          %v2558 = vld [vmem:[#allocation2] sm:$0xff]
          %v2559 = vld [vmem:[#allocation2 + $0x8] sm:$0xff]
          %v2560 = vld [vmem:[#allocation2 + $0x10] sm:$0xff]
          %v2561 = vld [vmem:[#allocation2 + $0x18] sm:$0xff]
          %v2562 = vld [vmem:[#allocation2 + $0x20] sm:$0xff]
          %v2563 = vld [vmem:[#allocation2 + $0x28] sm:$0xff]
          %v2564 = vld [vmem:[#allocation2 + $0x30] sm:$0xff]
          %v2565 = vld [vmem:[#allocation2 + $0x38] sm:$0xff]
          %v2566 = vld [vmem:[#allocation6] sm:$0xf]
          %v2568 = vlaneseq
          %v2569 = vshrl.u32 %v2568, 7
          %v2570 = vsub.s32 0, %v2569
          %v2571 = vrot.slane %v2566, %v2570
          %v2572 = vlaneseq
          %v2573 = vshrl.u32 %v2572, 7
          %v2574 = vsub.s32 1, %v2573
          %v2575 = vrot.slane %v2566, %v2574
          %v2576 = vlaneseq
          %v2577 = vshrl.u32 %v2576, 7
          %v2578 = vsub.s32 2, %v2577
          %v2579 = vrot.slane %v2566, %v2578
          %v2580 = vlaneseq
          %v2581 = vshrl.u32 %v2580, 7
          %v2582 = vsub.s32 3, %v2581
          %v2583 = vrot.slane %v2566, %v2582
          %v2588 = vadd.f32 %v2558, %v2571
          %v2589 = vadd.f32 %v2559, %v2575
          %v2590 = vadd.f32 %v2560, %v2579
          %v2591 = vadd.f32 %v2561, %v2583
          %v2592 = vadd.f32 %v2562, %v2571
          %v2593 = vadd.f32 %v2563, %v2575
          %v2594 = vadd.f32 %v2564, %v2579
          %v2595 = vadd.f32 %v2565, %v2583
          %v2596 = vmax.f32 %v2588, 0.0
          %v2597 = vmax.f32 %v2589, 0.0
          %v2598 = vmax.f32 %v2590, 0.0
          %v2599 = vmax.f32 %v2591, 0.0
          %v2600 = vmax.f32 %v2592, 0.0
          %v2601 = vmax.f32 %v2593, 0.0
          %v2602 = vmax.f32 %v2594, 0.0
          %v2603 = vmax.f32 %v2595, 0.0
          %v2604 = vpack.c.bf16 %v2600, %v2596
          %v2605 = vpack.c.bf16 %v2601, %v2597
          %v2606 = vpack.c.bf16 %v2602, %v2598
          %v2607 = vpack.c.bf16 %v2603, %v2599
          %v2608 = vld [vmem:[#allocation8] sm:$0xff]
          %v2609 = vld [vmem:[#allocation8 + $0x8] sm:$0xff]
          %v2610 = vld [vmem:[#allocation8 + $0x10] sm:$0xff]
          %v2611 = vld [vmem:[#allocation8 + $0x18] sm:$0xff]
          %v2612 = vld [vmem:[#allocation8 + $0x20] sm:$0xff]
          %v2613 = vld [vmem:[#allocation8 + $0x28] sm:$0xff]
          %v2614 = vld [vmem:[#allocation8 + $0x30] sm:$0xff]
          %v2615 = vld [vmem:[#allocation8 + $0x38] sm:$0xff]
          %v2616 = vld [vmem:[#allocation8 + $0x40] sm:$0xff]
          %v2617 = vld [vmem:[#allocation8 + $0x48] sm:$0xff]
          %v2618 = vld [vmem:[#allocation8 + $0x50] sm:$0xff]
          %v2619 = vld [vmem:[#allocation8 + $0x58] sm:$0xff]
          %v2620 = vld [vmem:[#allocation8 + $0x60] sm:$0xff]
          %v2621 = vld [vmem:[#allocation8 + $0x68] sm:$0xff]
          %v2622 = vld [vmem:[#allocation8 + $0x70] sm:$0xff]
          %v2623 = vld [vmem:[#allocation8 + $0x78] sm:$0xff]
          %v2624 = vld [vmem:[#allocation8 + $0x80] sm:$0xff]
          %v2625 = vld [vmem:[#allocation8 + $0x88] sm:$0xff]
          %v2626 = vld [vmem:[#allocation8 + $0x90] sm:$0xff]
          %v2627 = vld [vmem:[#allocation8 + $0x98] sm:$0xff]
          %v2628 = vld [vmem:[#allocation8 + $0xa0] sm:$0xff]
          %v2629 = vld [vmem:[#allocation8 + $0xa8] sm:$0xff]
          %v2630 = vld [vmem:[#allocation8 + $0xb0] sm:$0xff]
          %v2631 = vld [vmem:[#allocation8 + $0xb8] sm:$0xff]
          %v2632 = vld [vmem:[#allocation8 + $0xc0] sm:$0xff]
          %v2633 = vld [vmem:[#allocation8 + $0xc8] sm:$0xff]
          %v2634 = vld [vmem:[#allocation8 + $0xd0] sm:$0xff]
          %v2635 = vld [vmem:[#allocation8 + $0xd8] sm:$0xff]
          %v2636 = vld [vmem:[#allocation8 + $0xe0] sm:$0xff]
          %v2637 = vld [vmem:[#allocation8 + $0xe8] sm:$0xff]
          %v2638 = vld [vmem:[#allocation8 + $0xf0] sm:$0xff]
          %v2639 = vld [vmem:[#allocation8 + $0xf8] sm:$0xff]
          %v2640 = vld [vmem:[#allocation8 + $0x100] sm:$0xff]
          %v2641 = vld [vmem:[#allocation8 + $0x108] sm:$0xff]
          %v2642 = vld [vmem:[#allocation8 + $0x110] sm:$0xff]
          %v2643 = vld [vmem:[#allocation8 + $0x118] sm:$0xff]
          %v2644 = vld [vmem:[#allocation8 + $0x120] sm:$0xff]
          %v2645 = vld [vmem:[#allocation8 + $0x128] sm:$0xff]
          %v2646 = vld [vmem:[#allocation8 + $0x130] sm:$0xff]
          %v2647 = vld [vmem:[#allocation8 + $0x138] sm:$0xff]
          %v2648 = vld [vmem:[#allocation8 + $0x140] sm:$0xff]
          %v2649 = vld [vmem:[#allocation8 + $0x148] sm:$0xff]
          %v2650 = vld [vmem:[#allocation8 + $0x150] sm:$0xff]
          %v2651 = vld [vmem:[#allocation8 + $0x158] sm:$0xff]
          %v2652 = vld [vmem:[#allocation8 + $0x160] sm:$0xff]
          %v2653 = vld [vmem:[#allocation8 + $0x168] sm:$0xff]
          %v2654 = vld [vmem:[#allocation8 + $0x170] sm:$0xff]
          %v2655 = vld [vmem:[#allocation8 + $0x178] sm:$0xff]
          %v2656 = vld [vmem:[#allocation8 + $0x180] sm:$0xff]
          %v2657 = vld [vmem:[#allocation8 + $0x188] sm:$0xff]
          %v2658 = vld [vmem:[#allocation8 + $0x190] sm:$0xff]
          %v2659 = vld [vmem:[#allocation8 + $0x198] sm:$0xff]
          %v2660 = vld [vmem:[#allocation8 + $0x1a0] sm:$0xff]
          %v2661 = vld [vmem:[#allocation8 + $0x1a8] sm:$0xff]
          %v2662 = vld [vmem:[#allocation8 + $0x1b0] sm:$0xff]
          %v2663 = vld [vmem:[#allocation8 + $0x1b8] sm:$0xff]
          %v2664 = vld [vmem:[#allocation8 + $0x1c0] sm:$0xff]
          %v2665 = vld [vmem:[#allocation8 + $0x1c8] sm:$0xff]
          %v2666 = vld [vmem:[#allocation8 + $0x1d0] sm:$0xff]
          %v2667 = vld [vmem:[#allocation8 + $0x1d8] sm:$0xff]
          %v2668 = vld [vmem:[#allocation8 + $0x1e0] sm:$0xff]
          %v2669 = vld [vmem:[#allocation8 + $0x1e8] sm:$0xff]
          %v2670 = vld [vmem:[#allocation8 + $0x1f0] sm:$0xff]
          %v2671 = vld [vmem:[#allocation8 + $0x1f8] sm:$0xff]
          %v2672 = vld [vmem:[#allocation9] sm:$0x3]
          %v2674 = vlaneseq
          %v2675 = vshrl.u32 %v2674, 7
          %v2676 = vsub.s32 0, %v2675
          %v2677 = vrot.slane %v2672, %v2676
          %v2678 = vlaneseq
          %v2679 = vshrl.u32 %v2678, 7
          %v2680 = vsub.s32 1, %v2679
          %v2681 = vrot.slane %v2672, %v2680
          %v2748 = vunpack.c.l.b16 %v2608
          %v2749 = vunpack.c.h.b16 %v2608
          %v2750 = vunpack.c.l.b16 %v2609
          %v2751 = vunpack.c.h.b16 %v2609
          %v2752 = vunpack.c.l.b16 %v2610
          %v2753 = vunpack.c.h.b16 %v2610
          %v2754 = vunpack.c.l.b16 %v2611
          %v2755 = vunpack.c.h.b16 %v2611
          %v2756 = vunpack.c.l.b16 %v2612
          %v2757 = vunpack.c.h.b16 %v2612
          %v2758 = vunpack.c.l.b16 %v2613
          %v2759 = vunpack.c.h.b16 %v2613
          %v2760 = vunpack.c.l.b16 %v2614
          %v2761 = vunpack.c.h.b16 %v2614
          %v2762 = vunpack.c.l.b16 %v2615
          %v2763 = vunpack.c.h.b16 %v2615
          %v2764 = vunpack.c.l.b16 %v2616
          %v2765 = vunpack.c.h.b16 %v2616
          %v2766 = vunpack.c.l.b16 %v2617
          %v2767 = vunpack.c.h.b16 %v2617
          %v2768 = vunpack.c.l.b16 %v2618
          %v2769 = vunpack.c.h.b16 %v2618
          %v2770 = vunpack.c.l.b16 %v2619
          %v2771 = vunpack.c.h.b16 %v2619
          %v2772 = vunpack.c.l.b16 %v2620
          %v2773 = vunpack.c.h.b16 %v2620
          %v2774 = vunpack.c.l.b16 %v2621
          %v2775 = vunpack.c.h.b16 %v2621
          %v2776 = vunpack.c.l.b16 %v2622
          %v2777 = vunpack.c.h.b16 %v2622
          %v2778 = vunpack.c.l.b16 %v2623
          %v2779 = vunpack.c.h.b16 %v2623
          %v2780 = vunpack.c.l.b16 %v2624
          %v2781 = vunpack.c.h.b16 %v2624
          %v2782 = vunpack.c.l.b16 %v2625
          %v2783 = vunpack.c.h.b16 %v2625
          %v2784 = vunpack.c.l.b16 %v2626
          %v2785 = vunpack.c.h.b16 %v2626
          %v2786 = vunpack.c.l.b16 %v2627
          %v2787 = vunpack.c.h.b16 %v2627
          %v2788 = vunpack.c.l.b16 %v2628
          %v2789 = vunpack.c.h.b16 %v2628
          %v2790 = vunpack.c.l.b16 %v2629
          %v2791 = vunpack.c.h.b16 %v2629
          %v2792 = vunpack.c.l.b16 %v2630
          %v2793 = vunpack.c.h.b16 %v2630
          %v2794 = vunpack.c.l.b16 %v2631
          %v2795 = vunpack.c.h.b16 %v2631
          %v2796 = vunpack.c.l.b16 %v2632
          %v2797 = vunpack.c.h.b16 %v2632
          %v2798 = vunpack.c.l.b16 %v2633
          %v2799 = vunpack.c.h.b16 %v2633
          %v2800 = vunpack.c.l.b16 %v2634
          %v2801 = vunpack.c.h.b16 %v2634
          %v2802 = vunpack.c.l.b16 %v2635
          %v2803 = vunpack.c.h.b16 %v2635
          %v2804 = vunpack.c.l.b16 %v2636
          %v2805 = vunpack.c.h.b16 %v2636
          %v2806 = vunpack.c.l.b16 %v2637
          %v2807 = vunpack.c.h.b16 %v2637
          %v2808 = vunpack.c.l.b16 %v2638
          %v2809 = vunpack.c.h.b16 %v2638
          %v2810 = vunpack.c.l.b16 %v2639
          %v2811 = vunpack.c.h.b16 %v2639
          %v2812 = vunpack.c.l.b16 %v2640
          %v2813 = vunpack.c.h.b16 %v2640
          %v2814 = vunpack.c.l.b16 %v2641
          %v2815 = vunpack.c.h.b16 %v2641
          %v2816 = vunpack.c.l.b16 %v2642
          %v2817 = vunpack.c.h.b16 %v2642
          %v2818 = vunpack.c.l.b16 %v2643
          %v2819 = vunpack.c.h.b16 %v2643
          %v2820 = vunpack.c.l.b16 %v2644
          %v2821 = vunpack.c.h.b16 %v2644
          %v2822 = vunpack.c.l.b16 %v2645
          %v2823 = vunpack.c.h.b16 %v2645
          %v2824 = vunpack.c.l.b16 %v2646
          %v2825 = vunpack.c.h.b16 %v2646
          %v2826 = vunpack.c.l.b16 %v2647
          %v2827 = vunpack.c.h.b16 %v2647
          %v2828 = vunpack.c.l.b16 %v2648
          %v2829 = vunpack.c.h.b16 %v2648
          %v2830 = vunpack.c.l.b16 %v2649
          %v2831 = vunpack.c.h.b16 %v2649
          %v2832 = vunpack.c.l.b16 %v2650
          %v2833 = vunpack.c.h.b16 %v2650
          %v2834 = vunpack.c.l.b16 %v2651
          %v2835 = vunpack.c.h.b16 %v2651
          %v2836 = vunpack.c.l.b16 %v2652
          %v2837 = vunpack.c.h.b16 %v2652
          %v2838 = vunpack.c.l.b16 %v2653
          %v2839 = vunpack.c.h.b16 %v2653
          %v2840 = vunpack.c.l.b16 %v2654
          %v2841 = vunpack.c.h.b16 %v2654
          %v2842 = vunpack.c.l.b16 %v2655
          %v2843 = vunpack.c.h.b16 %v2655
          %v2844 = vunpack.c.l.b16 %v2656
          %v2845 = vunpack.c.h.b16 %v2656
          %v2846 = vunpack.c.l.b16 %v2657
          %v2847 = vunpack.c.h.b16 %v2657
          %v2848 = vunpack.c.l.b16 %v2658
          %v2849 = vunpack.c.h.b16 %v2658
          %v2850 = vunpack.c.l.b16 %v2659
          %v2851 = vunpack.c.h.b16 %v2659
          %v2852 = vunpack.c.l.b16 %v2660
          %v2853 = vunpack.c.h.b16 %v2660
          %v2854 = vunpack.c.l.b16 %v2661
          %v2855 = vunpack.c.h.b16 %v2661
          %v2856 = vunpack.c.l.b16 %v2662
          %v2857 = vunpack.c.h.b16 %v2662
          %v2858 = vunpack.c.l.b16 %v2663
          %v2859 = vunpack.c.h.b16 %v2663
          %v2860 = vunpack.c.l.b16 %v2664
          %v2861 = vunpack.c.h.b16 %v2664
          %v2862 = vunpack.c.l.b16 %v2665
          %v2863 = vunpack.c.h.b16 %v2665
          %v2864 = vunpack.c.l.b16 %v2666
          %v2865 = vunpack.c.h.b16 %v2666
          %v2866 = vunpack.c.l.b16 %v2667
          %v2867 = vunpack.c.h.b16 %v2667
          %v2868 = vunpack.c.l.b16 %v2668
          %v2869 = vunpack.c.h.b16 %v2668
          %v2870 = vunpack.c.l.b16 %v2669
          %v2871 = vunpack.c.h.b16 %v2669
          %v2872 = vunpack.c.l.b16 %v2670
          %v2873 = vunpack.c.h.b16 %v2670
          %v2874 = vunpack.c.l.b16 %v2671
          %v2875 = vunpack.c.h.b16 %v2671
          %v2876 = vpack.c.b16 %v2750, %v2748
          %v2877 = vpack.c.b16 %v2751, %v2749
          %v2878 = vpack.c.b16 %v2754, %v2752
          %v2879 = vpack.c.b16 %v2755, %v2753
          %v2880 = vpack.c.b16 %v2758, %v2756
          %v2881 = vpack.c.b16 %v2759, %v2757
          %v2882 = vpack.c.b16 %v2762, %v2760
          %v2883 = vpack.c.b16 %v2763, %v2761
          %v2884 = vpack.c.b16 %v2766, %v2764
          %v2885 = vpack.c.b16 %v2767, %v2765
          %v2886 = vpack.c.b16 %v2770, %v2768
          %v2887 = vpack.c.b16 %v2771, %v2769
          %v2888 = vpack.c.b16 %v2774, %v2772
          %v2889 = vpack.c.b16 %v2775, %v2773
          %v2890 = vpack.c.b16 %v2778, %v2776
          %v2891 = vpack.c.b16 %v2779, %v2777
          %v2892 = vpack.c.b16 %v2782, %v2780
          %v2893 = vpack.c.b16 %v2783, %v2781
          %v2894 = vpack.c.b16 %v2786, %v2784
          %v2895 = vpack.c.b16 %v2787, %v2785
          %v2896 = vpack.c.b16 %v2790, %v2788
          %v2897 = vpack.c.b16 %v2791, %v2789
          %v2898 = vpack.c.b16 %v2794, %v2792
          %v2899 = vpack.c.b16 %v2795, %v2793
          %v2900 = vpack.c.b16 %v2798, %v2796
          %v2901 = vpack.c.b16 %v2799, %v2797
          %v2902 = vpack.c.b16 %v2802, %v2800
          %v2903 = vpack.c.b16 %v2803, %v2801
          %v2904 = vpack.c.b16 %v2806, %v2804
          %v2905 = vpack.c.b16 %v2807, %v2805
          %v2906 = vpack.c.b16 %v2810, %v2808
          %v2907 = vpack.c.b16 %v2811, %v2809
          %v2908 = vpack.c.b16 %v2814, %v2812
          %v2909 = vpack.c.b16 %v2815, %v2813
          %v2910 = vpack.c.b16 %v2818, %v2816
          %v2911 = vpack.c.b16 %v2819, %v2817
          %v2912 = vpack.c.b16 %v2822, %v2820
          %v2913 = vpack.c.b16 %v2823, %v2821
          %v2914 = vpack.c.b16 %v2826, %v2824
          %v2915 = vpack.c.b16 %v2827, %v2825
          %v2916 = vpack.c.b16 %v2830, %v2828
          %v2917 = vpack.c.b16 %v2831, %v2829
          %v2918 = vpack.c.b16 %v2834, %v2832
          %v2919 = vpack.c.b16 %v2835, %v2833
          %v2920 = vpack.c.b16 %v2838, %v2836
          %v2921 = vpack.c.b16 %v2839, %v2837
          %v2922 = vpack.c.b16 %v2842, %v2840
          %v2923 = vpack.c.b16 %v2843, %v2841
          %v2924 = vpack.c.b16 %v2846, %v2844
          %v2925 = vpack.c.b16 %v2847, %v2845
          %v2926 = vpack.c.b16 %v2850, %v2848
          %v2927 = vpack.c.b16 %v2851, %v2849
          %v2928 = vpack.c.b16 %v2854, %v2852
          %v2929 = vpack.c.b16 %v2855, %v2853
          %v2930 = vpack.c.b16 %v2858, %v2856
          %v2931 = vpack.c.b16 %v2859, %v2857
          %v2932 = vpack.c.b16 %v2862, %v2860
          %v2933 = vpack.c.b16 %v2863, %v2861
          %v2934 = vpack.c.b16 %v2866, %v2864
          %v2935 = vpack.c.b16 %v2867, %v2865
          %v2936 = vpack.c.b16 %v2870, %v2868
          %v2937 = vpack.c.b16 %v2871, %v2869
          %v2938 = vpack.c.b16 %v2874, %v2872
          %v2939 = vpack.c.b16 %v2875, %v2873
          %3004 = vmatprep.subr.bf16.mxu0 %v2877
          %3005 = vmatpush1.bf16.msra.mxu0 %v2876
          %3006 = vmatprep.subr.bf16.mxu0 %v2879
          %3007 = vmatpush1.bf16.msra.mxu0 %v2878
          %3008 = vmatprep.subr.bf16.mxu0 %v2881
          %3009 = vmatpush1.bf16.msra.mxu0 %v2880
          %3010 = vmatprep.subr.bf16.mxu0 %v2883
          %3011 = vmatpush1.bf16.msra.mxu0 %v2882
          %3012 = vmatprep.subr.bf16.mxu0 %v2885
          %3013 = vmatpush1.bf16.msra.mxu0 %v2884
          %3014 = vmatprep.subr.bf16.mxu0 %v2887
          %3015 = vmatpush1.bf16.msra.mxu0 %v2886
          %3016 = vmatprep.subr.bf16.mxu0 %v2889
          %3017 = vmatpush1.bf16.msra.mxu0 %v2888
          %3018 = vmatprep.subr.bf16.mxu0 %v2891
          %3019 = vmatpush1.bf16.msra.mxu0 %v2890
          %3020 = vmatprep.subr.bf16.mxu0 %v2893
          %3021 = vmatpush1.bf16.msra.mxu0 %v2892
          %3022 = vmatprep.subr.bf16.mxu0 %v2895
          %3023 = vmatpush1.bf16.msra.mxu0 %v2894
          %3024 = vmatprep.subr.bf16.mxu0 %v2897
          %3025 = vmatpush1.bf16.msra.mxu0 %v2896
          %3026 = vmatprep.subr.bf16.mxu0 %v2899
          %3027 = vmatpush1.bf16.msra.mxu0 %v2898
          %3028 = vmatprep.subr.bf16.mxu0 %v2901
          %3029 = vmatpush1.bf16.msra.mxu0 %v2900
          %3030 = vmatprep.subr.bf16.mxu0 %v2903
          %3031 = vmatpush1.bf16.msra.mxu0 %v2902
          %3032 = vmatprep.subr.bf16.mxu0 %v2905
          %3033 = vmatpush1.bf16.msra.mxu0 %v2904
          %3034 = vmatprep.subr.bf16.mxu0 %v2907
          %3035 = vmatpush1.bf16.msra.mxu0 %v2906
          %3036 = vmatprep.mubr.bf16.mxu0 %v2605
          %3037 = vmatmul.mubr.bf16.gmra.mrb[0].mxu0 %v2604
          %v3038 = vpop.f32.mrb[0].mxu0
          %v3039 = vadd.f32 %v2677, %v3038
          %v3040 = vpop.f32.mrb[0].mxu0
          %v3041 = vadd.f32 %v2681, %v3040
          %v3042 = vpop.f32.mrb[0].mxu0
          %v3043 = vadd.f32 %v2677, %v3042
          %v3044 = vpop.f32.mrb[0].mxu0
          %v3045 = vadd.f32 %v2681, %v3044
          %3046 = vdwg.mxu0
          %3047 = vmatprep.subr.bf16.mxu0 %v2909
          %3048 = vmatpush1.bf16.msra.mxu0 %v2908
          %3049 = vmatprep.subr.bf16.mxu0 %v2911
          %3050 = vmatpush1.bf16.msra.mxu0 %v2910
          %3051 = vmatprep.subr.bf16.mxu0 %v2913
          %3052 = vmatpush1.bf16.msra.mxu0 %v2912
          %3053 = vmatprep.subr.bf16.mxu0 %v2915
          %3054 = vmatpush1.bf16.msra.mxu0 %v2914
          %3055 = vmatprep.subr.bf16.mxu0 %v2917
          %3056 = vmatpush1.bf16.msra.mxu0 %v2916
          %3057 = vmatprep.subr.bf16.mxu0 %v2919
          %3058 = vmatpush1.bf16.msra.mxu0 %v2918
          %3059 = vmatprep.subr.bf16.mxu0 %v2921
          %3060 = vmatpush1.bf16.msra.mxu0 %v2920
          %3061 = vmatprep.subr.bf16.mxu0 %v2923
          %3062 = vmatpush1.bf16.msra.mxu0 %v2922
          %3063 = vmatprep.subr.bf16.mxu0 %v2925
          %3064 = vmatpush1.bf16.msra.mxu0 %v2924
          %3065 = vmatprep.subr.bf16.mxu0 %v2927
          %3066 = vmatpush1.bf16.msra.mxu0 %v2926
          %3067 = vmatprep.subr.bf16.mxu0 %v2929
          %3068 = vmatpush1.bf16.msra.mxu0 %v2928
          %3069 = vmatprep.subr.bf16.mxu0 %v2931
          %3070 = vmatpush1.bf16.msra.mxu0 %v2930
          %3071 = vmatprep.subr.bf16.mxu0 %v2933
          %3072 = vmatpush1.bf16.msra.mxu0 %v2932
          %3073 = vmatprep.subr.bf16.mxu0 %v2935
          %3074 = vmatpush1.bf16.msra.mxu0 %v2934
          %3075 = vmatprep.subr.bf16.mxu0 %v2937
          %3076 = vmatpush1.bf16.msra.mxu0 %v2936
          %3077 = vmatprep.subr.bf16.mxu0 %v2939
          %3078 = vmatpush1.bf16.msra.mxu0 %v2938
          %3079 = vmatprep.mubr.bf16.mxu0 %v2607
          %3080 = vmatmul.mubr.bf16.gmra.mrb[0].mxu0 %v2606
          %v3081 = vpop.f32.mrb[0].mxu0
          %v3082 = vadd.f32 %v3039, %v3081
          %v3083 = vpop.f32.mrb[0].mxu0
          %v3084 = vadd.f32 %v3041, %v3083
          %v3085 = vpop.f32.mrb[0].mxu0
          %v3086 = vadd.f32 %v3043, %v3085
          %v3087 = vpop.f32.mrb[0].mxu0
          %v3088 = vadd.f32 %v3045, %v3087
          %3089 = vdwg.mxu0
          %v3090 = vmax.f32 %v3082, 0.0
          %v3091 = vmax.f32 %v3084, 0.0
          %v3092 = vmax.f32 %v3086, 0.0
          %v3093 = vmax.f32 %v3088, 0.0
          %v3094 = vpack.c.bf16 %v3092, %v3090
          %v3095 = vpack.c.bf16 %v3093, %v3091
          %v3096 = vld [vmem:[#allocation11] sm:$0xf]
          %v3097 = vld [vmem:[#allocation11 + $0x4] sm:$0xf]
          %v3098 = vld [vmem:[#allocation11 + $0x8] sm:$0xf]
          %v3099 = vld [vmem:[#allocation11 + $0xc] sm:$0xf]
          %v3100 = vld [vmem:[#allocation11 + $0x10] sm:$0xf]
          %v3101 = vld [vmem:[#allocation11 + $0x14] sm:$0xf]
          %v3102 = vld [vmem:[#allocation11 + $0x18] sm:$0xf]
          %v3103 = vld [vmem:[#allocation11 + $0x1c] sm:$0xf]
          %v3104 = vld [vmem:[#allocation11 + $0x20] sm:$0xf]
          %v3105 = vld [vmem:[#allocation11 + $0x24] sm:$0xf]
          %v3106 = vld [vmem:[#allocation11 + $0x28] sm:$0xf]
          %v3107 = vld [vmem:[#allocation11 + $0x2c] sm:$0xf]
          %v3108 = vld [vmem:[#allocation11 + $0x30] sm:$0xf]
          %v3109 = vld [vmem:[#allocation11 + $0x34] sm:$0xf]
          %v3110 = vld [vmem:[#allocation11 + $0x38] sm:$0xf]
          %v3111 = vld [vmem:[#allocation11 + $0x3c] sm:$0xf]
          %v3112 = vld [vmem:[#allocation11 + $0x40] sm:$0xf]
          %v3113 = vld [vmem:[#allocation11 + $0x44] sm:$0xf]
          %v3114 = vld [vmem:[#allocation11 + $0x48] sm:$0xf]
          %v3115 = vld [vmem:[#allocation11 + $0x4c] sm:$0xf]
          %v3116 = vld [vmem:[#allocation11 + $0x50] sm:$0xf]
          %v3117 = vld [vmem:[#allocation11 + $0x54] sm:$0xf]
          %v3118 = vld [vmem:[#allocation11 + $0x58] sm:$0xf]
          %v3119 = vld [vmem:[#allocation11 + $0x5c] sm:$0xf]
          %v3120 = vld [vmem:[#allocation11 + $0x60] sm:$0xf]
          %v3121 = vld [vmem:[#allocation11 + $0x64] sm:$0xf]
          %v3122 = vld [vmem:[#allocation11 + $0x68] sm:$0xf]
          %v3123 = vld [vmem:[#allocation11 + $0x6c] sm:$0xf]
          %v3124 = vld [vmem:[#allocation11 + $0x70] sm:$0xf]
          %v3125 = vld [vmem:[#allocation11 + $0x74] sm:$0xf]
          %v3126 = vld [vmem:[#allocation11 + $0x78] sm:$0xf]
          %v3127 = vld [vmem:[#allocation11 + $0x7c] sm:$0xf]
          %v3128 = vld [vmem:[#allocation12] sm:$0x1]
          %v3130 = vlaneseq
          %v3131 = vshrl.u32 %v3130, 7
          %v3132 = vsub.s32 0, %v3131
          %v3133 = vrot.slane %v3128, %v3132
          %v3167 = vunpack.c.l.b16 %v3096
          %v3168 = vunpack.c.l.b16 %v3097
          %v3169 = vunpack.c.l.b16 %v3098
          %v3170 = vunpack.c.l.b16 %v3099
          %v3171 = vunpack.c.l.b16 %v3100
          %v3172 = vunpack.c.l.b16 %v3101
          %v3173 = vunpack.c.l.b16 %v3102
          %v3174 = vunpack.c.l.b16 %v3103
          %v3175 = vunpack.c.l.b16 %v3104
          %v3176 = vunpack.c.l.b16 %v3105
          %v3177 = vunpack.c.l.b16 %v3106
          %v3178 = vunpack.c.l.b16 %v3107
          %v3179 = vunpack.c.l.b16 %v3108
          %v3180 = vunpack.c.l.b16 %v3109
          %v3181 = vunpack.c.l.b16 %v3110
          %v3182 = vunpack.c.l.b16 %v3111
          %v3183 = vunpack.c.l.b16 %v3112
          %v3184 = vunpack.c.l.b16 %v3113
          %v3185 = vunpack.c.l.b16 %v3114
          %v3186 = vunpack.c.l.b16 %v3115
          %v3187 = vunpack.c.l.b16 %v3116
          %v3188 = vunpack.c.l.b16 %v3117
          %v3189 = vunpack.c.l.b16 %v3118
          %v3190 = vunpack.c.l.b16 %v3119
          %v3191 = vunpack.c.l.b16 %v3120
          %v3192 = vunpack.c.l.b16 %v3121
          %v3193 = vunpack.c.l.b16 %v3122
          %v3194 = vunpack.c.l.b16 %v3123
          %v3195 = vunpack.c.l.b16 %v3124
          %v3196 = vunpack.c.l.b16 %v3125
          %v3197 = vunpack.c.l.b16 %v3126
          %v3198 = vunpack.c.l.b16 %v3127
          %v3199 = vpack.c.b16 %v3168, %v3167
          %v3200 = vpack.c.b16 %v3170, %v3169
          %v3201 = vpack.c.b16 %v3172, %v3171
          %v3202 = vpack.c.b16 %v3174, %v3173
          %v3203 = vpack.c.b16 %v3176, %v3175
          %v3204 = vpack.c.b16 %v3178, %v3177
          %v3205 = vpack.c.b16 %v3180, %v3179
          %v3206 = vpack.c.b16 %v3182, %v3181
          %v3207 = vpack.c.b16 %v3184, %v3183
          %v3208 = vpack.c.b16 %v3186, %v3185
          %v3209 = vpack.c.b16 %v3188, %v3187
          %v3210 = vpack.c.b16 %v3190, %v3189
          %v3211 = vpack.c.b16 %v3192, %v3191
          %v3212 = vpack.c.b16 %v3194, %v3193
          %v3213 = vpack.c.b16 %v3196, %v3195
          %v3214 = vpack.c.b16 %v3198, %v3197
          %3231 = vmatprep.subr.bf16.mxu0 0
          %3232 = vmatpush1.bf16.msra.mxu0 %v3199
          %3233 = vmatprep.subr.bf16.mxu0 0
          %3234 = vmatpush1.bf16.msra.mxu0 %v3200
          %3235 = vmatprep.subr.bf16.mxu0 0
          %3236 = vmatpush1.bf16.msra.mxu0 %v3201
          %3237 = vmatprep.subr.bf16.mxu0 0
          %3238 = vmatpush1.bf16.msra.mxu0 %v3202
          %3239 = vmatprep.subr.bf16.mxu0 0
          %3240 = vmatpush1.bf16.msra.mxu0 %v3203
          %3241 = vmatprep.subr.bf16.mxu0 0
          %3242 = vmatpush1.bf16.msra.mxu0 %v3204
          %3243 = vmatprep.subr.bf16.mxu0 0
          %3244 = vmatpush1.bf16.msra.mxu0 %v3205
          %3245 = vmatprep.subr.bf16.mxu0 0
          %3246 = vmatpush1.bf16.msra.mxu0 %v3206
          %3247 = vmatprep.subr.bf16.mxu0 0
          %3248 = vmatpush1.bf16.msra.mxu0 %v3207
          %3249 = vmatprep.subr.bf16.mxu0 0
          %3250 = vmatpush1.bf16.msra.mxu0 %v3208
          %3251 = vmatprep.subr.bf16.mxu0 0
          %3252 = vmatpush1.bf16.msra.mxu0 %v3209
          %3253 = vmatprep.subr.bf16.mxu0 0
          %3254 = vmatpush1.bf16.msra.mxu0 %v3210
          %3255 = vmatprep.subr.bf16.mxu0 0
          %3256 = vmatpush1.bf16.msra.mxu0 %v3211
          %3257 = vmatprep.subr.bf16.mxu0 0
          %3258 = vmatpush1.bf16.msra.mxu0 %v3212
          %3259 = vmatprep.subr.bf16.mxu0 0
          %3260 = vmatpush1.bf16.msra.mxu0 %v3213
          %3261 = vmatprep.subr.bf16.mxu0 0
          %3262 = vmatpush1.bf16.msra.mxu0 %v3214
          %3263 = vmatprep.mubr.bf16.mxu0 %v3095
          %3264 = vmatmul.mubr.bf16.gmra.mrb[0].mxu0 %v3094
          %v3265 = vpop.f32.mrb[0].mxu0
          %v3266 = vadd.f32 %v3133, %v3265
          %v3267 = vpop.f32.mrb[0].mxu0
          %v3268 = vpop.f32.mrb[0].mxu0
          %v3269 = vadd.f32 %v3133, %v3268
          %v3270 = vpop.f32.mrb[0].mxu0
          %3271 = vdwg.mxu0
          %v3272 = vmax.f32 %v3266, 0.0
          %v3273 = vmax.f32 %v3269, 0.0
          %v3274 = vpack.c.bf16 %v3273, %v3272
          %v3275 = vld [vmem:[%s7] sm:$0xf]
          %v3276 = vld [vmem:[%s7 + $0x4] sm:$0xf]
          %v3277 = vld [vmem:[%s7 + $0x8] sm:$0xf]
          %v3278 = vld [vmem:[%s7 + $0xc] sm:$0xf]
          %v3279 = vld [vmem:[%s7 + $0x10] sm:$0xf]
          %v3280 = vld [vmem:[%s7 + $0x14] sm:$0xf]
          %v3281 = vld [vmem:[%s7 + $0x18] sm:$0xf]
          %v3282 = vld [vmem:[%s7 + $0x1c] sm:$0xf]
          %v3283 = vld [vmem:[%s7 + $0x20] sm:$0xf]
          %v3284 = vld [vmem:[%s7 + $0x24] sm:$0xf]
          %v3285 = vld [vmem:[%s7 + $0x28] sm:$0xf]
          %v3286 = vld [vmem:[%s7 + $0x2c] sm:$0xf]
          %v3287 = vld [vmem:[%s7 + $0x30] sm:$0xf]
          %v3288 = vld [vmem:[%s7 + $0x34] sm:$0xf]
          %v3289 = vld [vmem:[%s7 + $0x38] sm:$0xf]
          %v3290 = vld [vmem:[%s7 + $0x3c] sm:$0xf]
          %v3291 = vld [vmem:[#allocation14] sm:$0x1]
          %v3293 = vlaneseq
          %v3294 = vshrl.u32 %v3293, 7
          %v3295 = vsub.s32 0, %v3294
          %v3296 = vrot.slane %v3291, %v3295
          %v3314 = vunpack.c.l.b16 %v3275
          %v3315 = vunpack.c.l.b16 %v3276
          %v3316 = vunpack.c.l.b16 %v3277
          %v3317 = vunpack.c.l.b16 %v3278
          %v3318 = vunpack.c.l.b16 %v3279
          %v3319 = vunpack.c.l.b16 %v3280
          %v3320 = vunpack.c.l.b16 %v3281
          %v3321 = vunpack.c.l.b16 %v3282
          %v3322 = vunpack.c.l.b16 %v3283
          %v3323 = vunpack.c.l.b16 %v3284
          %v3324 = vunpack.c.l.b16 %v3285
          %v3325 = vunpack.c.l.b16 %v3286
          %v3326 = vunpack.c.l.b16 %v3287
          %v3327 = vunpack.c.l.b16 %v3288
          %v3328 = vunpack.c.l.b16 %v3289
          %v3329 = vunpack.c.l.b16 %v3290
          %v3330 = vpack.c.b16 %v3315, %v3314
          %v3331 = vpack.c.b16 %v3317, %v3316
          %v3332 = vpack.c.b16 %v3319, %v3318
          %v3333 = vpack.c.b16 %v3321, %v3320
          %v3334 = vpack.c.b16 %v3323, %v3322
          %v3335 = vpack.c.b16 %v3325, %v3324
          %v3336 = vpack.c.b16 %v3327, %v3326
          %v3337 = vpack.c.b16 %v3329, %v3328
          %3346 = vmatprep.subr.bf16.mxu0 0
          %3347 = vmatpush1.bf16.msra.mxu0 %v3330
          %3348 = vmatprep.subr.bf16.mxu0 0
          %3349 = vmatpush1.bf16.msra.mxu0 %v3331
          %3350 = vmatprep.subr.bf16.mxu0 0
          %3351 = vmatpush1.bf16.msra.mxu0 %v3332
          %3352 = vmatprep.subr.bf16.mxu0 0
          %3353 = vmatpush1.bf16.msra.mxu0 %v3333
          %3354 = vmatprep.subr.bf16.mxu0 0
          %3355 = vmatpush1.bf16.msra.mxu0 %v3334
          %3356 = vmatprep.subr.bf16.mxu0 0
          %3357 = vmatpush1.bf16.msra.mxu0 %v3335
          %3358 = vmatprep.subr.bf16.mxu0 0
          %3359 = vmatpush1.bf16.msra.mxu0 %v3336
          %3360 = vmatprep.subr.bf16.mxu0 0
          %3361 = vmatpush1.bf16.msra.mxu0 %v3337
          %3362 = vmatprep.subr.bf16.mxu0 0
          %3363 = vmatpush1.bf16.msra.mxu0 0
          %3364 = vmatprep.subr.bf16.mxu0 0
          %3365 = vmatpush1.bf16.msra.mxu0 0
          %3366 = vmatprep.subr.bf16.mxu0 0
          %3367 = vmatpush1.bf16.msra.mxu0 0
          %3368 = vmatprep.subr.bf16.mxu0 0
          %3369 = vmatpush1.bf16.msra.mxu0 0
          %3370 = vmatprep.subr.bf16.mxu0 0
          %3371 = vmatpush1.bf16.msra.mxu0 0
          %3372 = vmatprep.subr.bf16.mxu0 0
          %3373 = vmatpush1.bf16.msra.mxu0 0
          %3374 = vmatprep.subr.bf16.mxu0 0
          %3375 = vmatpush1.bf16.msra.mxu0 0
          %3376 = vmatprep.subr.bf16.mxu0 0
          %3377 = vmatpush1.bf16.msra.mxu0 0
          %3378 = vmatprep.mubr.bf16.mxu0 0
          %3379 = vmatmul.mubr.bf16.gmra.mrb[0].mxu0 %v3274
          %v3380 = vpop.f32.mrb[0].mxu0
          %v3381 = vadd.f32 %v3296, %v3380
          %v3382 = vpop.f32.mrb[0].mxu0
          %v3383 = vpop.f32.mrb[0].mxu0
          %v3384 = vadd.f32 %v3296, %v3383
          %v3385 = vpop.f32.mrb[0].mxu0
          %3386 = vdwg.mxu0
          %v3387 = vmax.f32 %v3381, 0.0
          %v3388 = vmax.f32 %v3384, 0.0
          %v3389 = vpack.c.bf16 %v3388, %v3387
          %v3390 = vld [vmem:[#allocation15] sm:$0xf]
          %v3391 = vld [vmem:[#allocation15 + $0x4] sm:$0xf]
          %v3392 = vld [vmem:[#allocation15 + $0x8] sm:$0xf]
          %v3393 = vld [vmem:[#allocation15 + $0xc] sm:$0xf]
          %v3394 = vld [vmem:[#allocation15 + $0x10] sm:$0xf]
          %v3395 = vld [vmem:[#allocation15 + $0x14] sm:$0xf]
          %v3396 = vld [vmem:[#allocation15 + $0x18] sm:$0xf]
          %v3397 = vld [vmem:[#allocation15 + $0x1c] sm:$0xf]
          %v3398 = vld [vmem:[#allocation17] sm:$0x1]
          %v3400 = vlaneseq
          %v3401 = vshrl.u32 %v3400, 7
          %v3402 = vsub.s32 0, %v3401
          %v3403 = vrot.slane %v3398, %v3402
          %v3413 = vunpack.c.l.b16 %v3390
          %v3414 = vunpack.c.l.b16 %v3391
          %v3415 = vunpack.c.l.b16 %v3392
          %v3416 = vunpack.c.l.b16 %v3393
          %v3417 = vunpack.c.l.b16 %v3394
          %v3418 = vunpack.c.l.b16 %v3395
          %v3419 = vunpack.c.l.b16 %v3396
          %v3420 = vunpack.c.l.b16 %v3397
          %v3421 = vpack.c.b16 %v3414, %v3413
          %v3422 = vpack.c.b16 %v3416, %v3415
          %v3423 = vpack.c.b16 %v3418, %v3417
          %v3424 = vpack.c.b16 %v3420, %v3419
          %vm3429 = vcmask 523264
          %v3431 = vsel %vm3429, %v3389, 0
          %3433 = vmatprep.subr.bf16.mxu0 0
          %3434 = vmatpush1.bf16.msra.mxu0 %v3421
          %3435 = vmatprep.subr.bf16.mxu0 0
          %3436 = vmatpush1.bf16.msra.mxu0 %v3422
          %3437 = vmatprep.subr.bf16.mxu0 0
          %3438 = vmatpush1.bf16.msra.mxu0 %v3423
          %3439 = vmatprep.subr.bf16.mxu0 0
          %3440 = vmatpush1.bf16.msra.mxu0 %v3424
          %3441 = vmatprep.subr.bf16.mxu0 0
          %3442 = vmatpush1.bf16.msra.mxu0 0
          %3443 = vmatprep.subr.bf16.mxu0 0
          %3444 = vmatpush1.bf16.msra.mxu0 0
          %3445 = vmatprep.subr.bf16.mxu0 0
          %3446 = vmatpush1.bf16.msra.mxu0 0
          %3447 = vmatprep.subr.bf16.mxu0 0
          %3448 = vmatpush1.bf16.msra.mxu0 0
          %3449 = vmatprep.subr.bf16.mxu0 0
          %3450 = vmatpush1.bf16.msra.mxu0 0
          %3451 = vmatprep.subr.bf16.mxu0 0
          %3452 = vmatpush1.bf16.msra.mxu0 0
          %3453 = vmatprep.subr.bf16.mxu0 0
          %3454 = vmatpush1.bf16.msra.mxu0 0
          %3455 = vmatprep.subr.bf16.mxu0 0
          %3456 = vmatpush1.bf16.msra.mxu0 0
          %3457 = vmatprep.subr.bf16.mxu0 0
          %3458 = vmatpush1.bf16.msra.mxu0 0
          %3459 = vmatprep.subr.bf16.mxu0 0
          %3460 = vmatpush1.bf16.msra.mxu0 0
          %3461 = vmatprep.subr.bf16.mxu0 0
          %3462 = vmatpush1.bf16.msra.mxu0 0
          %3463 = vmatprep.subr.bf16.mxu0 0
          %3464 = vmatpush1.bf16.msra.mxu0 0
          %3465 = vmatprep.mubr.bf16.mxu0 0
          %3466 = vmatmul.mubr.bf16.gmra.mrb[0].mxu0 %v3431
          %v3467 = vpop.f32.mrb[0].mxu0
          %v3468 = vadd.f32 %v3403, %v3467
          %v3469 = vpop.f32.mrb[0].mxu0
          %v3470 = vpop.f32.mrb[0].mxu0
          %v3471 = vadd.f32 %v3403, %v3470
          %v3472 = vpop.f32.mrb[0].mxu0
          %3473 = vdwg.mxu0
          %3474 = vst [vmem:[%s587] sm:$0xff] %v3468
          %3475 = vst [vmem:[%s587 + $0x8] sm:$0xff] %v3471
        $region131: #{fcnn_forward.1} parent=82 // pred_fallthru
          _
        %s3476 = smul.u32 2, %s33
        %p3477 = scmp.lt.s32.totalorder %s3476, 1
        %s3478 = scalar_select %p3477, %s3476, 1
        %s3479 = smul.addr %s3478, 8
        %s3480 = scalar_lea.vmem %s11, %s3479
        // Predicated region
        $region132: #{fcnn_forward.1} parent=82 // pred_check
          %p3481 = pneg %p302
        $region133: #{fcnn_forward.1} parent=82 // pred_check_branch
          %3483 = sbr.rel (%p3481) target = $region135
        $region134: #{fcnn_forward.1} parent=82 // pred_region
          %s3484 = smul.u32 2, %s33
        $region135: #{fcnn_forward.1} parent=82 // pred_fallthru
          _
        // Predicated region
        $region136: #{fcnn_forward.1} parent=82 // pred_check
          %p3485 = pneg %p302
        $region137: #{fcnn_forward.1} parent=82 // pred_check_branch
          %3487 = sbr.rel (%p3485) target = $region139
        $region138: #{fcnn_forward.1} parent=82 // pred_region
          %s3488 = smul.u32 2, %s33
          %p3489 = scmp.lt.s32.totalorder %s3488, 1
          %s3490 = scalar_select %p3489, %s3488, 1
          %s3491 = smul.addr %s3490, 8
          %s3492 = scalar_lea.vmem %s11, %s3491
        $region139: #{fcnn_forward.1} parent=82 // pred_fallthru
          _
      $region83: #{fcnn_forward.1} parent=5 // pred_fallthru
        _
      %p3493 = scmp.le.s32.totalorder 2, %s24
      // Predicated region
      $region140: #{fcnn_forward.1} parent=5 // pred_check
        %p3494 = pneg %p3493
      $region141: #{fcnn_forward.1} parent=5 // pred_check_branch
        %3496 = sbr.rel (%p3494) target = $region143
      $region142: #{fcnn_forward.1} parent=5 // pred_region
        %s3497 = ssub.s32 %s24, 2
      $region143: #{fcnn_forward.1} parent=5 // pred_fallthru
        _
    $region6: #{fcnn_forward.1} parent=1 // loop_footer
      %s28 = sadd.s32 1, %s24
    $region7: #{fcnn_forward.1} parent=1 // loop_footer_branch
      %23 = sbr.rel target = $region3
    $region8: #{fcnn_forward.1} parent=1 // loop_exit
      _
    %3498 = vsyncpa [#allocation5], 1
    %s3499 = scalar_lea.sflag [#allocation5], 1
    %3500 = vsyncpa %s3499, 1
    %3501 = vsyncpa [#allocation7], 1
    %3502 = vsyncpa [#allocation10], 1
    %3503 = vsyncpa [#allocation13], 1
    %3504 = vsyncpa [#allocation16], 1

</llo_original>
